<compile_context>
chip_gen: v6e
topology: v6e:2x2x1
jax: 0.10.0
libtpu: 0.0.40
codegen_flags: <defaults>
</compile_context>

<pallas_src>
import jax
import jax.numpy as jnp
from jax.experimental import pallas as pl
from jax.experimental.pallas import tpu as pltpu

LN_EPS = 1e-5          # torch.nn.LayerNorm default eps
LEAKY_SLOPE = 0.01     # torch.nn.LeakyReLU default negative_slope
OUT_PAD = 128          # lane-dense padded output width (true logits = [:, :2])
_MIB = 1024 * 1024


def _round_up(x, m):
    return (x + m - 1) // m * m


def _cdiv(a, b):
    return -(-a // b)


def _layer(x, w, b, gamma, beta):
    """Linear -> LayerNorm -> LeakyReLU. Weights pre-cast in wrapper; only the
    activation is cast at the MXU. LN / activation / accumulation in f32."""
    y = jnp.dot(x.astype(w.dtype), w, preferred_element_type=jnp.float32)
    y = y + b
    mean = jnp.mean(y, axis=-1, keepdims=True)
    var = jnp.mean(jnp.square(y - mean), axis=-1, keepdims=True)
    y = (y - mean) * jax.lax.rsqrt(var + LN_EPS)
    y = y * gamma + beta
    return jnp.maximum(y, LEAKY_SLOPE * y)      # LeakyReLU (mul+max, no select)


def concept_head_kernel(x_ref,
                        w1_ref, b1_ref, g1_ref, be1_ref,
                        w2_ref, b2_ref, g2_ref, be2_ref,
                        w3_ref, b3_ref, g3_ref, be3_ref,
                        w4_ref, b4_ref,
                        out_ref):
    x = x_ref[...]
    y1 = _layer(x, w1_ref[...], b1_ref[...], g1_ref[...], be1_ref[...])
    y2 = _layer(y1, w2_ref[...], b2_ref[...], g2_ref[...], be2_ref[...])
    y3 = _layer(y2, w3_ref[...], b3_ref[...], g3_ref[...], be3_ref[...])
    # Final layer: zero-padded to OUT_PAD lanes in the wrapper (no LN follows,
    # so padding is exact) -> unmasked lane-dense stores.
    w4 = w4_ref[...]
    out = jnp.dot(y3.astype(w4.dtype), w4, preferred_element_type=jnp.float32)
    out_ref[...] = (out + b4_ref[...]).astype(out_ref.dtype)


def _vmem_limit_bytes():
    """Generation-aware scoped-VMEM limit: ~48 MiB on 64 MiB-VMEM chips (v7x),
    96 MiB on 128 MiB-VMEM chips (v5e/v6e)."""
    try:
        cap = getattr(pltpu.get_tpu_info(), "vmem_capacity_bytes", 64 * _MIB)
    except Exception:
        cap = 64 * _MIB
    return min(96 * _MIB, (cap * 3) // 4)


def _const_spec(a):
    """Weights / biases / LN params: constant block index -> fetched once,
    resident across every row tile; single-buffered to halve their VMEM."""
    idx = lambda i: (0,) * a.ndim
    try:
        return pl.BlockSpec(a.shape, idx, pipeline_mode=pl.Buffered(1))
    except TypeError:  # older BlockSpec signature without pipeline_mode
        return pl.BlockSpec(a.shape, idx)


def _x_spec(tile, e, buffers):
    idx = lambda i: (i, 0)
    if buffers == 2:
        return pl.BlockSpec((tile, e), idx)
    try:  # e.g. buffers=3 on v5e if input DMA is exposed
        return pl.BlockSpec((tile, e), idx, pipeline_mode=pl.Buffered(buffers))
    except TypeError:
        return pl.BlockSpec((tile, e), idx)


def concept_linking_classifier(embeddings, params, *, tile_n=2048,
                               use_bf16=True, x_buffers=2):
    """embeddings: [N, E] f32. params: dict of head weights. Returns [N, 2] f32."""
    n, e = embeddings.shape
    in_dtype = jnp.bfloat16 if use_bf16 else jnp.float32
    out_dtype = jnp.bfloat16 if use_bf16 else jnp.float32
    itb = jnp.dtype(in_dtype).itemsize
    otb = jnp.dtype(out_dtype).itemsize

    vmem_limit = _vmem_limit_bytes()
    budget = vmem_limit - 4 * _MIB   # headroom for compiler scratch

    # VMEM accounting: resident (single-buffered) weights + per-row cost of the
    # double-buffered x / out streams and the f32 layer intermediates.
    w_bytes = (itb * (e * 512 + 512 * 256 + 256 * 64 + 64 * OUT_PAD)
               + 4 * 2 * (512 + 256 + 64 + OUT_PAD))
    per_row = (2 * e * itb + 2 * OUT_PAD * otb
               + 2 * 4 * (512 + 256 + 64 + OUT_PAD))
    tile_cap = max(((budget - w_bytes) // per_row) // 8 * 8, 8)

    # Row tiling: pad N only to the 8-row sublane granule, then pick >=2 equal
    # tiles (so v7x's two TensorCores both get work) sized ~N/num_tiles so the
    # padding overhead stays tiny (never ~2x like round_up(N, tile) could be).
    n_pad8 = _round_up(max(n, 8), 8)
    tile = min(_round_up(tile_n, 8), tile_cap, n_pad8)
    min_tiles = 2 if n_pad8 >= 16 else 1
    num_tiles = max(_cdiv(n_pad8, tile), min_tiles)
    tile = _round_up(_cdiv(n_pad8, num_tiles), 8)
    n_pad = num_tiles * tile

    # bf16 at the HBM/DMA/MXU boundary; pad rows are exact (per-row LN only).
    x = embeddings.astype(in_dtype)
    if n_pad != n:
        x = jnp.pad(x, ((0, n_pad - n), (0, 0)))

    # Lane-dense final output: zero-pad w4/b4 from width 2 to OUT_PAD.
    w4p = jnp.pad(params["w4"], ((0, 0), (0, OUT_PAD - params["w4"].shape[1])))
    b4p = jnp.pad(params["b4"], ((0, 0), (0, OUT_PAD - params["b4"].shape[1])))

    args = (
        x,
        params["w1"].astype(in_dtype), params["b1"], params["g1"], params["be1"],
        params["w2"].astype(in_dtype), params["b2"], params["g2"], params["be2"],
        params["w3"].astype(in_dtype), params["b3"], params["g3"], params["be3"],
        w4p.astype(in_dtype), b4p,
    )

    in_specs = [_x_spec(tile, e, x_buffers)] + [_const_spec(a) for a in args[1:]]
    out_specs = pl.BlockSpec((tile, OUT_PAD), lambda i: (i, 0))

    flops = 2 * n_pad * (e * 512 + 512 * 256 + 256 * 64 + 64 * OUT_PAD)
    bytes_accessed = (n_pad * e * itb + n_pad * OUT_PAD * otb
                      + sum(int(a.size) * a.dtype.itemsize for a in args[1:]))
    cost = pl.CostEstimate(flops=flops, transcendentals=3 * n_pad,
                           bytes_accessed=bytes_accessed)

    out = pl.pallas_call(
        concept_head_kernel,
        out_shape=jax.ShapeDtypeStruct((n_pad, OUT_PAD), out_dtype),
        grid=(num_tiles,),
        in_specs=in_specs,
        out_specs=out_specs,
        compiler_params=pltpu.CompilerParams(
            dimension_semantics=("parallel",),          # 2-TC sharding on v7x
            vmem_limit_bytes=vmem_limit),
        cost_estimate=cost,
    )(*args)
    return out[:n, :2].astype(jnp.float32)


def init_params(key, emb_size):
    """Deterministic synthetic init with the module's shapes (LayerNorm branch)."""
    dims = [(emb_size, 512), (512, 256), (256, 64), (64, 2)]
    keys = jax.random.split(key, 8)
    params = {}
    for i, (din, dout) in enumerate(dims, start=1):
        bound = 1.0 / jnp.sqrt(din)
        params[f"w{i}"] = jax.random.uniform(
            keys[2 * (i - 1)], (din, dout), jnp.float32, -bound, bound)
        params[f"b{i}"] = jax.random.uniform(
            keys[2 * (i - 1) + 1], (1, dout), jnp.float32, -bound, bound)
        if i < 4:  # LayerNorm affine params (torch defaults: ones / zeros)
            params[f"g{i}"] = jnp.ones((1, dout), jnp.float32)
            params[f"be{i}"] = jnp.zeros((1, dout), jnp.float32)
    return params


def reference_head(x, p):
    """Pure-JAX f32 reference of the classifier head."""
    def layer(x, w, b, g, be):
        y = x @ w + b
        m = y.mean(-1, keepdims=True)
        v = ((y - m) ** 2).mean(-1, keepdims=True)
        y = (y - m) / jnp.sqrt(v + LN_EPS) * g + be
        return jnp.where(y > 0, y, LEAKY_SLOPE * y)
    y = layer(x, p["w1"], p["b1"], p["g1"], p["be1"])
    y = layer(y, p["w2"], p["b2"], p["g2"], p["be2"])
    y = layer(y, p["w3"], p["b3"], p["g3"], p["be3"])
    return y @ p["w4"] + p["b4"]


if __name__ == "__main__":
    key = jax.random.PRNGKey(0)
    k_emb, k_par = jax.random.split(key)

    # Small but grid-exercising shapes: 300 "nodes", emb_size=128.
    num_nodes = 300
    emb_size = 128

    embeddings = jax.random.normal(k_emb, (num_nodes, emb_size), jnp.float32)
    params = init_params(k_par, emb_size)
    ref = reference_head(embeddings, params)

    # Default fast path: bf16 embeddings/weights at the MXU, f32 LN/accumulate.
    out = concept_linking_classifier(embeddings, params, tile_n=128)
    out = jax.block_until_ready(out)
    assert out.shape == (num_nodes, 2)
    assert jnp.allclose(out, ref, atol=3e-2, rtol=3e-2), "bf16 kernel mismatch vs reference"

    # f32 validation path — tight tolerance against the f32 reference.
    out_f32 = concept_linking_classifier(embeddings, params, tile_n=128, use_bf16=False)
    out_f32 = jax.block_until_ready(out_f32)
    assert out_f32.shape == (num_nodes, 2)
    assert jnp.allclose(out_f32, ref, atol=1e-4, rtol=1e-4), "f32 kernel mismatch vs reference"

    # Default tile_n (VMEM-budgeted) path also works.
    out_big_tile = jax.block_until_ready(concept_linking_classifier(embeddings, params))
    assert jnp.allclose(out_big_tile, ref, atol=3e-2, rtol=3e-2), "default-tile mismatch"

    # Tiny-batch path (single 8-row tile) still works.
    out_small = jax.block_until_ready(concept_linking_classifier(embeddings[:8], params))
    assert jnp.allclose(out_small, ref[:8], atol=3e-2, rtol=3e-2), "small-N mismatch"

    print("KERNEL_OK")
</pallas_src>

<mosaic_0001>
module attributes {stable_mosaic.version = 11 : i64} {
  func.func @concept_head_kernel(%arg0: i32, %arg1: memref<104x128xbf16, #tpu.memory_space<vmem>>, %arg2: memref<128x512xbf16, #tpu.memory_space<vmem>>, %arg3: memref<1x512xf32, #tpu.memory_space<vmem>>, %arg4: memref<1x512xf32, #tpu.memory_space<vmem>>, %arg5: memref<1x512xf32, #tpu.memory_space<vmem>>, %arg6: memref<512x256xbf16, #tpu.memory_space<vmem>>, %arg7: memref<1x256xf32, #tpu.memory_space<vmem>>, %arg8: memref<1x256xf32, #tpu.memory_space<vmem>>, %arg9: memref<1x256xf32, #tpu.memory_space<vmem>>, %arg10: memref<256x64xbf16, #tpu.memory_space<vmem>>, %arg11: memref<1x64xf32, #tpu.memory_space<vmem>>, %arg12: memref<1x64xf32, #tpu.memory_space<vmem>>, %arg13: memref<1x64xf32, #tpu.memory_space<vmem>>, %arg14: memref<64x128xbf16, #tpu.memory_space<vmem>>, %arg15: memref<1x128xf32, #tpu.memory_space<vmem>>, %arg16: memref<104x128xbf16, #tpu.memory_space<vmem>>) attributes {dimension_semantics = [#tpu.dimension_semantics<parallel>], iteration_bounds = array<i64: 3>, scalar_prefetch = 0 : i64, scratch_operands = 0 : i64, tpu.core_type = #tpu.core_type<tc>, window_params = [{transform_indices = @transform_0, window_bounds = array<i64: 104, 128>}, {pipeline_mode = #tpu.pipeline_mode<synchronous>, transform_indices = @transform_1, window_bounds = array<i64: 128, 512>}, {pipeline_mode = #tpu.pipeline_mode<synchronous>, transform_indices = @transform_2, window_bounds = array<i64: 1, 512>}, {pipeline_mode = #tpu.pipeline_mode<synchronous>, transform_indices = @transform_3, window_bounds = array<i64: 1, 512>}, {pipeline_mode = #tpu.pipeline_mode<synchronous>, transform_indices = @transform_4, window_bounds = array<i64: 1, 512>}, {pipeline_mode = #tpu.pipeline_mode<synchronous>, transform_indices = @transform_5, window_bounds = array<i64: 512, 256>}, {pipeline_mode = #tpu.pipeline_mode<synchronous>, transform_indices = @transform_6, window_bounds = array<i64: 1, 256>}, {pipeline_mode = #tpu.pipeline_mode<synchronous>, transform_indices = @transform_7, window_bounds = array<i64: 1, 256>}, {pipeline_mode = #tpu.pipeline_mode<synchronous>, transform_indices = @transform_8, window_bounds = array<i64: 1, 256>}, {pipeline_mode = #tpu.pipeline_mode<synchronous>, transform_indices = @transform_9, window_bounds = array<i64: 256, 64>}, {pipeline_mode = #tpu.pipeline_mode<synchronous>, transform_indices = @transform_10, window_bounds = array<i64: 1, 64>}, {pipeline_mode = #tpu.pipeline_mode<synchronous>, transform_indices = @transform_11, window_bounds = array<i64: 1, 64>}, {pipeline_mode = #tpu.pipeline_mode<synchronous>, transform_indices = @transform_12, window_bounds = array<i64: 1, 64>}, {pipeline_mode = #tpu.pipeline_mode<synchronous>, transform_indices = @transform_13, window_bounds = array<i64: 64, 128>}, {pipeline_mode = #tpu.pipeline_mode<synchronous>, transform_indices = @transform_14, window_bounds = array<i64: 1, 128>}, {transform_indices = @transform_15, window_bounds = array<i64: 104, 128>}]} {
    %c0 = arith.constant 0 : index
    %c0_0 = arith.constant 0 : index
    %0 = vector.load %arg1[%c0, %c0_0] : memref<104x128xbf16, #tpu.memory_space<vmem>>, vector<104x128xbf16>
    %c0_1 = arith.constant 0 : index
    %c0_2 = arith.constant 0 : index
    %1 = vector.load %arg2[%c0_1, %c0_2] : memref<128x512xbf16, #tpu.memory_space<vmem>>, vector<128x512xbf16>
    %c0_3 = arith.constant 0 : index
    %c0_4 = arith.constant 0 : index
    %2 = vector.load %arg3[%c0_3, %c0_4] : memref<1x512xf32, #tpu.memory_space<vmem>>, vector<1x512xf32>
    %c0_5 = arith.constant 0 : index
    %c0_6 = arith.constant 0 : index
    %3 = vector.load %arg4[%c0_5, %c0_6] : memref<1x512xf32, #tpu.memory_space<vmem>>, vector<1x512xf32>
    %c0_7 = arith.constant 0 : index
    %c0_8 = arith.constant 0 : index
    %4 = vector.load %arg5[%c0_7, %c0_8] : memref<1x512xf32, #tpu.memory_space<vmem>>, vector<1x512xf32>
    %cst = arith.constant dense<0.000000e+00> : vector<104x512xf32>
    %5 = tpu.matmul %0, %1, %cst {dimension_numbers = #tpu.dot_dimension_numbers<[1], [0], [0], [1], [0, 0, 1, 1], [], []>} : vector<104x128xbf16>, vector<128x512xbf16>, vector<104x512xf32> -> vector<104x512xf32>
    %6 = vector.broadcast %2 : vector<1x512xf32> to vector<104x512xf32>
    %7 = arith.addf %5, %6 : vector<104x512xf32>
    %cst_9 = arith.constant dense<0.000000e+00> : vector<104xf32>
    %8 = vector.multi_reduction <add>, %7, %cst_9 [1] : vector<104x512xf32> to vector<104xf32>
    %9 = vector.shape_cast %8 : vector<104xf32> to vector<104x1xf32>
    %cst_10 = arith.constant 5.120000e+02 : f32
    %10 = vector.broadcast %cst_10 : f32 to vector<104x1xf32>
    %11 = arith.divf %9, %10 : vector<104x1xf32>
    %12 = vector.broadcast %11 : vector<104x1xf32> to vector<104x512xf32>
    %13 = arith.subf %7, %12 : vector<104x512xf32>
    %14 = arith.mulf %13, %13 : vector<104x512xf32>
    %cst_11 = arith.constant dense<0.000000e+00> : vector<104xf32>
    %15 = vector.multi_reduction <add>, %14, %cst_11 [1] : vector<104x512xf32> to vector<104xf32>
    %16 = vector.shape_cast %15 : vector<104xf32> to vector<104x1xf32>
    %cst_12 = arith.constant 5.120000e+02 : f32
    %17 = vector.broadcast %cst_12 : f32 to vector<104x1xf32>
    %18 = arith.divf %16, %17 : vector<104x1xf32>
    %19 = vector.broadcast %11 : vector<104x1xf32> to vector<104x512xf32>
    %20 = arith.subf %7, %19 : vector<104x512xf32>
    %cst_13 = arith.constant 9.99999974E-6 : f32
    %21 = vector.broadcast %cst_13 : f32 to vector<104x1xf32>
    %22 = arith.addf %18, %21 : vector<104x1xf32>
    %23 = math.rsqrt %22 : vector<104x1xf32>
    %24 = vector.broadcast %23 : vector<104x1xf32> to vector<104x512xf32>
    %25 = arith.mulf %20, %24 : vector<104x512xf32>
    %26 = vector.broadcast %3 : vector<1x512xf32> to vector<104x512xf32>
    %27 = arith.mulf %25, %26 : vector<104x512xf32>
    %28 = vector.broadcast %4 : vector<1x512xf32> to vector<104x512xf32>
    %29 = arith.addf %27, %28 : vector<104x512xf32>
    %cst_14 = arith.constant 0.00999999977 : f32
    %30 = vector.broadcast %cst_14 : f32 to vector<104x512xf32>
    %31 = arith.mulf %30, %29 : vector<104x512xf32>
    %32 = arith.maximumf %29, %31 : vector<104x512xf32>
    %c0_15 = arith.constant 0 : index
    %c0_16 = arith.constant 0 : index
    %33 = vector.load %arg6[%c0_15, %c0_16] : memref<512x256xbf16, #tpu.memory_space<vmem>>, vector<512x256xbf16>
    %c0_17 = arith.constant 0 : index
    %c0_18 = arith.constant 0 : index
    %34 = vector.load %arg7[%c0_17, %c0_18] : memref<1x256xf32, #tpu.memory_space<vmem>>, vector<1x256xf32>
    %c0_19 = arith.constant 0 : index
    %c0_20 = arith.constant 0 : index
    %35 = vector.load %arg8[%c0_19, %c0_20] : memref<1x256xf32, #tpu.memory_space<vmem>>, vector<1x256xf32>
    %c0_21 = arith.constant 0 : index
    %c0_22 = arith.constant 0 : index
    %36 = vector.load %arg9[%c0_21, %c0_22] : memref<1x256xf32, #tpu.memory_space<vmem>>, vector<1x256xf32>
    %37 = arith.truncf %32 : vector<104x512xf32> to vector<104x512xbf16>
    %cst_23 = arith.constant dense<0.000000e+00> : vector<104x256xf32>
    %38 = tpu.matmul %37, %33, %cst_23 {dimension_numbers = #tpu.dot_dimension_numbers<[1], [0], [0], [1], [0, 0, 1, 1], [], []>} : vector<104x512xbf16>, vector<512x256xbf16>, vector<104x256xf32> -> vector<104x256xf32>
    %39 = vector.broadcast %34 : vector<1x256xf32> to vector<104x256xf32>
    %40 = arith.addf %38, %39 : vector<104x256xf32>
    %cst_24 = arith.constant dense<0.000000e+00> : vector<104xf32>
    %41 = vector.multi_reduction <add>, %40, %cst_24 [1] : vector<104x256xf32> to vector<104xf32>
    %42 = vector.shape_cast %41 : vector<104xf32> to vector<104x1xf32>
    %cst_25 = arith.constant 2.560000e+02 : f32
    %43 = vector.broadcast %cst_25 : f32 to vector<104x1xf32>
    %44 = arith.divf %42, %43 : vector<104x1xf32>
    %45 = vector.broadcast %44 : vector<104x1xf32> to vector<104x256xf32>
    %46 = arith.subf %40, %45 : vector<104x256xf32>
    %47 = arith.mulf %46, %46 : vector<104x256xf32>
    %cst_26 = arith.constant dense<0.000000e+00> : vector<104xf32>
    %48 = vector.multi_reduction <add>, %47, %cst_26 [1] : vector<104x256xf32> to vector<104xf32>
    %49 = vector.shape_cast %48 : vector<104xf32> to vector<104x1xf32>
    %cst_27 = arith.constant 2.560000e+02 : f32
    %50 = vector.broadcast %cst_27 : f32 to vector<104x1xf32>
    %51 = arith.divf %49, %50 : vector<104x1xf32>
    %52 = vector.broadcast %44 : vector<104x1xf32> to vector<104x256xf32>
    %53 = arith.subf %40, %52 : vector<104x256xf32>
    %cst_28 = arith.constant 9.99999974E-6 : f32
    %54 = vector.broadcast %cst_28 : f32 to vector<104x1xf32>
    %55 = arith.addf %51, %54 : vector<104x1xf32>
    %56 = math.rsqrt %55 : vector<104x1xf32>
    %57 = vector.broadcast %56 : vector<104x1xf32> to vector<104x256xf32>
    %58 = arith.mulf %53, %57 : vector<104x256xf32>
    %59 = vector.broadcast %35 : vector<1x256xf32> to vector<104x256xf32>
    %60 = arith.mulf %58, %59 : vector<104x256xf32>
    %61 = vector.broadcast %36 : vector<1x256xf32> to vector<104x256xf32>
    %62 = arith.addf %60, %61 : vector<104x256xf32>
    %cst_29 = arith.constant 0.00999999977 : f32
    %63 = vector.broadcast %cst_29 : f32 to vector<104x256xf32>
    %64 = arith.mulf %63, %62 : vector<104x256xf32>
    %65 = arith.maximumf %62, %64 : vector<104x256xf32>
    %c0_30 = arith.constant 0 : index
    %c0_31 = arith.constant 0 : index
    %66 = vector.load %arg10[%c0_30, %c0_31] : memref<256x64xbf16, #tpu.memory_space<vmem>>, vector<256x64xbf16>
    %c0_32 = arith.constant 0 : index
    %c0_33 = arith.constant 0 : index
    %67 = vector.load %arg11[%c0_32, %c0_33] : memref<1x64xf32, #tpu.memory_space<vmem>>, vector<1x64xf32>
    %c0_34 = arith.constant 0 : index
    %c0_35 = arith.constant 0 : index
    %68 = vector.load %arg12[%c0_34, %c0_35] : memref<1x64xf32, #tpu.memory_space<vmem>>, vector<1x64xf32>
    %c0_36 = arith.constant 0 : index
    %c0_37 = arith.constant 0 : index
    %69 = vector.load %arg13[%c0_36, %c0_37] : memref<1x64xf32, #tpu.memory_space<vmem>>, vector<1x64xf32>
    %70 = arith.truncf %65 : vector<104x256xf32> to vector<104x256xbf16>
    %cst_38 = arith.constant dense<0.000000e+00> : vector<104x64xf32>
    %71 = tpu.matmul %70, %66, %cst_38 {dimension_numbers = #tpu.dot_dimension_numbers<[1], [0], [0], [1], [0, 0, 1, 1], [], []>} : vector<104x256xbf16>, vector<256x64xbf16>, vector<104x64xf32> -> vector<104x64xf32>
    %72 = vector.broadcast %67 : vector<1x64xf32> to vector<104x64xf32>
    %73 = arith.addf %71, %72 : vector<104x64xf32>
    %cst_39 = arith.constant dense<0.000000e+00> : vector<104xf32>
    %74 = vector.multi_reduction <add>, %73, %cst_39 [1] : vector<104x64xf32> to vector<104xf32>
    %75 = vector.shape_cast %74 : vector<104xf32> to vector<104x1xf32>
    %cst_40 = arith.constant 6.400000e+01 : f32
    %76 = vector.broadcast %cst_40 : f32 to vector<104x1xf32>
    %77 = arith.divf %75, %76 : vector<104x1xf32>
    %78 = vector.broadcast %77 : vector<104x1xf32> to vector<104x64xf32>
    %79 = arith.subf %73, %78 : vector<104x64xf32>
    %80 = arith.mulf %79, %79 : vector<104x64xf32>
    %cst_41 = arith.constant dense<0.000000e+00> : vector<104xf32>
    %81 = vector.multi_reduction <add>, %80, %cst_41 [1] : vector<104x64xf32> to vector<104xf32>
    %82 = vector.shape_cast %81 : vector<104xf32> to vector<104x1xf32>
    %cst_42 = arith.constant 6.400000e+01 : f32
    %83 = vector.broadcast %cst_42 : f32 to vector<104x1xf32>
    %84 = arith.divf %82, %83 : vector<104x1xf32>
    %85 = vector.broadcast %77 : vector<104x1xf32> to vector<104x64xf32>
    %86 = arith.subf %73, %85 : vector<104x64xf32>
    %cst_43 = arith.constant 9.99999974E-6 : f32
    %87 = vector.broadcast %cst_43 : f32 to vector<104x1xf32>
    %88 = arith.addf %84, %87 : vector<104x1xf32>
    %89 = math.rsqrt %88 : vector<104x1xf32>
    %90 = vector.broadcast %89 : vector<104x1xf32> to vector<104x64xf32>
    %91 = arith.mulf %86, %90 : vector<104x64xf32>
    %92 = vector.broadcast %68 : vector<1x64xf32> to vector<104x64xf32>
    %93 = arith.mulf %91, %92 : vector<104x64xf32>
    %94 = vector.broadcast %69 : vector<1x64xf32> to vector<104x64xf32>
    %95 = arith.addf %93, %94 : vector<104x64xf32>
    %cst_44 = arith.constant 0.00999999977 : f32
    %96 = vector.broadcast %cst_44 : f32 to vector<104x64xf32>
    %97 = arith.mulf %96, %95 : vector<104x64xf32>
    %98 = arith.maximumf %95, %97 : vector<104x64xf32>
    %c0_45 = arith.constant 0 : index
    %c0_46 = arith.constant 0 : index
    %99 = vector.load %arg14[%c0_45, %c0_46] : memref<64x128xbf16, #tpu.memory_space<vmem>>, vector<64x128xbf16>
    %100 = arith.truncf %98 : vector<104x64xf32> to vector<104x64xbf16>
    %cst_47 = arith.constant dense<0.000000e+00> : vector<104x128xf32>
    %101 = tpu.matmul %100, %99, %cst_47 {dimension_numbers = #tpu.dot_dimension_numbers<[1], [0], [0], [1], [0, 0, 1, 1], [], []>} : vector<104x64xbf16>, vector<64x128xbf16>, vector<104x128xf32> -> vector<104x128xf32>
    %c0_48 = arith.constant 0 : index
    %c0_49 = arith.constant 0 : index
    %102 = vector.load %arg15[%c0_48, %c0_49] : memref<1x128xf32, #tpu.memory_space<vmem>>, vector<1x128xf32>
    %103 = vector.broadcast %102 : vector<1x128xf32> to vector<104x128xf32>
    %104 = arith.addf %101, %103 : vector<104x128xf32>
    %105 = arith.truncf %104 : vector<104x128xf32> to vector<104x128xbf16>
    %c0_50 = arith.constant 0 : index
    %c0_51 = arith.constant 0 : index
    %106 = vector.load %arg16[%c0_50, %c0_51] : memref<104x128xbf16, #tpu.memory_space<vmem>>, vector<104x128xbf16>
    tpu.vector_store %arg16[%c0_50, %c0_51], %105 {strides = array<i32>} : memref<104x128xbf16, #tpu.memory_space<vmem>>, vector<104x128xbf16>,
    return
  }
  func.func @transform_0(%arg0: i32) -> (i32, i32) {
    %c0_i32 = arith.constant 0 : i32
    %c0_i32_0 = arith.constant 0 : i32
    return %arg0, %c0_i32 : i32, i32
  }
  func.func @transform_1(%arg0: i32) -> (i32, i32) {
    %c0_i32 = arith.constant 0 : i32
    %c0_i32_0 = arith.constant 0 : i32
    %c0_i32_1 = arith.constant 0 : i32
    return %c0_i32, %c0_i32_0 : i32, i32
  }
  func.func @transform_2(%arg0: i32) -> (i32, i32) {
    %c0_i32 = arith.constant 0 : i32
    %c0_i32_0 = arith.constant 0 : i32
    %c0_i32_1 = arith.constant 0 : i32
    return %c0_i32, %c0_i32_0 : i32, i32
  }
  func.func @transform_3(%arg0: i32) -> (i32, i32) {
    %c0_i32 = arith.constant 0 : i32
    %c0_i32_0 = arith.constant 0 : i32
    %c0_i32_1 = arith.constant 0 : i32
    return %c0_i32, %c0_i32_0 : i32, i32
  }
  func.func @transform_4(%arg0: i32) -> (i32, i32) {
    %c0_i32 = arith.constant 0 : i32
    %c0_i32_0 = arith.constant 0 : i32
    %c0_i32_1 = arith.constant 0 : i32
    return %c0_i32, %c0_i32_0 : i32, i32
  }
  func.func @transform_5(%arg0: i32) -> (i32, i32) {
    %c0_i32 = arith.constant 0 : i32
    %c0_i32_0 = arith.constant 0 : i32
    %c0_i32_1 = arith.constant 0 : i32
    return %c0_i32, %c0_i32_0 : i32, i32
  }
  func.func @transform_6(%arg0: i32) -> (i32, i32) {
    %c0_i32 = arith.constant 0 : i32
    %c0_i32_0 = arith.constant 0 : i32
    %c0_i32_1 = arith.constant 0 : i32
    return %c0_i32, %c0_i32_0 : i32, i32
  }
  func.func @transform_7(%arg0: i32) -> (i32, i32) {
    %c0_i32 = arith.constant 0 : i32
    %c0_i32_0 = arith.constant 0 : i32
    %c0_i32_1 = arith.constant 0 : i32
    return %c0_i32, %c0_i32_0 : i32, i32
  }
  func.func @transform_8(%arg0: i32) -> (i32, i32) {
    %c0_i32 = arith.constant 0 : i32
    %c0_i32_0 = arith.constant 0 : i32
    %c0_i32_1 = arith.constant 0 : i32
    return %c0_i32, %c0_i32_0 : i32, i32
  }
  func.func @transform_9(%arg0: i32) -> (i32, i32) {
    %c0_i32 = arith.constant 0 : i32
    %c0_i32_0 = arith.constant 0 : i32
    %c0_i32_1 = arith.constant 0 : i32
    return %c0_i32, %c0_i32_0 : i32, i32
  }
  func.func @transform_10(%arg0: i32) -> (i32, i32) {
    %c0_i32 = arith.constant 0 : i32
    %c0_i32_0 = arith.constant 0 : i32
    %c0_i32_1 = arith.constant 0 : i32
    return %c0_i32, %c0_i32_0 : i32, i32
  }
  func.func @transform_11(%arg0: i32) -> (i32, i32) {
    %c0_i32 = arith.constant 0 : i32
    %c0_i32_0 = arith.constant 0 : i32
    %c0_i32_1 = arith.constant 0 : i32
    return %c0_i32, %c0_i32_0 : i32, i32
  }
  func.func @transform_12(%arg0: i32) -> (i32, i32) {
    %c0_i32 = arith.constant 0 : i32
    %c0_i32_0 = arith.constant 0 : i32
    %c0_i32_1 = arith.constant 0 : i32
    return %c0_i32, %c0_i32_0 : i32, i32
  }
  func.func @transform_13(%arg0: i32) -> (i32, i32) {
    %c0_i32 = arith.constant 0 : i32
    %c0_i32_0 = arith.constant 0 : i32
    %c0_i32_1 = arith.constant 0 : i32
    return %c0_i32, %c0_i32_0 : i32, i32
  }
  func.func @transform_14(%arg0: i32) -> (i32, i32) {
    %c0_i32 = arith.constant 0 : i32
    %c0_i32_0 = arith.constant 0 : i32
    %c0_i32_1 = arith.constant 0 : i32
    return %c0_i32, %c0_i32_0 : i32, i32
  }
  func.func @transform_15(%arg0: i32) -> (i32, i32) {
    %c0_i32 = arith.constant 0 : i32
    %c0_i32_0 = arith.constant 0 : i32
    return %arg0, %c0_i32 : i32, i32
  }
}

</mosaic_0001>

<llo_original>
// kernel: tpu_custom_call.1
$region0: #{tpu_custom_call.1}
  #allocation0 [shape = 'u32[]', space=smem, size = 0x4, offset = 0x4, fixed_abs, tag = 'smem constant byte address 0x4 - core index']
  #allocation1 [shape = 'u32[144,128]{1,0:T(1,128)}', space=vmem, size = 0x12000, scoped, tag = 'internal scratch']
  %s0 = inlined_call_operand.vmem [shape: bf16[312,128], index: 0, kind: input, shape index: {}]
  %s1 = inlined_call_operand.hbm [shape: bf16[128,512], index: 1, kind: input, shape index: {}]
  %s2 = inlined_call_operand.vmem [shape: f32[1,512], index: 2, kind: input, shape index: {}]
  %s3 = inlined_call_operand.hbm [shape: f32[1,512], index: 3, kind: input, shape index: {}]
  %s4 = inlined_call_operand.vmem [shape: f32[1,512], index: 4, kind: input, shape index: {}]
  %s5 = inlined_call_operand.hbm [shape: bf16[512,256], index: 5, kind: input, shape index: {}]
  %s6 = inlined_call_operand.vmem [shape: f32[1,256], index: 6, kind: input, shape index: {}]
  %s7 = inlined_call_operand.vmem [shape: f32[1,256], index: 7, kind: input, shape index: {}]
  %s8 = inlined_call_operand.vmem [shape: f32[1,256], index: 8, kind: input, shape index: {}]
  %s9 = inlined_call_operand.vmem [shape: bf16[256,64], index: 9, kind: input, shape index: {}]
  %s10 = inlined_call_operand.vmem [shape: f32[1,64], index: 10, kind: input, shape index: {}]
  %s11 = inlined_call_operand.vmem [shape: f32[1,64], index: 11, kind: input, shape index: {}]
  %s12 = inlined_call_operand.vmem [shape: f32[1,64], index: 12, kind: input, shape index: {}]
  %s13 = inlined_call_operand.vmem [shape: bf16[64,128], index: 13, kind: input, shape index: {}]
  %s14 = inlined_call_operand.vmem [shape: f32[1,128], index: 14, kind: input, shape index: {}]
  %s15 = inlined_call_operand.hbm [shape: bf16[312,128], index: 15, kind: output, shape index: {}]
  %s16 = sld [smem:[#allocation0]]
  $region105: #{tpu_custom_call.1} parent=0
    _
  %s18 = ssub.s32 1, %s16
  %s19 = scalar_select 0, %s18, %s16
  $region1: #{tpu_custom_call.1} parent=0
    #allocation2 [shape = 'u8[131072]{0}', space=vmem, size = 0x20000, scoped, tag = 'input window, operand 1, single buffered']
    #allocation3 [shape = 's32[2]{0}', space=sflag, size = 0x8, scoped, tag = 'scoped memory for tpu_custom_call.1']
    #allocation4 [shape = 's32[2]{0}', space=sflag, size = 0x8, scoped, tag = 'scoped memory for tpu_custom_call.1']
    #allocation5 [shape = 'u8[2048]{0}', space=vmem, size = 0x800, scoped, tag = 'input window, operand 3, single buffered']
    #allocation6 [shape = 's32[1]{0}', space=sflag, size = 0x4, scoped, tag = 'scoped memory for tpu_custom_call.1']
    #allocation7 [shape = 'u8[262144]{0}', space=vmem, size = 0x40000, scoped, tag = 'input window, operand 5, single buffered']
    #allocation8 [shape = 'u8[53248]{0}', space=vmem, size = 0xd000, scoped, tag = 'output window, operand 0']
    %20 = vsyncpa [#allocation3], 0
    %21 = vsyncpa [#allocation6], 0
    %22 = vsyncpa [#allocation4], 0
    %s23 = scalar_lea.sflag [#allocation4], 1
    %24 = vsyncpa %s23, 0
    loop: start=0, step=1, limit=5
    $region2: #{tpu_custom_call.1} parent=1 // loop_pre_header
      _
    $region3: #{tpu_custom_call.1} parent=1 // loop_header
      %s26 = sphi 0, %s30
      %p27 = scmp.ge.s32.totalorder %s26, 5
      %s36 = sphi 0, %s38
      %s39 = sphi 0, %s36
      %s40 = sphi 0, %s39
      %s56 = sphi 0, %s40
      %s60 = sphi 0, %s60
      %s62 = sphi 0, %s60
      %s63 = sphi 0, %s62
      %s77 = sphi 0, %s63
      %s81 = sphi 0, %s81
      %s83 = sphi 0, %s81
      %s84 = sphi 0, %s83
      %s98 = sphi 0, %s84
      %s102 = sphi 0, %s102
      %s104 = sphi 0, %s102
      %s105 = sphi 0, %s104
      %s119 = sphi 0, %s105
      %s123 = sphi 0, %s123
      %s125 = sphi 0, %s123
      %s126 = sphi 0, %s125
      %s140 = sphi 0, %s126
      %s144 = sphi 0, %s144
      %s146 = sphi 0, %s144
      %s147 = sphi 0, %s146
      %s161 = sphi 0, %s147
      %s165 = sphi 0, %s165
      %s167 = sphi 0, %s165
      %s168 = sphi 0, %s167
      %s182 = sphi 0, %s168
      %s186 = sphi 0, %s186
      %s188 = sphi 0, %s186
      %s189 = sphi 0, %s188
      %s203 = sphi 0, %s189
      %s207 = sphi 0, %s207
      %s209 = sphi 0, %s207
      %s210 = sphi 0, %s209
      %s224 = sphi 0, %s210
      %s228 = sphi 0, %s228
      %s230 = sphi 0, %s228
      %s231 = sphi 0, %s230
      %s245 = sphi 0, %s231
      %s249 = sphi 0, %s249
      %s251 = sphi 0, %s249
      %s252 = sphi 0, %s251
      %s266 = sphi 0, %s252
      %s270 = sphi 0, %s270
      %s272 = sphi 0, %s270
      %s273 = sphi 0, %s272
      %s287 = sphi 0, %s273
      %s291 = sphi 0, %s291
      %s293 = sphi 0, %s291
      %s294 = sphi 0, %s293
      %s308 = sphi 0, %s294
      %s312 = sphi 0, %s312
      %s314 = sphi 0, %s312
      %s315 = sphi 0, %s314
      %s329 = sphi 0, %s315
      %s333 = sphi 0, %s333
      %s335 = sphi 0, %s333
      %s336 = sphi 0, %s335
      %s350 = sphi 0, %s336
      %s356 = sphi 0, %s358
      %s359 = sphi 0, %s356
      %s360 = sphi 0, %s359
      %s376 = sphi 0, %s360
    $region4: #{tpu_custom_call.1} parent=1 // loop_header_branch
      %29 = sbr.rel (%p27) target = $region8
    $region5: #{tpu_custom_call.1} parent=1 // loop_body
      %s31 = ssub.s32 %s26, 1
      %s32 = ssub.s32 %s26, 2
      %s33 = sadd.s32 %s26, 1
      %s34 = ssub.s32 %s26, %s33
      %p35 = scmp.eq.s32.totalorder %s34, 0
      %s37 = sadd.s32 %s36, 1
      %s38 = scalar_select %p35, %s36, %s37
      %p41 = pneg %p35
      %p42 = scmp.eq.s32.totalorder %s26, 2
      %p43 = por %p41, %p42
      %p44 = scmp.ne.s32.totalorder %s36, %s39
      %p45 = scmp.eq.s32.totalorder %s26, 0
      %p46 = por %p44, %p45
      %p47 = scmp.ne.s32.totalorder %s36, %s39
      %p48 = scmp.eq.s32.totalorder %s31, 2
      %p49 = por %p47, %p48
      %p50 = scmp.ne.s32.totalorder %s39, %s40
      %p51 = scmp.eq.s32.totalorder %s31, 0
      %p52 = por %p50, %p51
      %p53 = scmp.ne.s32.totalorder %s39, %s40
      %p54 = scmp.eq.s32.totalorder %s32, 2
      %p55 = por %p53, %p54
      %p57 = scmp.ne.s32.totalorder %s40, %s56
      %p58 = scmp.eq.s32.totalorder %s32, 0
      %p59 = por %p57, %p58
      %s61 = sadd.s32 %s60, 1
      %p64 = scmp.eq.s32.totalorder %s26, 2
      %p65 = scmp.ne.s32.totalorder %s60, %s62
      %p66 = scmp.eq.s32.totalorder %s26, 0
      %p67 = por %p65, %p66
      %p68 = scmp.ne.s32.totalorder %s60, %s62
      %p69 = scmp.eq.s32.totalorder %s31, 2
      %p70 = por %p68, %p69
      %p71 = scmp.ne.s32.totalorder %s62, %s63
      %p72 = scmp.eq.s32.totalorder %s31, 0
      %p73 = por %p71, %p72
      %p74 = scmp.ne.s32.totalorder %s62, %s63
      %p75 = scmp.eq.s32.totalorder %s32, 2
      %p76 = por %p74, %p75
      %p78 = scmp.ne.s32.totalorder %s63, %s77
      %p79 = scmp.eq.s32.totalorder %s32, 0
      %p80 = por %p78, %p79
      %s82 = sadd.s32 %s81, 1
      %p85 = scmp.eq.s32.totalorder %s26, 2
      %p86 = scmp.ne.s32.totalorder %s81, %s83
      %p87 = scmp.eq.s32.totalorder %s26, 0
      %p88 = por %p86, %p87
      %p89 = scmp.ne.s32.totalorder %s81, %s83
      %p90 = scmp.eq.s32.totalorder %s31, 2
      %p91 = por %p89, %p90
      %p92 = scmp.ne.s32.totalorder %s83, %s84
      %p93 = scmp.eq.s32.totalorder %s31, 0
      %p94 = por %p92, %p93
      %p95 = scmp.ne.s32.totalorder %s83, %s84
      %p96 = scmp.eq.s32.totalorder %s32, 2
      %p97 = por %p95, %p96
      %p99 = scmp.ne.s32.totalorder %s84, %s98
      %p100 = scmp.eq.s32.totalorder %s32, 0
      %p101 = por %p99, %p100
      %s103 = sadd.s32 %s102, 1
      %p106 = scmp.eq.s32.totalorder %s26, 2
      %p107 = scmp.ne.s32.totalorder %s102, %s104
      %p108 = scmp.eq.s32.totalorder %s26, 0
      %p109 = por %p107, %p108
      %p110 = scmp.ne.s32.totalorder %s102, %s104
      %p111 = scmp.eq.s32.totalorder %s31, 2
      %p112 = por %p110, %p111
      %p113 = scmp.ne.s32.totalorder %s104, %s105
      %p114 = scmp.eq.s32.totalorder %s31, 0
      %p115 = por %p113, %p114
      %p116 = scmp.ne.s32.totalorder %s104, %s105
      %p117 = scmp.eq.s32.totalorder %s32, 2
      %p118 = por %p116, %p117
      %p120 = scmp.ne.s32.totalorder %s105, %s119
      %p121 = scmp.eq.s32.totalorder %s32, 0
      %p122 = por %p120, %p121
      %s124 = sadd.s32 %s123, 1
      %p127 = scmp.eq.s32.totalorder %s26, 2
      %p128 = scmp.ne.s32.totalorder %s123, %s125
      %p129 = scmp.eq.s32.totalorder %s26, 0
      %p130 = por %p128, %p129
      %p131 = scmp.ne.s32.totalorder %s123, %s125
      %p132 = scmp.eq.s32.totalorder %s31, 2
      %p133 = por %p131, %p132
      %p134 = scmp.ne.s32.totalorder %s125, %s126
      %p135 = scmp.eq.s32.totalorder %s31, 0
      %p136 = por %p134, %p135
      %p137 = scmp.ne.s32.totalorder %s125, %s126
      %p138 = scmp.eq.s32.totalorder %s32, 2
      %p139 = por %p137, %p138
      %p141 = scmp.ne.s32.totalorder %s126, %s140
      %p142 = scmp.eq.s32.totalorder %s32, 0
      %p143 = por %p141, %p142
      %s145 = sadd.s32 %s144, 1
      %p148 = scmp.eq.s32.totalorder %s26, 2
      %p149 = scmp.ne.s32.totalorder %s144, %s146
      %p150 = scmp.eq.s32.totalorder %s26, 0
      %p151 = por %p149, %p150
      %p152 = scmp.ne.s32.totalorder %s144, %s146
      %p153 = scmp.eq.s32.totalorder %s31, 2
      %p154 = por %p152, %p153
      %p155 = scmp.ne.s32.totalorder %s146, %s147
      %p156 = scmp.eq.s32.totalorder %s31, 0
      %p157 = por %p155, %p156
      %p158 = scmp.ne.s32.totalorder %s146, %s147
      %p159 = scmp.eq.s32.totalorder %s32, 2
      %p160 = por %p158, %p159
      %p162 = scmp.ne.s32.totalorder %s147, %s161
      %p163 = scmp.eq.s32.totalorder %s32, 0
      %p164 = por %p162, %p163
      %s166 = sadd.s32 %s165, 1
      %p169 = scmp.eq.s32.totalorder %s26, 2
      %p170 = scmp.ne.s32.totalorder %s165, %s167
      %p171 = scmp.eq.s32.totalorder %s26, 0
      %p172 = por %p170, %p171
      %p173 = scmp.ne.s32.totalorder %s165, %s167
      %p174 = scmp.eq.s32.totalorder %s31, 2
      %p175 = por %p173, %p174
      %p176 = scmp.ne.s32.totalorder %s167, %s168
      %p177 = scmp.eq.s32.totalorder %s31, 0
      %p178 = por %p176, %p177
      %p179 = scmp.ne.s32.totalorder %s167, %s168
      %p180 = scmp.eq.s32.totalorder %s32, 2
      %p181 = por %p179, %p180
      %p183 = scmp.ne.s32.totalorder %s168, %s182
      %p184 = scmp.eq.s32.totalorder %s32, 0
      %p185 = por %p183, %p184
      %s187 = sadd.s32 %s186, 1
      %p190 = scmp.eq.s32.totalorder %s26, 2
      %p191 = scmp.ne.s32.totalorder %s186, %s188
      %p192 = scmp.eq.s32.totalorder %s26, 0
      %p193 = por %p191, %p192
      %p194 = scmp.ne.s32.totalorder %s186, %s188
      %p195 = scmp.eq.s32.totalorder %s31, 2
      %p196 = por %p194, %p195
      %p197 = scmp.ne.s32.totalorder %s188, %s189
      %p198 = scmp.eq.s32.totalorder %s31, 0
      %p199 = por %p197, %p198
      %p200 = scmp.ne.s32.totalorder %s188, %s189
      %p201 = scmp.eq.s32.totalorder %s32, 2
      %p202 = por %p200, %p201
      %p204 = scmp.ne.s32.totalorder %s189, %s203
      %p205 = scmp.eq.s32.totalorder %s32, 0
      %p206 = por %p204, %p205
      %s208 = sadd.s32 %s207, 1
      %p211 = scmp.eq.s32.totalorder %s26, 2
      %p212 = scmp.ne.s32.totalorder %s207, %s209
      %p213 = scmp.eq.s32.totalorder %s26, 0
      %p214 = por %p212, %p213
      %p215 = scmp.ne.s32.totalorder %s207, %s209
      %p216 = scmp.eq.s32.totalorder %s31, 2
      %p217 = por %p215, %p216
      %p218 = scmp.ne.s32.totalorder %s209, %s210
      %p219 = scmp.eq.s32.totalorder %s31, 0
      %p220 = por %p218, %p219
      %p221 = scmp.ne.s32.totalorder %s209, %s210
      %p222 = scmp.eq.s32.totalorder %s32, 2
      %p223 = por %p221, %p222
      %p225 = scmp.ne.s32.totalorder %s210, %s224
      %p226 = scmp.eq.s32.totalorder %s32, 0
      %p227 = por %p225, %p226
      %s229 = sadd.s32 %s228, 1
      %p232 = scmp.eq.s32.totalorder %s26, 2
      %p233 = scmp.ne.s32.totalorder %s228, %s230
      %p234 = scmp.eq.s32.totalorder %s26, 0
      %p235 = por %p233, %p234
      %p236 = scmp.ne.s32.totalorder %s228, %s230
      %p237 = scmp.eq.s32.totalorder %s31, 2
      %p238 = por %p236, %p237
      %p239 = scmp.ne.s32.totalorder %s230, %s231
      %p240 = scmp.eq.s32.totalorder %s31, 0
      %p241 = por %p239, %p240
      %p242 = scmp.ne.s32.totalorder %s230, %s231
      %p243 = scmp.eq.s32.totalorder %s32, 2
      %p244 = por %p242, %p243
      %p246 = scmp.ne.s32.totalorder %s231, %s245
      %p247 = scmp.eq.s32.totalorder %s32, 0
      %p248 = por %p246, %p247
      %s250 = sadd.s32 %s249, 1
      %p253 = scmp.eq.s32.totalorder %s26, 2
      %p254 = scmp.ne.s32.totalorder %s249, %s251
      %p255 = scmp.eq.s32.totalorder %s26, 0
      %p256 = por %p254, %p255
      %p257 = scmp.ne.s32.totalorder %s249, %s251
      %p258 = scmp.eq.s32.totalorder %s31, 2
      %p259 = por %p257, %p258
      %p260 = scmp.ne.s32.totalorder %s251, %s252
      %p261 = scmp.eq.s32.totalorder %s31, 0
      %p262 = por %p260, %p261
      %p263 = scmp.ne.s32.totalorder %s251, %s252
      %p264 = scmp.eq.s32.totalorder %s32, 2
      %p265 = por %p263, %p264
      %p267 = scmp.ne.s32.totalorder %s252, %s266
      %p268 = scmp.eq.s32.totalorder %s32, 0
      %p269 = por %p267, %p268
      %s271 = sadd.s32 %s270, 1
      %p274 = scmp.eq.s32.totalorder %s26, 2
      %p275 = scmp.ne.s32.totalorder %s270, %s272
      %p276 = scmp.eq.s32.totalorder %s26, 0
      %p277 = por %p275, %p276
      %p278 = scmp.ne.s32.totalorder %s270, %s272
      %p279 = scmp.eq.s32.totalorder %s31, 2
      %p280 = por %p278, %p279
      %p281 = scmp.ne.s32.totalorder %s272, %s273
      %p282 = scmp.eq.s32.totalorder %s31, 0
      %p283 = por %p281, %p282
      %p284 = scmp.ne.s32.totalorder %s272, %s273
      %p285 = scmp.eq.s32.totalorder %s32, 2
      %p286 = por %p284, %p285
      %p288 = scmp.ne.s32.totalorder %s273, %s287
      %p289 = scmp.eq.s32.totalorder %s32, 0
      %p290 = por %p288, %p289
      %s292 = sadd.s32 %s291, 1
      %p295 = scmp.eq.s32.totalorder %s26, 2
      %p296 = scmp.ne.s32.totalorder %s291, %s293
      %p297 = scmp.eq.s32.totalorder %s26, 0
      %p298 = por %p296, %p297
      %p299 = scmp.ne.s32.totalorder %s291, %s293
      %p300 = scmp.eq.s32.totalorder %s31, 2
      %p301 = por %p299, %p300
      %p302 = scmp.ne.s32.totalorder %s293, %s294
      %p303 = scmp.eq.s32.totalorder %s31, 0
      %p304 = por %p302, %p303
      %p305 = scmp.ne.s32.totalorder %s293, %s294
      %p306 = scmp.eq.s32.totalorder %s32, 2
      %p307 = por %p305, %p306
      %p309 = scmp.ne.s32.totalorder %s294, %s308
      %p310 = scmp.eq.s32.totalorder %s32, 0
      %p311 = por %p309, %p310
      %s313 = sadd.s32 %s312, 1
      %p316 = scmp.eq.s32.totalorder %s26, 2
      %p317 = scmp.ne.s32.totalorder %s312, %s314
      %p318 = scmp.eq.s32.totalorder %s26, 0
      %p319 = por %p317, %p318
      %p320 = scmp.ne.s32.totalorder %s312, %s314
      %p321 = scmp.eq.s32.totalorder %s31, 2
      %p322 = por %p320, %p321
      %p323 = scmp.ne.s32.totalorder %s314, %s315
      %p324 = scmp.eq.s32.totalorder %s31, 0
      %p325 = por %p323, %p324
      %p326 = scmp.ne.s32.totalorder %s314, %s315
      %p327 = scmp.eq.s32.totalorder %s32, 2
      %p328 = por %p326, %p327
      %p330 = scmp.ne.s32.totalorder %s315, %s329
      %p331 = scmp.eq.s32.totalorder %s32, 0
      %p332 = por %p330, %p331
      %s334 = sadd.s32 %s333, 1
      %p337 = scmp.eq.s32.totalorder %s26, 2
      %p338 = scmp.ne.s32.totalorder %s333, %s335
      %p339 = scmp.eq.s32.totalorder %s26, 0
      %p340 = por %p338, %p339
      %p341 = scmp.ne.s32.totalorder %s333, %s335
      %p342 = scmp.eq.s32.totalorder %s31, 2
      %p343 = por %p341, %p342
      %p344 = scmp.ne.s32.totalorder %s335, %s336
      %p345 = scmp.eq.s32.totalorder %s31, 0
      %p346 = por %p344, %p345
      %p347 = scmp.ne.s32.totalorder %s335, %s336
      %p348 = scmp.eq.s32.totalorder %s32, 2
      %p349 = por %p347, %p348
      %p351 = scmp.ne.s32.totalorder %s336, %s350
      %p352 = scmp.eq.s32.totalorder %s32, 0
      %p353 = por %p351, %p352
      %s354 = ssub.s32 %s26, %s33
      %p355 = scmp.eq.s32.totalorder %s354, 0
      %s357 = sadd.s32 %s356, 1
      %s358 = scalar_select %p355, %s356, %s357
      %p361 = pneg %p355
      %p362 = scmp.eq.s32.totalorder %s26, 2
      %p363 = por %p361, %p362
      %p364 = scmp.ne.s32.totalorder %s356, %s359
      %p365 = scmp.eq.s32.totalorder %s26, 0
      %p366 = por %p364, %p365
      %p367 = scmp.ne.s32.totalorder %s356, %s359
      %p368 = scmp.eq.s32.totalorder %s31, 2
      %p369 = por %p367, %p368
      %p370 = scmp.ne.s32.totalorder %s359, %s360
      %p371 = scmp.eq.s32.totalorder %s31, 0
      %p372 = por %p370, %p371
      %p373 = scmp.ne.s32.totalorder %s359, %s360
      %p374 = scmp.eq.s32.totalorder %s32, 2
      %p375 = por %p373, %p374
      %p377 = scmp.ne.s32.totalorder %s360, %s376
      %p378 = scmp.eq.s32.totalorder %s32, 0
      %p379 = por %p377, %p378
      %p380 = scmp.le.s32.totalorder 1, %s26
      %p381 = scmp.lt.s32.totalorder %s26, 4
      %p382 = pnand %p380, %p381
      %p383 = pneg %p382
      // Predicated region
      $region9: #{tpu_custom_call.1} parent=5 // pred_check
        _
      $region10: #{tpu_custom_call.1} parent=5 // pred_check_branch
        %385 = sbr.rel (%p382) target = $region12
      $region11: #{tpu_custom_call.1} parent=5 // pred_region
        %s386 = ssub.s32 %s26, 1
        // Predicated region
        $region13: #{tpu_custom_call.1} parent=11 // pred_check
          %p387 = pneg %p73
        $region14: #{tpu_custom_call.1} parent=11 // pred_check_branch
          %389 = sbr.rel (%p387) target = $region16
        $region15: #{tpu_custom_call.1} parent=11 // pred_region
          %s391 = ssub.s32 4096, 4096
          %392 = vsyncadd [#allocation3], %s391
          %s393 = sshll.u32 [#allocation2], 4
          %s394 = int_to_ptr.vmem [resolvable:$true] %s393
          %399 = dma.hbm_to_vmem [thread:$0]  %s1, 4096, %s394, [#allocation3], 256, 256, 16
        $region16: #{tpu_custom_call.1} parent=11 // pred_fallthru
          _
        // Predicated region
        $region17: #{tpu_custom_call.1} parent=11 // pred_check
          %p400 = pneg %p94
        $region18: #{tpu_custom_call.1} parent=11 // pred_check_branch
          %402 = sbr.rel (%p400) target = $region20
        $region19: #{tpu_custom_call.1} parent=11 // pred_region
          _
        $region20: #{tpu_custom_call.1} parent=11 // pred_fallthru
          _
        // Predicated region
        $region21: #{tpu_custom_call.1} parent=11 // pred_check
          %p403 = pneg %p115
        $region22: #{tpu_custom_call.1} parent=11 // pred_check_branch
          %405 = sbr.rel (%p403) target = $region24
        $region23: #{tpu_custom_call.1} parent=11 // pred_region
          %s407 = ssub.s32 64, 64
          %408 = vsyncadd [#allocation6], %s407
          %s410 = sshll.u32 [#allocation5], 4
          %s411 = int_to_ptr.vmem [resolvable:$true] %s410
          %413 = dma.hbm_to_vmem [thread:$0]  %s3, 64, %s411, [#allocation6]
        $region24: #{tpu_custom_call.1} parent=11 // pred_fallthru
          _
        // Predicated region
        $region25: #{tpu_custom_call.1} parent=11 // pred_check
          %p414 = pneg %p136
        $region26: #{tpu_custom_call.1} parent=11 // pred_check_branch
          %416 = sbr.rel (%p414) target = $region28
        $region27: #{tpu_custom_call.1} parent=11 // pred_region
          _
        $region28: #{tpu_custom_call.1} parent=11 // pred_fallthru
          _
        // Predicated region
        $region29: #{tpu_custom_call.1} parent=11 // pred_check
          %p417 = pneg %p157
        $region30: #{tpu_custom_call.1} parent=11 // pred_check_branch
          %419 = sbr.rel (%p417) target = $region32
        $region31: #{tpu_custom_call.1} parent=11 // pred_region
          %s421 = ssub.s32 8192, 8192
          %422 = vsyncadd [#allocation6], %s421
          %s423 = sshll.u32 [#allocation7], 4
          %s424 = int_to_ptr.vmem [resolvable:$true] %s423
          %429 = dma.hbm_to_vmem [thread:$0]  %s5, 8192, %s424, [#allocation6], 128, 128, 8
        $region32: #{tpu_custom_call.1} parent=11 // pred_fallthru
          _
        // Predicated region
        $region33: #{tpu_custom_call.1} parent=11 // pred_check
          %p430 = pneg %p178
        $region34: #{tpu_custom_call.1} parent=11 // pred_check_branch
          %432 = sbr.rel (%p430) target = $region36
        $region35: #{tpu_custom_call.1} parent=11 // pred_region
          _
        $region36: #{tpu_custom_call.1} parent=11 // pred_fallthru
          _
        // Predicated region
        $region37: #{tpu_custom_call.1} parent=11 // pred_check
          %p433 = pneg %p199
        $region38: #{tpu_custom_call.1} parent=11 // pred_check_branch
          %435 = sbr.rel (%p433) target = $region40
        $region39: #{tpu_custom_call.1} parent=11 // pred_region
          _
        $region40: #{tpu_custom_call.1} parent=11 // pred_fallthru
          _
        // Predicated region
        $region41: #{tpu_custom_call.1} parent=11 // pred_check
          %p436 = pneg %p220
        $region42: #{tpu_custom_call.1} parent=11 // pred_check_branch
          %438 = sbr.rel (%p436) target = $region44
        $region43: #{tpu_custom_call.1} parent=11 // pred_region
          _
        $region44: #{tpu_custom_call.1} parent=11 // pred_fallthru
          _
        // Predicated region
        $region45: #{tpu_custom_call.1} parent=11 // pred_check
          %p439 = pneg %p241
        $region46: #{tpu_custom_call.1} parent=11 // pred_check_branch
          %441 = sbr.rel (%p439) target = $region48
        $region47: #{tpu_custom_call.1} parent=11 // pred_region
          _
        $region48: #{tpu_custom_call.1} parent=11 // pred_fallthru
          _
        // Predicated region
        $region49: #{tpu_custom_call.1} parent=11 // pred_check
          %p442 = pneg %p262
        $region50: #{tpu_custom_call.1} parent=11 // pred_check_branch
          %444 = sbr.rel (%p442) target = $region52
        $region51: #{tpu_custom_call.1} parent=11 // pred_region
          _
        $region52: #{tpu_custom_call.1} parent=11 // pred_fallthru
          _
        // Predicated region
        $region53: #{tpu_custom_call.1} parent=11 // pred_check
          %p445 = pneg %p283
        $region54: #{tpu_custom_call.1} parent=11 // pred_check_branch
          %447 = sbr.rel (%p445) target = $region56
        $region55: #{tpu_custom_call.1} parent=11 // pred_region
          _
        $region56: #{tpu_custom_call.1} parent=11 // pred_fallthru
          _
        // Predicated region
        $region57: #{tpu_custom_call.1} parent=11 // pred_check
          %p448 = pneg %p304
        $region58: #{tpu_custom_call.1} parent=11 // pred_check_branch
          %450 = sbr.rel (%p448) target = $region60
        $region59: #{tpu_custom_call.1} parent=11 // pred_region
          _
        $region60: #{tpu_custom_call.1} parent=11 // pred_fallthru
          _
        // Predicated region
        $region61: #{tpu_custom_call.1} parent=11 // pred_check
          %p451 = pneg %p325
        $region62: #{tpu_custom_call.1} parent=11 // pred_check_branch
          %453 = sbr.rel (%p451) target = $region64
        $region63: #{tpu_custom_call.1} parent=11 // pred_region
          _
        $region64: #{tpu_custom_call.1} parent=11 // pred_fallthru
          _
        // Predicated region
        $region65: #{tpu_custom_call.1} parent=11 // pred_check
          %p454 = pneg %p346
        $region66: #{tpu_custom_call.1} parent=11 // pred_check_branch
          %456 = sbr.rel (%p454) target = $region68
        $region67: #{tpu_custom_call.1} parent=11 // pred_region
          _
        $region68: #{tpu_custom_call.1} parent=11 // pred_fallthru
          _
      $region12: #{tpu_custom_call.1} parent=5 // pred_fallthru
        _
      %p457 = scmp.lt.s32.totalorder %s26, 3
      // Predicated region
      $region69: #{tpu_custom_call.1} parent=5 // pred_check
        %p458 = pneg %p457
      $region70: #{tpu_custom_call.1} parent=5 // pred_check_branch
        %460 = sbr.rel (%p458) target = $region72
      $region71: #{tpu_custom_call.1} parent=5 // pred_region
        // Predicated region
        $region73: #{tpu_custom_call.1} parent=71 // pred_check
          %p461 = pneg %p46
        $region74: #{tpu_custom_call.1} parent=71 // pred_check_branch
          %463 = sbr.rel (%p461) target = $region76
        $region75: #{tpu_custom_call.1} parent=71 // pred_region
          %s464 = smul.u32 13, %s26
          %p465 = scmp.lt.s32.totalorder %s464, 38
          %s466 = scalar_select %p465, %s464, 38
          %s467 = smul.addr %s466, 4
          %s468 = scalar_lea.vmem %s0, %s467
          %s469 = smul.u32 13, %s26
        $region76: #{tpu_custom_call.1} parent=71 // pred_fallthru
          _
      $region72: #{tpu_custom_call.1} parent=5 // pred_fallthru
        _
      %p470 = scmp.le.s32.totalorder 1, %s26
      %p471 = scmp.lt.s32.totalorder %s26, 4
      %p472 = pnand %p470, %p471
      %p473 = pneg %p472
      // Predicated region
      $region77: #{tpu_custom_call.1} parent=5 // pred_check
        _
      $region78: #{tpu_custom_call.1} parent=5 // pred_check_branch
        %475 = sbr.rel (%p472) target = $region80
      $region79: #{tpu_custom_call.1} parent=5 // pred_region
        %s476 = ssub.s32 %s26, 1
        // Predicated region
        $region81: #{tpu_custom_call.1} parent=79 // pred_check
          %p477 = pneg %p73
        $region82: #{tpu_custom_call.1} parent=79 // pred_check_branch
          %479 = sbr.rel (%p477) target = $region84
        $region83: #{tpu_custom_call.1} parent=79 // pred_region
          %480 = dma.done [#allocation3], 4096
        $region84: #{tpu_custom_call.1} parent=79 // pred_fallthru
          _
        // Predicated region
        $region85: #{tpu_custom_call.1} parent=79 // pred_check
          %p481 = pneg %p115
        $region86: #{tpu_custom_call.1} parent=79 // pred_check_branch
          %483 = sbr.rel (%p481) target = $region88
        $region87: #{tpu_custom_call.1} parent=79 // pred_region
          %484 = dma.done [#allocation6], 64
        $region88: #{tpu_custom_call.1} parent=79 // pred_fallthru
          _
        // Predicated region
        $region89: #{tpu_custom_call.1} parent=79 // pred_check
          %p485 = pneg %p157
        $region90: #{tpu_custom_call.1} parent=79 // pred_check_branch
          %487 = sbr.rel (%p485) target = $region92
        $region91: #{tpu_custom_call.1} parent=79 // pred_region
          %488 = dma.done [#allocation6], 8192
        $region92: #{tpu_custom_call.1} parent=79 // pred_fallthru
          _
        %s489 = smul.u32 13, %s31
        %p490 = scmp.lt.s32.totalorder %s489, 38
        %s491 = scalar_select %p490, %s489, 38
        %s492 = smul.addr %s491, 4
        %s493 = scalar_lea.vmem %s0, %s492
        %p494 = pneg %p52
        %p495 = pneg %p49
        %p496 = pneg %p73
        %p497 = pneg %p70
        %p498 = pneg %p94
        %p499 = pneg %p91
        %p500 = pneg %p115
        %p501 = pneg %p112
        %p502 = pneg %p136
        %p503 = pneg %p133
        %p504 = pneg %p157
        %p505 = pneg %p154
        %p506 = pneg %p178
        %p507 = pneg %p175
        %p508 = pneg %p199
        %p509 = pneg %p196
        %p510 = pneg %p220
        %p511 = pneg %p217
        %p512 = pneg %p241
        %p513 = pneg %p238
        %p514 = pneg %p262
        %p515 = pneg %p259
        %p516 = pneg %p283
        %p517 = pneg %p280
        %p518 = pneg %p304
        %p519 = pneg %p301
        %p520 = pneg %p325
        %p521 = pneg %p322
        %p522 = pneg %p346
        %p523 = pneg %p343
        %p524 = pneg %p372
        %p525 = pneg %p369
        %s526 = sand.u32 %s359, 1
        %s527 = scalar_lea.sflag [#allocation4], %s526
        %s528 = sand.u32 %s359, 1
        %s529 = smul.addr %s528, 52
        %s530 = scalar_lea.vmem [#allocation8], %s529
        %s531 = smul.u32 13, %s31
        %p532 = scmp.lt.s32.totalorder %s531, 38
        %s533 = scalar_select %p532, %s531, 38
        %s534 = smul.addr %s533, 4
        %s535 = scalar_lea.vmem %s0, %s534
        %s536 = smul.u32 13, %s31
        %s537 = smul.u32 13, %s31
        %v539 = vld [vmem:[%s535] sm:$0xf]
        %v540 = vld [vmem:[%s535 + $0x4] sm:$0xf]
        %v541 = vld [vmem:[%s535 + $0x8] sm:$0xf]
        %v542 = vld [vmem:[%s535 + $0xc] sm:$0xf]
        %v543 = vld [vmem:[%s535 + $0x10] sm:$0xf]
        %v544 = vld [vmem:[%s535 + $0x14] sm:$0xf]
        %v545 = vld [vmem:[%s535 + $0x18] sm:$0xf]
        %v546 = vld [vmem:[%s535 + $0x1c] sm:$0xf]
        %v547 = vld [vmem:[%s535 + $0x20] sm:$0xf]
        %v548 = vld [vmem:[%s535 + $0x24] sm:$0xf]
        %v549 = vld [vmem:[%s535 + $0x28] sm:$0xf]
        %v550 = vld [vmem:[%s535 + $0x2c] sm:$0xf]
        %v551 = vld [vmem:[%s535 + $0x30] sm:$0xf]
        %v552 = vld [vmem:[#allocation2] sm:$0xff]
        %v553 = vld [vmem:[#allocation2 + $0x8] sm:$0xff]
        %v554 = vld [vmem:[#allocation2 + $0x10] sm:$0xff]
        %v555 = vld [vmem:[#allocation2 + $0x18] sm:$0xff]
        %v556 = vld [vmem:[#allocation2 + $0x20] sm:$0xff]
        %v557 = vld [vmem:[#allocation2 + $0x28] sm:$0xff]
        %v558 = vld [vmem:[#allocation2 + $0x30] sm:$0xff]
        %v559 = vld [vmem:[#allocation2 + $0x38] sm:$0xff]
        %v560 = vld [vmem:[#allocation2 + $0x40] sm:$0xff]
        %v561 = vld [vmem:[#allocation2 + $0x48] sm:$0xff]
        %v562 = vld [vmem:[#allocation2 + $0x50] sm:$0xff]
        %v563 = vld [vmem:[#allocation2 + $0x58] sm:$0xff]
        %v564 = vld [vmem:[#allocation2 + $0x60] sm:$0xff]
        %v565 = vld [vmem:[#allocation2 + $0x68] sm:$0xff]
        %v566 = vld [vmem:[#allocation2 + $0x70] sm:$0xff]
        %v567 = vld [vmem:[#allocation2 + $0x78] sm:$0xff]
        %v568 = vld [vmem:[#allocation2 + $0x80] sm:$0xff]
        %v569 = vld [vmem:[#allocation2 + $0x88] sm:$0xff]
        %v570 = vld [vmem:[#allocation2 + $0x90] sm:$0xff]
        %v571 = vld [vmem:[#allocation2 + $0x98] sm:$0xff]
        %v572 = vld [vmem:[#allocation2 + $0xa0] sm:$0xff]
        %v573 = vld [vmem:[#allocation2 + $0xa8] sm:$0xff]
        %v574 = vld [vmem:[#allocation2 + $0xb0] sm:$0xff]
        %v575 = vld [vmem:[#allocation2 + $0xb8] sm:$0xff]
        %v576 = vld [vmem:[#allocation2 + $0xc0] sm:$0xff]
        %v577 = vld [vmem:[#allocation2 + $0xc8] sm:$0xff]
        %v578 = vld [vmem:[#allocation2 + $0xd0] sm:$0xff]
        %v579 = vld [vmem:[#allocation2 + $0xd8] sm:$0xff]
        %v580 = vld [vmem:[#allocation2 + $0xe0] sm:$0xff]
        %v581 = vld [vmem:[#allocation2 + $0xe8] sm:$0xff]
        %v582 = vld [vmem:[#allocation2 + $0xf0] sm:$0xff]
        %v583 = vld [vmem:[#allocation2 + $0xf8] sm:$0xff]
        %v584 = vld [vmem:[%s2] sm:$0xf]
        %v585 = vld [vmem:[#allocation5] sm:$0xf]
        %v586 = vld [vmem:[%s4] sm:$0xf]
        %v588 = vlaneseq
        %v589 = vshrl.u32 %v588, 7
        %v590 = vsub.s32 0, %v589
        %v591 = vrot.slane %v584, %v590
        %v592 = vlaneseq
        %v593 = vshrl.u32 %v592, 7
        %v594 = vsub.s32 1, %v593
        %v595 = vrot.slane %v584, %v594
        %v596 = vlaneseq
        %v597 = vshrl.u32 %v596, 7
        %v598 = vsub.s32 2, %v597
        %v599 = vrot.slane %v584, %v598
        %v600 = vlaneseq
        %v601 = vshrl.u32 %v600, 7
        %v602 = vsub.s32 3, %v601
        %v603 = vrot.slane %v584, %v602
        %v621 = vunpack.c.l.b16 %v539
        %v622 = vunpack.c.l.b16 %v540
        %v623 = vunpack.c.l.b16 %v541
        %v624 = vunpack.c.l.b16 %v542
        %v625 = vunpack.c.l.b16 %v543
        %v626 = vunpack.c.l.b16 %v544
        %v627 = vunpack.c.l.b16 %v545
        %v628 = vunpack.c.l.b16 %v546
        %v629 = vunpack.c.l.b16 %v547
        %v630 = vunpack.c.l.b16 %v548
        %v631 = vunpack.c.l.b16 %v549
        %v632 = vunpack.c.l.b16 %v550
        %v633 = vunpack.c.l.b16 %v551
        %v634 = vpack.c.b16 %v622, %v621
        %v635 = vpack.c.b16 %v624, %v623
        %v636 = vpack.c.b16 %v626, %v625
        %v637 = vpack.c.b16 %v628, %v627
        %v638 = vpack.c.b16 %v630, %v629
        %v639 = vpack.c.b16 %v632, %v631
        %v640 = vpack.c.b16 %v633, %v633
        %v680 = vunpack.c.l.b16 %v552
        %v681 = vunpack.c.h.b16 %v552
        %v682 = vunpack.c.l.b16 %v553
        %v683 = vunpack.c.h.b16 %v553
        %v684 = vunpack.c.l.b16 %v554
        %v685 = vunpack.c.h.b16 %v554
        %v686 = vunpack.c.l.b16 %v555
        %v687 = vunpack.c.h.b16 %v555
        %v688 = vunpack.c.l.b16 %v556
        %v689 = vunpack.c.h.b16 %v556
        %v690 = vunpack.c.l.b16 %v557
        %v691 = vunpack.c.h.b16 %v557
        %v692 = vunpack.c.l.b16 %v558
        %v693 = vunpack.c.h.b16 %v558
        %v694 = vunpack.c.l.b16 %v559
        %v695 = vunpack.c.h.b16 %v559
        %v696 = vunpack.c.l.b16 %v560
        %v697 = vunpack.c.h.b16 %v560
        %v698 = vunpack.c.l.b16 %v561
        %v699 = vunpack.c.h.b16 %v561
        %v700 = vunpack.c.l.b16 %v562
        %v701 = vunpack.c.h.b16 %v562
        %v702 = vunpack.c.l.b16 %v563
        %v703 = vunpack.c.h.b16 %v563
        %v704 = vunpack.c.l.b16 %v564
        %v705 = vunpack.c.h.b16 %v564
        %v706 = vunpack.c.l.b16 %v565
        %v707 = vunpack.c.h.b16 %v565
        %v708 = vunpack.c.l.b16 %v566
        %v709 = vunpack.c.h.b16 %v566
        %v710 = vunpack.c.l.b16 %v567
        %v711 = vunpack.c.h.b16 %v567
        %v712 = vunpack.c.l.b16 %v568
        %v713 = vunpack.c.h.b16 %v568
        %v714 = vunpack.c.l.b16 %v569
        %v715 = vunpack.c.h.b16 %v569
        %v716 = vunpack.c.l.b16 %v570
        %v717 = vunpack.c.h.b16 %v570
        %v718 = vunpack.c.l.b16 %v571
        %v719 = vunpack.c.h.b16 %v571
        %v720 = vunpack.c.l.b16 %v572
        %v721 = vunpack.c.h.b16 %v572
        %v722 = vunpack.c.l.b16 %v573
        %v723 = vunpack.c.h.b16 %v573
        %v724 = vunpack.c.l.b16 %v574
        %v725 = vunpack.c.h.b16 %v574
        %v726 = vunpack.c.l.b16 %v575
        %v727 = vunpack.c.h.b16 %v575
        %v728 = vunpack.c.l.b16 %v576
        %v729 = vunpack.c.h.b16 %v576
        %v730 = vunpack.c.l.b16 %v577
        %v731 = vunpack.c.h.b16 %v577
        %v732 = vunpack.c.l.b16 %v578
        %v733 = vunpack.c.h.b16 %v578
        %v734 = vunpack.c.l.b16 %v579
        %v735 = vunpack.c.h.b16 %v579
        %v736 = vunpack.c.l.b16 %v580
        %v737 = vunpack.c.h.b16 %v580
        %v738 = vunpack.c.l.b16 %v581
        %v739 = vunpack.c.h.b16 %v581
        %v740 = vunpack.c.l.b16 %v582
        %v741 = vunpack.c.h.b16 %v582
        %v742 = vunpack.c.l.b16 %v583
        %v743 = vunpack.c.h.b16 %v583
        %v744 = vpack.c.b16 %v684, %v680
        %v745 = vpack.c.b16 %v685, %v681
        %v746 = vpack.c.b16 %v686, %v682
        %v747 = vpack.c.b16 %v687, %v683
        %v748 = vpack.c.b16 %v692, %v688
        %v749 = vpack.c.b16 %v693, %v689
        %v750 = vpack.c.b16 %v694, %v690
        %v751 = vpack.c.b16 %v695, %v691
        %v752 = vpack.c.b16 %v700, %v696
        %v753 = vpack.c.b16 %v701, %v697
        %v754 = vpack.c.b16 %v702, %v698
        %v755 = vpack.c.b16 %v703, %v699
        %v756 = vpack.c.b16 %v708, %v704
        %v757 = vpack.c.b16 %v709, %v705
        %v758 = vpack.c.b16 %v710, %v706
        %v759 = vpack.c.b16 %v711, %v707
        %v760 = vpack.c.b16 %v716, %v712
        %v761 = vpack.c.b16 %v717, %v713
        %v762 = vpack.c.b16 %v718, %v714
        %v763 = vpack.c.b16 %v719, %v715
        %v764 = vpack.c.b16 %v724, %v720
        %v765 = vpack.c.b16 %v725, %v721
        %v766 = vpack.c.b16 %v726, %v722
        %v767 = vpack.c.b16 %v727, %v723
        %v768 = vpack.c.b16 %v732, %v728
        %v769 = vpack.c.b16 %v733, %v729
        %v770 = vpack.c.b16 %v734, %v730
        %v771 = vpack.c.b16 %v735, %v731
        %v772 = vpack.c.b16 %v740, %v736
        %v773 = vpack.c.b16 %v741, %v737
        %v774 = vpack.c.b16 %v742, %v738
        %v775 = vpack.c.b16 %v743, %v739
        %808 = vmatprep.subr.bf16.mxu0 %v773
        %809 = vmatpush1.bf16.msra.mxu0 %v772
        %810 = vmatprep.subr.bf16.mxu0 %v769
        %811 = vmatpush1.bf16.msra.mxu0 %v768
        %812 = vmatprep.subr.bf16.mxu0 %v765
        %813 = vmatpush1.bf16.msra.mxu0 %v764
        %814 = vmatprep.subr.bf16.mxu0 %v761
        %815 = vmatpush1.bf16.msra.mxu0 %v760
        %816 = vmatprep.subr.bf16.mxu0 %v757
        %817 = vmatpush1.bf16.msra.mxu0 %v756
        %818 = vmatprep.subr.bf16.mxu0 %v753
        %819 = vmatpush1.bf16.msra.mxu0 %v752
        %820 = vmatprep.subr.bf16.mxu0 %v749
        %821 = vmatpush1.bf16.msra.mxu0 %v748
        %822 = vmatprep.subr.bf16.mxu0 %v745
        %823 = vmatpush1.bf16.msra.mxu0 %v744
        %824 = vmatprep.subr.bf16.mxu0 0
        %825 = vmatpush2.bf16.msra.mxu0 0
        %826 = vmatprep.subr.bf16.mxu0 0
        %827 = vmatpush2.bf16.msra.mxu0 0
        %828 = vmatprep.subr.bf16.mxu0 0
        %829 = vmatpush2.bf16.msra.mxu0 0
        %830 = vmatprep.subr.bf16.mxu0 0
        %831 = vmatpush2.bf16.msra.mxu0 0
        %832 = vmatprep.subr.bf16.mxu0 0
        %833 = vmatpush2.bf16.msra.mxu0 0
        %834 = vmatprep.subr.bf16.mxu0 0
        %835 = vmatpush2.bf16.msra.mxu0 0
        %836 = vmatprep.subr.bf16.mxu0 0
        %837 = vmatpush2.bf16.msra.mxu0 0
        %838 = vmatprep.subr.bf16.mxu0 0
        %839 = vmatpush2.bf16.msra.mxu0 0
        %840 = vmatprep.mubr.bf16.mxu0 0
        %841 = vmatmul.mubr.bf16.gmra.mxu0 %v634
        %v842 = vpop.f32.mrf.mxu0
        %v843 = vadd.f32 %v591, %v842
        %v844 = vpop.f32.mrf.mxu0
        %v845 = vadd.f32 %v595, %v844
        %v846 = vpop.f32.mrf.mxu0
        %v847 = vadd.f32 %v591, %v846
        %v848 = vpop.f32.mrf.mxu0
        %v849 = vadd.f32 %v595, %v848
        %850 = vmatprep.mubr.bf16.mxu0 0
        %851 = vmatmul.mubr.bf16.gmra.mxu0 %v635
        %v852 = vpop.f32.mrf.mxu0
        %v853 = vadd.f32 %v591, %v852
        %v854 = vpop.f32.mrf.mxu0
        %v855 = vadd.f32 %v595, %v854
        %v856 = vpop.f32.mrf.mxu0
        %v857 = vadd.f32 %v591, %v856
        %v858 = vpop.f32.mrf.mxu0
        %v859 = vadd.f32 %v595, %v858
        %860 = vmatprep.mubr.bf16.mxu0 0
        %861 = vmatmul.mubr.bf16.gmra.mxu0 %v636
        %v862 = vpop.f32.mrf.mxu0
        %v863 = vadd.f32 %v591, %v862
        %v864 = vpop.f32.mrf.mxu0
        %v865 = vadd.f32 %v595, %v864
        %v866 = vpop.f32.mrf.mxu0
        %v867 = vadd.f32 %v591, %v866
        %v868 = vpop.f32.mrf.mxu0
        %v869 = vadd.f32 %v595, %v868
        %870 = vmatprep.mubr.bf16.mxu0 0
        %871 = vmatmul.mubr.bf16.gmra.mxu0 %v637
        %v872 = vpop.f32.mrf.mxu0
        %v873 = vadd.f32 %v591, %v872
        %v874 = vpop.f32.mrf.mxu0
        %v875 = vadd.f32 %v595, %v874
        %v876 = vpop.f32.mrf.mxu0
        %v877 = vadd.f32 %v591, %v876
        %v878 = vpop.f32.mrf.mxu0
        %v879 = vadd.f32 %v595, %v878
        %880 = vmatprep.mubr.bf16.mxu0 0
        %881 = vmatmul.mubr.bf16.gmra.mxu0 %v638
        %v882 = vpop.f32.mrf.mxu0
        %v883 = vadd.f32 %v591, %v882
        %v884 = vpop.f32.mrf.mxu0
        %v885 = vadd.f32 %v595, %v884
        %v886 = vpop.f32.mrf.mxu0
        %v887 = vadd.f32 %v591, %v886
        %v888 = vpop.f32.mrf.mxu0
        %v889 = vadd.f32 %v595, %v888
        %890 = vmatprep.mubr.bf16.mxu0 0
        %891 = vmatmul.mubr.bf16.gmra.mxu0 %v639
        %v892 = vpop.f32.mrf.mxu0
        %v893 = vadd.f32 %v591, %v892
        %v894 = vpop.f32.mrf.mxu0
        %v895 = vadd.f32 %v595, %v894
        %v896 = vpop.f32.mrf.mxu0
        %v897 = vadd.f32 %v591, %v896
        %v898 = vpop.f32.mrf.mxu0
        %v899 = vadd.f32 %v595, %v898
        %900 = vmatprep.mubr.bf16.mxu0 0
        %901 = vmatmul.mubr.bf16.gmra.mxu0 %v640
        %v902 = vpop.f32.mrf.mxu0
        %v903 = vadd.f32 %v591, %v902
        %v904 = vpop.f32.mrf.mxu0
        %v905 = vadd.f32 %v595, %v904
        %v906 = vpop.f32.mrf.mxu0
        %v907 = vpop.f32.mrf.mxu0
        %908 = vdwg.mxu0
        %909 = vmatprep.subr.bf16.mxu0 %v775
        %910 = vmatpush1.bf16.msra.mxu0 %v774
        %911 = vmatprep.subr.bf16.mxu0 %v771
        %912 = vmatpush1.bf16.msra.mxu0 %v770
        %913 = vmatprep.subr.bf16.mxu0 %v767
        %914 = vmatpush1.bf16.msra.mxu0 %v766
        %915 = vmatprep.subr.bf16.mxu0 %v763
        %916 = vmatpush1.bf16.msra.mxu0 %v762
        %917 = vmatprep.subr.bf16.mxu0 %v759
        %918 = vmatpush1.bf16.msra.mxu0 %v758
        %919 = vmatprep.subr.bf16.mxu0 %v755
        %920 = vmatpush1.bf16.msra.mxu0 %v754
        %921 = vmatprep.subr.bf16.mxu0 %v751
        %922 = vmatpush1.bf16.msra.mxu0 %v750
        %923 = vmatprep.subr.bf16.mxu0 %v747
        %924 = vmatpush1.bf16.msra.mxu0 %v746
        %925 = vmatprep.subr.bf16.mxu0 0
        %926 = vmatpush2.bf16.msra.mxu0 0
        %927 = vmatprep.subr.bf16.mxu0 0
        %928 = vmatpush2.bf16.msra.mxu0 0
        %929 = vmatprep.subr.bf16.mxu0 0
        %930 = vmatpush2.bf16.msra.mxu0 0
        %931 = vmatprep.subr.bf16.mxu0 0
        %932 = vmatpush2.bf16.msra.mxu0 0
        %933 = vmatprep.subr.bf16.mxu0 0
        %934 = vmatpush2.bf16.msra.mxu0 0
        %935 = vmatprep.subr.bf16.mxu0 0
        %936 = vmatpush2.bf16.msra.mxu0 0
        %937 = vmatprep.subr.bf16.mxu0 0
        %938 = vmatpush2.bf16.msra.mxu0 0
        %939 = vmatprep.subr.bf16.mxu0 0
        %940 = vmatpush2.bf16.msra.mxu0 0
        %941 = vmatprep.mubr.bf16.mxu0 0
        %942 = vmatmul.mubr.bf16.gmra.mxu0 %v634
        %v943 = vpop.f32.mrf.mxu0
        %v944 = vadd.f32 %v599, %v943
        %v945 = vpop.f32.mrf.mxu0
        %v946 = vadd.f32 %v603, %v945
        %v947 = vpop.f32.mrf.mxu0
        %v948 = vadd.f32 %v599, %v947
        %v949 = vpop.f32.mrf.mxu0
        %v950 = vadd.f32 %v603, %v949
        %951 = vmatprep.mubr.bf16.mxu0 0
        %952 = vmatmul.mubr.bf16.gmra.mxu0 %v635
        %v953 = vpop.f32.mrf.mxu0
        %v954 = vadd.f32 %v599, %v953
        %v955 = vpop.f32.mrf.mxu0
        %v956 = vadd.f32 %v603, %v955
        %v957 = vpop.f32.mrf.mxu0
        %v958 = vadd.f32 %v599, %v957
        %v959 = vpop.f32.mrf.mxu0
        %v960 = vadd.f32 %v603, %v959
        %961 = vmatprep.mubr.bf16.mxu0 0
        %962 = vmatmul.mubr.bf16.gmra.mxu0 %v636
        %v963 = vpop.f32.mrf.mxu0
        %v964 = vadd.f32 %v599, %v963
        %v965 = vpop.f32.mrf.mxu0
        %v966 = vadd.f32 %v603, %v965
        %v967 = vpop.f32.mrf.mxu0
        %v968 = vadd.f32 %v599, %v967
        %v969 = vpop.f32.mrf.mxu0
        %v970 = vadd.f32 %v603, %v969
        %971 = vmatprep.mubr.bf16.mxu0 0
        %972 = vmatmul.mubr.bf16.gmra.mxu0 %v637
        %v973 = vpop.f32.mrf.mxu0
        %v974 = vadd.f32 %v599, %v973
        %v975 = vpop.f32.mrf.mxu0
        %v976 = vadd.f32 %v603, %v975
        %v977 = vpop.f32.mrf.mxu0
        %v978 = vadd.f32 %v599, %v977
        %v979 = vpop.f32.mrf.mxu0
        %v980 = vadd.f32 %v603, %v979
        %981 = vmatprep.mubr.bf16.mxu0 0
        %982 = vmatmul.mubr.bf16.gmra.mxu0 %v638
        %v983 = vpop.f32.mrf.mxu0
        %v984 = vadd.f32 %v599, %v983
        %v985 = vpop.f32.mrf.mxu0
        %v986 = vadd.f32 %v603, %v985
        %v987 = vpop.f32.mrf.mxu0
        %v988 = vadd.f32 %v599, %v987
        %v989 = vpop.f32.mrf.mxu0
        %v990 = vadd.f32 %v603, %v989
        %991 = vmatprep.mubr.bf16.mxu0 0
        %992 = vmatmul.mubr.bf16.gmra.mxu0 %v639
        %v993 = vpop.f32.mrf.mxu0
        %v994 = vadd.f32 %v599, %v993
        %v995 = vpop.f32.mrf.mxu0
        %v996 = vadd.f32 %v603, %v995
        %v997 = vpop.f32.mrf.mxu0
        %v998 = vadd.f32 %v599, %v997
        %v999 = vpop.f32.mrf.mxu0
        %v1000 = vadd.f32 %v603, %v999
        %1001 = vmatprep.mubr.bf16.mxu0 0
        %1002 = vmatmul.mubr.bf16.gmra.mxu0 %v640
        %v1003 = vpop.f32.mrf.mxu0
        %v1004 = vadd.f32 %v599, %v1003
        %v1005 = vpop.f32.mrf.mxu0
        %v1006 = vadd.f32 %v603, %v1005
        %v1007 = vpop.f32.mrf.mxu0
        %v1008 = vpop.f32.mrf.mxu0
        %1009 = vdwg.mxu0
        %v1010 = vadd.f32 %v843, %v845
        %v1011 = vadd.f32 %v1010, %v944
        %v1012 = vadd.f32 %v1011, %v946
        %1013 = vadd.xlane.f32.xlu0 %v1012
        %v1014 = vpop.xlane.xlu0 %1013
        %v1015 = vadd.f32 %v847, %v849
        %v1016 = vadd.f32 %v1015, %v948
        %v1017 = vadd.f32 %v1016, %v950
        %1018 = vadd.xlane.f32.xlu0 %v1017
        %v1019 = vpop.xlane.xlu0 %1018
        %v1020 = vadd.f32 %v853, %v855
        %v1021 = vadd.f32 %v1020, %v954
        %v1022 = vadd.f32 %v1021, %v956
        %1023 = vadd.xlane.f32.xlu0 %v1022
        %v1024 = vpop.xlane.xlu0 %1023
        %v1025 = vadd.f32 %v857, %v859
        %v1026 = vadd.f32 %v1025, %v958
        %v1027 = vadd.f32 %v1026, %v960
        %1028 = vadd.xlane.f32.xlu0 %v1027
        %v1029 = vpop.xlane.xlu0 %1028
        %v1030 = vadd.f32 %v863, %v865
        %v1031 = vadd.f32 %v1030, %v964
        %v1032 = vadd.f32 %v1031, %v966
        %1033 = vadd.xlane.f32.xlu0 %v1032
        %v1034 = vpop.xlane.xlu0 %1033
        %v1035 = vadd.f32 %v867, %v869
        %v1036 = vadd.f32 %v1035, %v968
        %v1037 = vadd.f32 %v1036, %v970
        %1038 = vadd.xlane.f32.xlu0 %v1037
        %v1039 = vpop.xlane.xlu0 %1038
        %v1040 = vadd.f32 %v873, %v875
        %v1041 = vadd.f32 %v1040, %v974
        %v1042 = vadd.f32 %v1041, %v976
        %1043 = vadd.xlane.f32.xlu0 %v1042
        %v1044 = vpop.xlane.xlu0 %1043
        %v1045 = vadd.f32 %v877, %v879
        %v1046 = vadd.f32 %v1045, %v978
        %v1047 = vadd.f32 %v1046, %v980
        %1048 = vadd.xlane.f32.xlu0 %v1047
        %v1049 = vpop.xlane.xlu0 %1048
        %v1050 = vadd.f32 %v883, %v885
        %v1051 = vadd.f32 %v1050, %v984
        %v1052 = vadd.f32 %v1051, %v986
        %1053 = vadd.xlane.f32.xlu0 %v1052
        %v1054 = vpop.xlane.xlu0 %1053
        %v1055 = vadd.f32 %v887, %v889
        %v1056 = vadd.f32 %v1055, %v988
        %v1057 = vadd.f32 %v1056, %v990
        %1058 = vadd.xlane.f32.xlu0 %v1057
        %v1059 = vpop.xlane.xlu0 %1058
        %v1060 = vadd.f32 %v893, %v895
        %v1061 = vadd.f32 %v1060, %v994
        %v1062 = vadd.f32 %v1061, %v996
        %1063 = vadd.xlane.f32.xlu0 %v1062
        %v1064 = vpop.xlane.xlu0 %1063
        %v1065 = vadd.f32 %v897, %v899
        %v1066 = vadd.f32 %v1065, %v998
        %v1067 = vadd.f32 %v1066, %v1000
        %1068 = vadd.xlane.f32.xlu0 %v1067
        %v1069 = vpop.xlane.xlu0 %1068
        %v1070 = vadd.f32 %v903, %v905
        %v1071 = vadd.f32 %v1070, %v1004
        %v1072 = vadd.f32 %v1071, %v1006
        %1073 = vadd.xlane.f32.xlu0 %v1072
        %v1074 = vpop.xlane.xlu0 %1073
        %v1075 = vrcp.pop 512.0
        %v1076 = vmul.f32 %v1014, %v1075
        %v1077 = vmul.f32 %v1019, %v1075
        %v1078 = vmul.f32 %v1024, %v1075
        %v1079 = vmul.f32 %v1029, %v1075
        %v1080 = vmul.f32 %v1034, %v1075
        %v1081 = vmul.f32 %v1039, %v1075
        %v1082 = vmul.f32 %v1044, %v1075
        %v1083 = vmul.f32 %v1049, %v1075
        %v1084 = vmul.f32 %v1054, %v1075
        %v1085 = vmul.f32 %v1059, %v1075
        %v1086 = vmul.f32 %v1064, %v1075
        %v1087 = vmul.f32 %v1069, %v1075
        %v1088 = vmul.f32 %v1074, %v1075
        %v1089 = vsub.f32 %v843, %v1076
        %v1090 = vsub.f32 %v845, %v1076
        %v1091 = vsub.f32 %v944, %v1076
        %v1092 = vsub.f32 %v946, %v1076
        %v1093 = vsub.f32 %v847, %v1077
        %v1094 = vsub.f32 %v849, %v1077
        %v1095 = vsub.f32 %v948, %v1077
        %v1096 = vsub.f32 %v950, %v1077
        %v1097 = vsub.f32 %v853, %v1078
        %v1098 = vsub.f32 %v855, %v1078
        %v1099 = vsub.f32 %v954, %v1078
        %v1100 = vsub.f32 %v956, %v1078
        %v1101 = vsub.f32 %v857, %v1079
        %v1102 = vsub.f32 %v859, %v1079
        %v1103 = vsub.f32 %v958, %v1079
        %v1104 = vsub.f32 %v960, %v1079
        %v1105 = vsub.f32 %v863, %v1080
        %v1106 = vsub.f32 %v865, %v1080
        %v1107 = vsub.f32 %v964, %v1080
        %v1108 = vsub.f32 %v966, %v1080
        %v1109 = vsub.f32 %v867, %v1081
        %v1110 = vsub.f32 %v869, %v1081
        %v1111 = vsub.f32 %v968, %v1081
        %v1112 = vsub.f32 %v970, %v1081
        %v1113 = vsub.f32 %v873, %v1082
        %v1114 = vsub.f32 %v875, %v1082
        %v1115 = vsub.f32 %v974, %v1082
        %v1116 = vsub.f32 %v976, %v1082
        %v1117 = vsub.f32 %v877, %v1083
        %v1118 = vsub.f32 %v879, %v1083
        %v1119 = vsub.f32 %v978, %v1083
        %v1120 = vsub.f32 %v980, %v1083
        %v1121 = vsub.f32 %v883, %v1084
        %v1122 = vsub.f32 %v885, %v1084
        %v1123 = vsub.f32 %v984, %v1084
        %v1124 = vsub.f32 %v986, %v1084
        %v1125 = vsub.f32 %v887, %v1085
        %v1126 = vsub.f32 %v889, %v1085
        %v1127 = vsub.f32 %v988, %v1085
        %v1128 = vsub.f32 %v990, %v1085
        %v1129 = vsub.f32 %v893, %v1086
        %v1130 = vsub.f32 %v895, %v1086
        %v1131 = vsub.f32 %v994, %v1086
        %v1132 = vsub.f32 %v996, %v1086
        %v1133 = vsub.f32 %v897, %v1087
        %v1134 = vsub.f32 %v899, %v1087
        %v1135 = vsub.f32 %v998, %v1087
        %v1136 = vsub.f32 %v1000, %v1087
        %v1137 = vsub.f32 %v903, %v1088
        %v1138 = vsub.f32 %v905, %v1088
        %v1139 = vsub.f32 %v1004, %v1088
        %v1140 = vsub.f32 %v1006, %v1088
        %v1141 = vmul.f32 %v1089, %v1089
        %v1142 = vmul.f32 %v1090, %v1090
        %v1143 = vmul.f32 %v1091, %v1091
        %v1144 = vmul.f32 %v1092, %v1092
        %v1145 = vmul.f32 %v1093, %v1093
        %v1146 = vmul.f32 %v1094, %v1094
        %v1147 = vmul.f32 %v1095, %v1095
        %v1148 = vmul.f32 %v1096, %v1096
        %v1149 = vmul.f32 %v1097, %v1097
        %v1150 = vmul.f32 %v1098, %v1098
        %v1151 = vmul.f32 %v1099, %v1099
        %v1152 = vmul.f32 %v1100, %v1100
        %v1153 = vmul.f32 %v1101, %v1101
        %v1154 = vmul.f32 %v1102, %v1102
        %v1155 = vmul.f32 %v1103, %v1103
        %v1156 = vmul.f32 %v1104, %v1104
        %v1157 = vmul.f32 %v1105, %v1105
        %v1158 = vmul.f32 %v1106, %v1106
        %v1159 = vmul.f32 %v1107, %v1107
        %v1160 = vmul.f32 %v1108, %v1108
        %v1161 = vmul.f32 %v1109, %v1109
        %v1162 = vmul.f32 %v1110, %v1110
        %v1163 = vmul.f32 %v1111, %v1111
        %v1164 = vmul.f32 %v1112, %v1112
        %v1165 = vmul.f32 %v1113, %v1113
        %v1166 = vmul.f32 %v1114, %v1114
        %v1167 = vmul.f32 %v1115, %v1115
        %v1168 = vmul.f32 %v1116, %v1116
        %v1169 = vmul.f32 %v1117, %v1117
        %v1170 = vmul.f32 %v1118, %v1118
        %v1171 = vmul.f32 %v1119, %v1119
        %v1172 = vmul.f32 %v1120, %v1120
        %v1173 = vmul.f32 %v1121, %v1121
        %v1174 = vmul.f32 %v1122, %v1122
        %v1175 = vmul.f32 %v1123, %v1123
        %v1176 = vmul.f32 %v1124, %v1124
        %v1177 = vmul.f32 %v1125, %v1125
        %v1178 = vmul.f32 %v1126, %v1126
        %v1179 = vmul.f32 %v1127, %v1127
        %v1180 = vmul.f32 %v1128, %v1128
        %v1181 = vmul.f32 %v1129, %v1129
        %v1182 = vmul.f32 %v1130, %v1130
        %v1183 = vmul.f32 %v1131, %v1131
        %v1184 = vmul.f32 %v1132, %v1132
        %v1185 = vmul.f32 %v1133, %v1133
        %v1186 = vmul.f32 %v1134, %v1134
        %v1187 = vmul.f32 %v1135, %v1135
        %v1188 = vmul.f32 %v1136, %v1136
        %v1189 = vmul.f32 %v1137, %v1137
        %v1190 = vmul.f32 %v1138, %v1138
        %v1191 = vmul.f32 %v1139, %v1139
        %v1192 = vmul.f32 %v1140, %v1140
        %v1193 = vadd.f32 %v1141, %v1142
        %v1194 = vadd.f32 %v1193, %v1143
        %v1195 = vadd.f32 %v1194, %v1144
        %1196 = vadd.xlane.f32.xlu0 %v1195
        %v1197 = vpop.xlane.xlu0 %1196
        %v1198 = vadd.f32 %v1145, %v1146
        %v1199 = vadd.f32 %v1198, %v1147
        %v1200 = vadd.f32 %v1199, %v1148
        %1201 = vadd.xlane.f32.xlu0 %v1200
        %v1202 = vpop.xlane.xlu0 %1201
        %v1203 = vadd.f32 %v1149, %v1150
        %v1204 = vadd.f32 %v1203, %v1151
        %v1205 = vadd.f32 %v1204, %v1152
        %1206 = vadd.xlane.f32.xlu0 %v1205
        %v1207 = vpop.xlane.xlu0 %1206
        %v1208 = vadd.f32 %v1153, %v1154
        %v1209 = vadd.f32 %v1208, %v1155
        %v1210 = vadd.f32 %v1209, %v1156
        %1211 = vadd.xlane.f32.xlu0 %v1210
        %v1212 = vpop.xlane.xlu0 %1211
        %v1213 = vadd.f32 %v1157, %v1158
        %v1214 = vadd.f32 %v1213, %v1159
        %v1215 = vadd.f32 %v1214, %v1160
        %1216 = vadd.xlane.f32.xlu0 %v1215
        %v1217 = vpop.xlane.xlu0 %1216
        %v1218 = vadd.f32 %v1161, %v1162
        %v1219 = vadd.f32 %v1218, %v1163
        %v1220 = vadd.f32 %v1219, %v1164
        %1221 = vadd.xlane.f32.xlu0 %v1220
        %v1222 = vpop.xlane.xlu0 %1221
        %v1223 = vadd.f32 %v1165, %v1166
        %v1224 = vadd.f32 %v1223, %v1167
        %v1225 = vadd.f32 %v1224, %v1168
        %1226 = vadd.xlane.f32.xlu0 %v1225
        %v1227 = vpop.xlane.xlu0 %1226
        %v1228 = vadd.f32 %v1169, %v1170
        %v1229 = vadd.f32 %v1228, %v1171
        %v1230 = vadd.f32 %v1229, %v1172
        %1231 = vadd.xlane.f32.xlu0 %v1230
        %v1232 = vpop.xlane.xlu0 %1231
        %v1233 = vadd.f32 %v1173, %v1174
        %v1234 = vadd.f32 %v1233, %v1175
        %v1235 = vadd.f32 %v1234, %v1176
        %1236 = vadd.xlane.f32.xlu0 %v1235
        %v1237 = vpop.xlane.xlu0 %1236
        %v1238 = vadd.f32 %v1177, %v1178
        %v1239 = vadd.f32 %v1238, %v1179
        %v1240 = vadd.f32 %v1239, %v1180
        %1241 = vadd.xlane.f32.xlu0 %v1240
        %v1242 = vpop.xlane.xlu0 %1241
        %v1243 = vadd.f32 %v1181, %v1182
        %v1244 = vadd.f32 %v1243, %v1183
        %v1245 = vadd.f32 %v1244, %v1184
        %1246 = vadd.xlane.f32.xlu0 %v1245
        %v1247 = vpop.xlane.xlu0 %1246
        %v1248 = vadd.f32 %v1185, %v1186
        %v1249 = vadd.f32 %v1248, %v1187
        %v1250 = vadd.f32 %v1249, %v1188
        %1251 = vadd.xlane.f32.xlu0 %v1250
        %v1252 = vpop.xlane.xlu0 %1251
        %v1253 = vadd.f32 %v1189, %v1190
        %v1254 = vadd.f32 %v1253, %v1191
        %v1255 = vadd.f32 %v1254, %v1192
        %1256 = vadd.xlane.f32.xlu0 %v1255
        %v1257 = vpop.xlane.xlu0 %1256
        %v1258 = vmul.f32 %v1197, %v1075
        %v1259 = vmul.f32 %v1202, %v1075
        %v1260 = vmul.f32 %v1207, %v1075
        %v1261 = vmul.f32 %v1212, %v1075
        %v1262 = vmul.f32 %v1217, %v1075
        %v1263 = vmul.f32 %v1222, %v1075
        %v1264 = vmul.f32 %v1227, %v1075
        %v1265 = vmul.f32 %v1232, %v1075
        %v1266 = vmul.f32 %v1237, %v1075
        %v1267 = vmul.f32 %v1242, %v1075
        %v1268 = vmul.f32 %v1247, %v1075
        %v1269 = vmul.f32 %v1252, %v1075
        %v1270 = vmul.f32 %v1257, %v1075
        %v1271 = vadd.f32 %v1258, 1e-05
        %v1272 = vadd.f32 %v1259, 1e-05
        %v1273 = vadd.f32 %v1260, 1e-05
        %v1274 = vadd.f32 %v1261, 1e-05
        %v1275 = vadd.f32 %v1262, 1e-05
        %v1276 = vadd.f32 %v1263, 1e-05
        %v1277 = vadd.f32 %v1264, 1e-05
        %v1278 = vadd.f32 %v1265, 1e-05
        %v1279 = vadd.f32 %v1266, 1e-05
        %v1280 = vadd.f32 %v1267, 1e-05
        %v1281 = vadd.f32 %v1268, 1e-05
        %v1282 = vadd.f32 %v1269, 1e-05
        %v1283 = vadd.f32 %v1270, 1e-05
        %v1284 = vrsqrt.pop %v1271
        %v1285 = vrsqrt.pop %v1272
        %v1286 = vrsqrt.pop %v1273
        %v1287 = vrsqrt.pop %v1274
        %v1288 = vrsqrt.pop %v1275
        %v1289 = vrsqrt.pop %v1276
        %v1290 = vrsqrt.pop %v1277
        %v1291 = vrsqrt.pop %v1278
        %v1292 = vrsqrt.pop %v1279
        %v1293 = vrsqrt.pop %v1280
        %v1294 = vrsqrt.pop %v1281
        %v1295 = vrsqrt.pop %v1282
        %v1296 = vrsqrt.pop %v1283
        %v1297 = vmul.f32 %v1089, %v1284
        %v1298 = vmul.f32 %v1090, %v1284
        %v1299 = vmul.f32 %v1091, %v1284
        %v1300 = vmul.f32 %v1092, %v1284
        %v1301 = vmul.f32 %v1093, %v1285
        %v1302 = vmul.f32 %v1094, %v1285
        %v1303 = vmul.f32 %v1095, %v1285
        %v1304 = vmul.f32 %v1096, %v1285
        %v1305 = vmul.f32 %v1097, %v1286
        %v1306 = vmul.f32 %v1098, %v1286
        %v1307 = vmul.f32 %v1099, %v1286
        %v1308 = vmul.f32 %v1100, %v1286
        %v1309 = vmul.f32 %v1101, %v1287
        %v1310 = vmul.f32 %v1102, %v1287
        %v1311 = vmul.f32 %v1103, %v1287
        %v1312 = vmul.f32 %v1104, %v1287
        %v1313 = vmul.f32 %v1105, %v1288
        %v1314 = vmul.f32 %v1106, %v1288
        %v1315 = vmul.f32 %v1107, %v1288
        %v1316 = vmul.f32 %v1108, %v1288
        %v1317 = vmul.f32 %v1109, %v1289
        %v1318 = vmul.f32 %v1110, %v1289
        %v1319 = vmul.f32 %v1111, %v1289
        %v1320 = vmul.f32 %v1112, %v1289
        %v1321 = vmul.f32 %v1113, %v1290
        %v1322 = vmul.f32 %v1114, %v1290
        %v1323 = vmul.f32 %v1115, %v1290
        %v1324 = vmul.f32 %v1116, %v1290
        %v1325 = vmul.f32 %v1117, %v1291
        %v1326 = vmul.f32 %v1118, %v1291
        %v1327 = vmul.f32 %v1119, %v1291
        %v1328 = vmul.f32 %v1120, %v1291
        %v1329 = vmul.f32 %v1121, %v1292
        %v1330 = vmul.f32 %v1122, %v1292
        %v1331 = vmul.f32 %v1123, %v1292
        %v1332 = vmul.f32 %v1124, %v1292
        %v1333 = vmul.f32 %v1125, %v1293
        %v1334 = vmul.f32 %v1126, %v1293
        %v1335 = vmul.f32 %v1127, %v1293
        %v1336 = vmul.f32 %v1128, %v1293
        %v1337 = vmul.f32 %v1129, %v1294
        %v1338 = vmul.f32 %v1130, %v1294
        %v1339 = vmul.f32 %v1131, %v1294
        %v1340 = vmul.f32 %v1132, %v1294
        %v1341 = vmul.f32 %v1133, %v1295
        %v1342 = vmul.f32 %v1134, %v1295
        %v1343 = vmul.f32 %v1135, %v1295
        %v1344 = vmul.f32 %v1136, %v1295
        %v1345 = vmul.f32 %v1137, %v1296
        %v1346 = vmul.f32 %v1138, %v1296
        %v1347 = vmul.f32 %v1139, %v1296
        %v1348 = vmul.f32 %v1140, %v1296
        %v1350 = vlaneseq
        %v1351 = vshrl.u32 %v1350, 7
        %v1352 = vsub.s32 0, %v1351
        %v1353 = vrot.slane %v585, %v1352
        %v1354 = vlaneseq
        %v1355 = vshrl.u32 %v1354, 7
        %v1356 = vsub.s32 1, %v1355
        %v1357 = vrot.slane %v585, %v1356
        %v1358 = vlaneseq
        %v1359 = vshrl.u32 %v1358, 7
        %v1360 = vsub.s32 2, %v1359
        %v1361 = vrot.slane %v585, %v1360
        %v1362 = vlaneseq
        %v1363 = vshrl.u32 %v1362, 7
        %v1364 = vsub.s32 3, %v1363
        %v1365 = vrot.slane %v585, %v1364
        %v1370 = vmul.f32 %v1297, %v1353
        %v1371 = vmul.f32 %v1298, %v1357
        %v1372 = vmul.f32 %v1299, %v1361
        %v1373 = vmul.f32 %v1300, %v1365
        %v1374 = vmul.f32 %v1301, %v1353
        %v1375 = vmul.f32 %v1302, %v1357
        %v1376 = vmul.f32 %v1303, %v1361
        %v1377 = vmul.f32 %v1304, %v1365
        %v1378 = vmul.f32 %v1305, %v1353
        %v1379 = vmul.f32 %v1306, %v1357
        %v1380 = vmul.f32 %v1307, %v1361
        %v1381 = vmul.f32 %v1308, %v1365
        %v1382 = vmul.f32 %v1309, %v1353
        %v1383 = vmul.f32 %v1310, %v1357
        %v1384 = vmul.f32 %v1311, %v1361
        %v1385 = vmul.f32 %v1312, %v1365
        %v1386 = vmul.f32 %v1313, %v1353
        %v1387 = vmul.f32 %v1314, %v1357
        %v1388 = vmul.f32 %v1315, %v1361
        %v1389 = vmul.f32 %v1316, %v1365
        %v1390 = vmul.f32 %v1317, %v1353
        %v1391 = vmul.f32 %v1318, %v1357
        %v1392 = vmul.f32 %v1319, %v1361
        %v1393 = vmul.f32 %v1320, %v1365
        %v1394 = vmul.f32 %v1321, %v1353
        %v1395 = vmul.f32 %v1322, %v1357
        %v1396 = vmul.f32 %v1323, %v1361
        %v1397 = vmul.f32 %v1324, %v1365
        %v1398 = vmul.f32 %v1325, %v1353
        %v1399 = vmul.f32 %v1326, %v1357
        %v1400 = vmul.f32 %v1327, %v1361
        %v1401 = vmul.f32 %v1328, %v1365
        %v1402 = vmul.f32 %v1329, %v1353
        %v1403 = vmul.f32 %v1330, %v1357
        %v1404 = vmul.f32 %v1331, %v1361
        %v1405 = vmul.f32 %v1332, %v1365
        %v1406 = vmul.f32 %v1333, %v1353
        %v1407 = vmul.f32 %v1334, %v1357
        %v1408 = vmul.f32 %v1335, %v1361
        %v1409 = vmul.f32 %v1336, %v1365
        %v1410 = vmul.f32 %v1337, %v1353
        %v1411 = vmul.f32 %v1338, %v1357
        %v1412 = vmul.f32 %v1339, %v1361
        %v1413 = vmul.f32 %v1340, %v1365
        %v1414 = vmul.f32 %v1341, %v1353
        %v1415 = vmul.f32 %v1342, %v1357
        %v1416 = vmul.f32 %v1343, %v1361
        %v1417 = vmul.f32 %v1344, %v1365
        %v1418 = vmul.f32 %v1345, %v1353
        %v1419 = vmul.f32 %v1346, %v1357
        %v1420 = vmul.f32 %v1347, %v1361
        %v1421 = vmul.f32 %v1348, %v1365
        %v1423 = vlaneseq
        %v1424 = vshrl.u32 %v1423, 7
        %v1425 = vsub.s32 0, %v1424
        %v1426 = vrot.slane %v586, %v1425
        %v1427 = vlaneseq
        %v1428 = vshrl.u32 %v1427, 7
        %v1429 = vsub.s32 1, %v1428
        %v1430 = vrot.slane %v586, %v1429
        %v1431 = vlaneseq
        %v1432 = vshrl.u32 %v1431, 7
        %v1433 = vsub.s32 2, %v1432
        %v1434 = vrot.slane %v586, %v1433
        %v1435 = vlaneseq
        %v1436 = vshrl.u32 %v1435, 7
        %v1437 = vsub.s32 3, %v1436
        %v1438 = vrot.slane %v586, %v1437
        %v1443 = vadd.f32 %v1370, %v1426
        %v1444 = vadd.f32 %v1371, %v1430
        %v1445 = vadd.f32 %v1372, %v1434
        %v1446 = vadd.f32 %v1373, %v1438
        %v1447 = vadd.f32 %v1374, %v1426
        %v1448 = vadd.f32 %v1375, %v1430
        %v1449 = vadd.f32 %v1376, %v1434
        %v1450 = vadd.f32 %v1377, %v1438
        %v1451 = vadd.f32 %v1378, %v1426
        %v1452 = vadd.f32 %v1379, %v1430
        %v1453 = vadd.f32 %v1380, %v1434
        %v1454 = vadd.f32 %v1381, %v1438
        %v1455 = vadd.f32 %v1382, %v1426
        %v1456 = vadd.f32 %v1383, %v1430
        %v1457 = vadd.f32 %v1384, %v1434
        %v1458 = vadd.f32 %v1385, %v1438
        %v1459 = vadd.f32 %v1386, %v1426
        %v1460 = vadd.f32 %v1387, %v1430
        %v1461 = vadd.f32 %v1388, %v1434
        %v1462 = vadd.f32 %v1389, %v1438
        %v1463 = vadd.f32 %v1390, %v1426
        %v1464 = vadd.f32 %v1391, %v1430
        %v1465 = vadd.f32 %v1392, %v1434
        %v1466 = vadd.f32 %v1393, %v1438
        %v1467 = vadd.f32 %v1394, %v1426
        %v1468 = vadd.f32 %v1395, %v1430
        %v1469 = vadd.f32 %v1396, %v1434
        %v1470 = vadd.f32 %v1397, %v1438
        %v1471 = vadd.f32 %v1398, %v1426
        %v1472 = vadd.f32 %v1399, %v1430
        %v1473 = vadd.f32 %v1400, %v1434
        %v1474 = vadd.f32 %v1401, %v1438
        %v1475 = vadd.f32 %v1402, %v1426
        %v1476 = vadd.f32 %v1403, %v1430
        %v1477 = vadd.f32 %v1404, %v1434
        %v1478 = vadd.f32 %v1405, %v1438
        %v1479 = vadd.f32 %v1406, %v1426
        %v1480 = vadd.f32 %v1407, %v1430
        %v1481 = vadd.f32 %v1408, %v1434
        %v1482 = vadd.f32 %v1409, %v1438
        %v1483 = vadd.f32 %v1410, %v1426
        %v1484 = vadd.f32 %v1411, %v1430
        %v1485 = vadd.f32 %v1412, %v1434
        %v1486 = vadd.f32 %v1413, %v1438
        %v1487 = vadd.f32 %v1414, %v1426
        %v1488 = vadd.f32 %v1415, %v1430
        %v1489 = vadd.f32 %v1416, %v1434
        %v1490 = vadd.f32 %v1417, %v1438
        %v1491 = vadd.f32 %v1418, %v1426
        %v1492 = vadd.f32 %v1419, %v1430
        %v1493 = vadd.f32 %v1420, %v1434
        %v1494 = vadd.f32 %v1421, %v1438
        %v1495 = vmul.f32 %v1443, 0.01
        %v1496 = vmul.f32 %v1444, 0.01
        %v1497 = vmul.f32 %v1445, 0.01
        %v1498 = vmul.f32 %v1446, 0.01
        %v1499 = vmul.f32 %v1447, 0.01
        %v1500 = vmul.f32 %v1448, 0.01
        %v1501 = vmul.f32 %v1449, 0.01
        %v1502 = vmul.f32 %v1450, 0.01
        %v1503 = vmul.f32 %v1451, 0.01
        %v1504 = vmul.f32 %v1452, 0.01
        %v1505 = vmul.f32 %v1453, 0.01
        %v1506 = vmul.f32 %v1454, 0.01
        %v1507 = vmul.f32 %v1455, 0.01
        %v1508 = vmul.f32 %v1456, 0.01
        %v1509 = vmul.f32 %v1457, 0.01
        %v1510 = vmul.f32 %v1458, 0.01
        %v1511 = vmul.f32 %v1459, 0.01
        %v1512 = vmul.f32 %v1460, 0.01
        %v1513 = vmul.f32 %v1461, 0.01
        %v1514 = vmul.f32 %v1462, 0.01
        %v1515 = vmul.f32 %v1463, 0.01
        %v1516 = vmul.f32 %v1464, 0.01
        %v1517 = vmul.f32 %v1465, 0.01
        %v1518 = vmul.f32 %v1466, 0.01
        %v1519 = vmul.f32 %v1467, 0.01
        %v1520 = vmul.f32 %v1468, 0.01
        %v1521 = vmul.f32 %v1469, 0.01
        %v1522 = vmul.f32 %v1470, 0.01
        %v1523 = vmul.f32 %v1471, 0.01
        %v1524 = vmul.f32 %v1472, 0.01
        %v1525 = vmul.f32 %v1473, 0.01
        %v1526 = vmul.f32 %v1474, 0.01
        %v1527 = vmul.f32 %v1475, 0.01
        %v1528 = vmul.f32 %v1476, 0.01
        %v1529 = vmul.f32 %v1477, 0.01
        %v1530 = vmul.f32 %v1478, 0.01
        %v1531 = vmul.f32 %v1479, 0.01
        %v1532 = vmul.f32 %v1480, 0.01
        %v1533 = vmul.f32 %v1481, 0.01
        %v1534 = vmul.f32 %v1482, 0.01
        %v1535 = vmul.f32 %v1483, 0.01
        %v1536 = vmul.f32 %v1484, 0.01
        %v1537 = vmul.f32 %v1485, 0.01
        %v1538 = vmul.f32 %v1486, 0.01
        %v1539 = vmul.f32 %v1487, 0.01
        %v1540 = vmul.f32 %v1488, 0.01
        %v1541 = vmul.f32 %v1489, 0.01
        %v1542 = vmul.f32 %v1490, 0.01
        %v1543 = vmul.f32 %v1491, 0.01
        %v1544 = vmul.f32 %v1492, 0.01
        %v1545 = vmul.f32 %v1493, 0.01
        %v1546 = vmul.f32 %v1494, 0.01
        %v1547 = vmax.f32 %v1443, %v1495
        %v1548 = vmax.f32 %v1444, %v1496
        %v1549 = vmax.f32 %v1445, %v1497
        %v1550 = vmax.f32 %v1446, %v1498
        %v1551 = vmax.f32 %v1447, %v1499
        %v1552 = vmax.f32 %v1448, %v1500
        %v1553 = vmax.f32 %v1449, %v1501
        %v1554 = vmax.f32 %v1450, %v1502
        %v1555 = vmax.f32 %v1451, %v1503
        %v1556 = vmax.f32 %v1452, %v1504
        %v1557 = vmax.f32 %v1453, %v1505
        %v1558 = vmax.f32 %v1454, %v1506
        %v1559 = vmax.f32 %v1455, %v1507
        %v1560 = vmax.f32 %v1456, %v1508
        %v1561 = vmax.f32 %v1457, %v1509
        %v1562 = vmax.f32 %v1458, %v1510
        %v1563 = vmax.f32 %v1459, %v1511
        %v1564 = vmax.f32 %v1460, %v1512
        %v1565 = vmax.f32 %v1461, %v1513
        %v1566 = vmax.f32 %v1462, %v1514
        %v1567 = vmax.f32 %v1463, %v1515
        %v1568 = vmax.f32 %v1464, %v1516
        %v1569 = vmax.f32 %v1465, %v1517
        %v1570 = vmax.f32 %v1466, %v1518
        %v1571 = vmax.f32 %v1467, %v1519
        %v1572 = vmax.f32 %v1468, %v1520
        %v1573 = vmax.f32 %v1469, %v1521
        %v1574 = vmax.f32 %v1470, %v1522
        %v1575 = vmax.f32 %v1471, %v1523
        %v1576 = vmax.f32 %v1472, %v1524
        %v1577 = vmax.f32 %v1473, %v1525
        %v1578 = vmax.f32 %v1474, %v1526
        %v1579 = vmax.f32 %v1475, %v1527
        %v1580 = vmax.f32 %v1476, %v1528
        %v1581 = vmax.f32 %v1477, %v1529
        %v1582 = vmax.f32 %v1478, %v1530
        %v1583 = vmax.f32 %v1479, %v1531
        %v1584 = vmax.f32 %v1480, %v1532
        %v1585 = vmax.f32 %v1481, %v1533
        %v1586 = vmax.f32 %v1482, %v1534
        %v1587 = vmax.f32 %v1483, %v1535
        %v1588 = vmax.f32 %v1484, %v1536
        %v1589 = vmax.f32 %v1485, %v1537
        %v1590 = vmax.f32 %v1486, %v1538
        %v1591 = vmax.f32 %v1487, %v1539
        %v1592 = vmax.f32 %v1488, %v1540
        %v1593 = vmax.f32 %v1489, %v1541
        %v1594 = vmax.f32 %v1490, %v1542
        %v1595 = vmax.f32 %v1491, %v1543
        %v1596 = vmax.f32 %v1492, %v1544
        %v1597 = vmax.f32 %v1493, %v1545
        %v1598 = vmax.f32 %v1494, %v1546
        %v1599 = vld [vmem:[#allocation7] sm:$0xff]
        %v1600 = vld [vmem:[#allocation7 + $0x8] sm:$0xff]
        %v1601 = vld [vmem:[#allocation7 + $0x10] sm:$0xff]
        %v1602 = vld [vmem:[#allocation7 + $0x18] sm:$0xff]
        %v1603 = vld [vmem:[#allocation7 + $0x20] sm:$0xff]
        %v1604 = vld [vmem:[#allocation7 + $0x28] sm:$0xff]
        %v1605 = vld [vmem:[#allocation7 + $0x30] sm:$0xff]
        %v1606 = vld [vmem:[#allocation7 + $0x38] sm:$0xff]
        %v1607 = vld [vmem:[#allocation7 + $0x40] sm:$0xff]
        %v1608 = vld [vmem:[#allocation7 + $0x48] sm:$0xff]
        %v1609 = vld [vmem:[#allocation7 + $0x50] sm:$0xff]
        %v1610 = vld [vmem:[#allocation7 + $0x58] sm:$0xff]
        %v1611 = vld [vmem:[#allocation7 + $0x60] sm:$0xff]
        %v1612 = vld [vmem:[#allocation7 + $0x68] sm:$0xff]
        %v1613 = vld [vmem:[#allocation7 + $0x70] sm:$0xff]
        %v1614 = vld [vmem:[#allocation7 + $0x78] sm:$0xff]
        %v1615 = vld [vmem:[#allocation7 + $0x80] sm:$0xff]
        %v1616 = vld [vmem:[#allocation7 + $0x88] sm:$0xff]
        %v1617 = vld [vmem:[#allocation7 + $0x90] sm:$0xff]
        %v1618 = vld [vmem:[#allocation7 + $0x98] sm:$0xff]
        %v1619 = vld [vmem:[#allocation7 + $0xa0] sm:$0xff]
        %v1620 = vld [vmem:[#allocation7 + $0xa8] sm:$0xff]
        %v1621 = vld [vmem:[#allocation7 + $0xb0] sm:$0xff]
        %v1622 = vld [vmem:[#allocation7 + $0xb8] sm:$0xff]
        %v1623 = vld [vmem:[#allocation7 + $0xc0] sm:$0xff]
        %v1624 = vld [vmem:[#allocation7 + $0xc8] sm:$0xff]
        %v1625 = vld [vmem:[#allocation7 + $0xd0] sm:$0xff]
        %v1626 = vld [vmem:[#allocation7 + $0xd8] sm:$0xff]
        %v1627 = vld [vmem:[#allocation7 + $0xe0] sm:$0xff]
        %v1628 = vld [vmem:[#allocation7 + $0xe8] sm:$0xff]
        %v1629 = vld [vmem:[#allocation7 + $0xf0] sm:$0xff]
        %v1630 = vld [vmem:[#allocation7 + $0xf8] sm:$0xff]
        %v1631 = vld [vmem:[#allocation7 + $0x100] sm:$0xff]
        %v1632 = vld [vmem:[#allocation7 + $0x108] sm:$0xff]
        %v1633 = vld [vmem:[#allocation7 + $0x110] sm:$0xff]
        %v1634 = vld [vmem:[#allocation7 + $0x118] sm:$0xff]
        %v1635 = vld [vmem:[#allocation7 + $0x120] sm:$0xff]
        %v1636 = vld [vmem:[#allocation7 + $0x128] sm:$0xff]
        %v1637 = vld [vmem:[#allocation7 + $0x130] sm:$0xff]
        %v1638 = vld [vmem:[#allocation7 + $0x138] sm:$0xff]
        %v1639 = vld [vmem:[#allocation7 + $0x140] sm:$0xff]
        %v1640 = vld [vmem:[#allocation7 + $0x148] sm:$0xff]
        %v1641 = vld [vmem:[#allocation7 + $0x150] sm:$0xff]
        %v1642 = vld [vmem:[#allocation7 + $0x158] sm:$0xff]
        %v1643 = vld [vmem:[#allocation7 + $0x160] sm:$0xff]
        %v1644 = vld [vmem:[#allocation7 + $0x168] sm:$0xff]
        %v1645 = vld [vmem:[#allocation7 + $0x170] sm:$0xff]
        %v1646 = vld [vmem:[#allocation7 + $0x178] sm:$0xff]
        %v1647 = vld [vmem:[#allocation7 + $0x180] sm:$0xff]
        %v1648 = vld [vmem:[#allocation7 + $0x188] sm:$0xff]
        %v1649 = vld [vmem:[#allocation7 + $0x190] sm:$0xff]
        %v1650 = vld [vmem:[#allocation7 + $0x198] sm:$0xff]
        %v1651 = vld [vmem:[#allocation7 + $0x1a0] sm:$0xff]
        %v1652 = vld [vmem:[#allocation7 + $0x1a8] sm:$0xff]
        %v1653 = vld [vmem:[#allocation7 + $0x1b0] sm:$0xff]
        %v1654 = vld [vmem:[#allocation7 + $0x1b8] sm:$0xff]
        %v1655 = vld [vmem:[#allocation7 + $0x1c0] sm:$0xff]
        %v1656 = vld [vmem:[#allocation7 + $0x1c8] sm:$0xff]
        %v1657 = vld [vmem:[#allocation7 + $0x1d0] sm:$0xff]
        %v1658 = vld [vmem:[#allocation7 + $0x1d8] sm:$0xff]
        %v1659 = vld [vmem:[#allocation7 + $0x1e0] sm:$0xff]
        %v1660 = vld [vmem:[#allocation7 + $0x1e8] sm:$0xff]
        %v1661 = vld [vmem:[#allocation7 + $0x1f0] sm:$0xff]
        %v1662 = vld [vmem:[#allocation7 + $0x1f8] sm:$0xff]
        %v1663 = vld [vmem:[%s6] sm:$0x3]
        %v1664 = vld [vmem:[%s7] sm:$0x3]
        %v1665 = vld [vmem:[%s8] sm:$0x3]
        %v1666 = vpack.c.bf16 %v1551, %v1547
        %v1667 = vpack.c.bf16 %v1552, %v1548
        %v1668 = vpack.c.bf16 %v1553, %v1549
        %v1669 = vpack.c.bf16 %v1554, %v1550
        %v1670 = vpack.c.bf16 %v1559, %v1555
        %v1671 = vpack.c.bf16 %v1560, %v1556
        %v1672 = vpack.c.bf16 %v1561, %v1557
        %v1673 = vpack.c.bf16 %v1562, %v1558
        %v1674 = vpack.c.bf16 %v1567, %v1563
        %v1675 = vpack.c.bf16 %v1568, %v1564
        %v1676 = vpack.c.bf16 %v1569, %v1565
        %v1677 = vpack.c.bf16 %v1570, %v1566
        %v1678 = vpack.c.bf16 %v1575, %v1571
        %v1679 = vpack.c.bf16 %v1576, %v1572
        %v1680 = vpack.c.bf16 %v1577, %v1573
        %v1681 = vpack.c.bf16 %v1578, %v1574
        %v1682 = vpack.c.bf16 %v1583, %v1579
        %v1683 = vpack.c.bf16 %v1584, %v1580
        %v1684 = vpack.c.bf16 %v1585, %v1581
        %v1685 = vpack.c.bf16 %v1586, %v1582
        %v1686 = vpack.c.bf16 %v1591, %v1587
        %v1687 = vpack.c.bf16 %v1592, %v1588
        %v1688 = vpack.c.bf16 %v1593, %v1589
        %v1689 = vpack.c.bf16 %v1594, %v1590
        %v1690 = vpack.c.bf16 %v1595, %v1595
        %v1691 = vpack.c.bf16 %v1596, %v1596
        %v1692 = vpack.c.bf16 %v1597, %v1597
        %v1693 = vpack.c.bf16 %v1598, %v1598
        %v1695 = vlaneseq
        %v1696 = vshrl.u32 %v1695, 7
        %v1697 = vsub.s32 0, %v1696
        %v1698 = vrot.slane %v1663, %v1697
        %v1699 = vlaneseq
        %v1700 = vshrl.u32 %v1699, 7
        %v1701 = vsub.s32 1, %v1700
        %v1702 = vrot.slane %v1663, %v1701
        %v1769 = vunpack.c.l.b16 %v1599
        %v1770 = vunpack.c.h.b16 %v1599
        %v1771 = vunpack.c.l.b16 %v1600
        %v1772 = vunpack.c.h.b16 %v1600
        %v1773 = vunpack.c.l.b16 %v1601
        %v1774 = vunpack.c.h.b16 %v1601
        %v1775 = vunpack.c.l.b16 %v1602
        %v1776 = vunpack.c.h.b16 %v1602
        %v1777 = vunpack.c.l.b16 %v1603
        %v1778 = vunpack.c.h.b16 %v1603
        %v1779 = vunpack.c.l.b16 %v1604
        %v1780 = vunpack.c.h.b16 %v1604
        %v1781 = vunpack.c.l.b16 %v1605
        %v1782 = vunpack.c.h.b16 %v1605
        %v1783 = vunpack.c.l.b16 %v1606
        %v1784 = vunpack.c.h.b16 %v1606
        %v1785 = vunpack.c.l.b16 %v1607
        %v1786 = vunpack.c.h.b16 %v1607
        %v1787 = vunpack.c.l.b16 %v1608
        %v1788 = vunpack.c.h.b16 %v1608
        %v1789 = vunpack.c.l.b16 %v1609
        %v1790 = vunpack.c.h.b16 %v1609
        %v1791 = vunpack.c.l.b16 %v1610
        %v1792 = vunpack.c.h.b16 %v1610
        %v1793 = vunpack.c.l.b16 %v1611
        %v1794 = vunpack.c.h.b16 %v1611
        %v1795 = vunpack.c.l.b16 %v1612
        %v1796 = vunpack.c.h.b16 %v1612
        %v1797 = vunpack.c.l.b16 %v1613
        %v1798 = vunpack.c.h.b16 %v1613
        %v1799 = vunpack.c.l.b16 %v1614
        %v1800 = vunpack.c.h.b16 %v1614
        %v1801 = vunpack.c.l.b16 %v1615
        %v1802 = vunpack.c.h.b16 %v1615
        %v1803 = vunpack.c.l.b16 %v1616
        %v1804 = vunpack.c.h.b16 %v1616
        %v1805 = vunpack.c.l.b16 %v1617
        %v1806 = vunpack.c.h.b16 %v1617
        %v1807 = vunpack.c.l.b16 %v1618
        %v1808 = vunpack.c.h.b16 %v1618
        %v1809 = vunpack.c.l.b16 %v1619
        %v1810 = vunpack.c.h.b16 %v1619
        %v1811 = vunpack.c.l.b16 %v1620
        %v1812 = vunpack.c.h.b16 %v1620
        %v1813 = vunpack.c.l.b16 %v1621
        %v1814 = vunpack.c.h.b16 %v1621
        %v1815 = vunpack.c.l.b16 %v1622
        %v1816 = vunpack.c.h.b16 %v1622
        %v1817 = vunpack.c.l.b16 %v1623
        %v1818 = vunpack.c.h.b16 %v1623
        %v1819 = vunpack.c.l.b16 %v1624
        %v1820 = vunpack.c.h.b16 %v1624
        %v1821 = vunpack.c.l.b16 %v1625
        %v1822 = vunpack.c.h.b16 %v1625
        %v1823 = vunpack.c.l.b16 %v1626
        %v1824 = vunpack.c.h.b16 %v1626
        %v1825 = vunpack.c.l.b16 %v1627
        %v1826 = vunpack.c.h.b16 %v1627
        %v1827 = vunpack.c.l.b16 %v1628
        %v1828 = vunpack.c.h.b16 %v1628
        %v1829 = vunpack.c.l.b16 %v1629
        %v1830 = vunpack.c.h.b16 %v1629
        %v1831 = vunpack.c.l.b16 %v1630
        %v1832 = vunpack.c.h.b16 %v1630
        %v1833 = vunpack.c.l.b16 %v1631
        %v1834 = vunpack.c.h.b16 %v1631
        %v1835 = vunpack.c.l.b16 %v1632
        %v1836 = vunpack.c.h.b16 %v1632
        %v1837 = vunpack.c.l.b16 %v1633
        %v1838 = vunpack.c.h.b16 %v1633
        %v1839 = vunpack.c.l.b16 %v1634
        %v1840 = vunpack.c.h.b16 %v1634
        %v1841 = vunpack.c.l.b16 %v1635
        %v1842 = vunpack.c.h.b16 %v1635
        %v1843 = vunpack.c.l.b16 %v1636
        %v1844 = vunpack.c.h.b16 %v1636
        %v1845 = vunpack.c.l.b16 %v1637
        %v1846 = vunpack.c.h.b16 %v1637
        %v1847 = vunpack.c.l.b16 %v1638
        %v1848 = vunpack.c.h.b16 %v1638
        %v1849 = vunpack.c.l.b16 %v1639
        %v1850 = vunpack.c.h.b16 %v1639
        %v1851 = vunpack.c.l.b16 %v1640
        %v1852 = vunpack.c.h.b16 %v1640
        %v1853 = vunpack.c.l.b16 %v1641
        %v1854 = vunpack.c.h.b16 %v1641
        %v1855 = vunpack.c.l.b16 %v1642
        %v1856 = vunpack.c.h.b16 %v1642
        %v1857 = vunpack.c.l.b16 %v1643
        %v1858 = vunpack.c.h.b16 %v1643
        %v1859 = vunpack.c.l.b16 %v1644
        %v1860 = vunpack.c.h.b16 %v1644
        %v1861 = vunpack.c.l.b16 %v1645
        %v1862 = vunpack.c.h.b16 %v1645
        %v1863 = vunpack.c.l.b16 %v1646
        %v1864 = vunpack.c.h.b16 %v1646
        %v1865 = vunpack.c.l.b16 %v1647
        %v1866 = vunpack.c.h.b16 %v1647
        %v1867 = vunpack.c.l.b16 %v1648
        %v1868 = vunpack.c.h.b16 %v1648
        %v1869 = vunpack.c.l.b16 %v1649
        %v1870 = vunpack.c.h.b16 %v1649
        %v1871 = vunpack.c.l.b16 %v1650
        %v1872 = vunpack.c.h.b16 %v1650
        %v1873 = vunpack.c.l.b16 %v1651
        %v1874 = vunpack.c.h.b16 %v1651
        %v1875 = vunpack.c.l.b16 %v1652
        %v1876 = vunpack.c.h.b16 %v1652
        %v1877 = vunpack.c.l.b16 %v1653
        %v1878 = vunpack.c.h.b16 %v1653
        %v1879 = vunpack.c.l.b16 %v1654
        %v1880 = vunpack.c.h.b16 %v1654
        %v1881 = vunpack.c.l.b16 %v1655
        %v1882 = vunpack.c.h.b16 %v1655
        %v1883 = vunpack.c.l.b16 %v1656
        %v1884 = vunpack.c.h.b16 %v1656
        %v1885 = vunpack.c.l.b16 %v1657
        %v1886 = vunpack.c.h.b16 %v1657
        %v1887 = vunpack.c.l.b16 %v1658
        %v1888 = vunpack.c.h.b16 %v1658
        %v1889 = vunpack.c.l.b16 %v1659
        %v1890 = vunpack.c.h.b16 %v1659
        %v1891 = vunpack.c.l.b16 %v1660
        %v1892 = vunpack.c.h.b16 %v1660
        %v1893 = vunpack.c.l.b16 %v1661
        %v1894 = vunpack.c.h.b16 %v1661
        %v1895 = vunpack.c.l.b16 %v1662
        %v1896 = vunpack.c.h.b16 %v1662
        %v1897 = vpack.c.b16 %v1771, %v1769
        %v1898 = vpack.c.b16 %v1772, %v1770
        %v1899 = vpack.c.b16 %v1775, %v1773
        %v1900 = vpack.c.b16 %v1776, %v1774
        %v1901 = vpack.c.b16 %v1779, %v1777
        %v1902 = vpack.c.b16 %v1780, %v1778
        %v1903 = vpack.c.b16 %v1783, %v1781
        %v1904 = vpack.c.b16 %v1784, %v1782
        %v1905 = vpack.c.b16 %v1787, %v1785
        %v1906 = vpack.c.b16 %v1788, %v1786
        %v1907 = vpack.c.b16 %v1791, %v1789
        %v1908 = vpack.c.b16 %v1792, %v1790
        %v1909 = vpack.c.b16 %v1795, %v1793
        %v1910 = vpack.c.b16 %v1796, %v1794
        %v1911 = vpack.c.b16 %v1799, %v1797
        %v1912 = vpack.c.b16 %v1800, %v1798
        %v1913 = vpack.c.b16 %v1803, %v1801
        %v1914 = vpack.c.b16 %v1804, %v1802
        %v1915 = vpack.c.b16 %v1807, %v1805
        %v1916 = vpack.c.b16 %v1808, %v1806
        %v1917 = vpack.c.b16 %v1811, %v1809
        %v1918 = vpack.c.b16 %v1812, %v1810
        %v1919 = vpack.c.b16 %v1815, %v1813
        %v1920 = vpack.c.b16 %v1816, %v1814
        %v1921 = vpack.c.b16 %v1819, %v1817
        %v1922 = vpack.c.b16 %v1820, %v1818
        %v1923 = vpack.c.b16 %v1823, %v1821
        %v1924 = vpack.c.b16 %v1824, %v1822
        %v1925 = vpack.c.b16 %v1827, %v1825
        %v1926 = vpack.c.b16 %v1828, %v1826
        %v1927 = vpack.c.b16 %v1831, %v1829
        %v1928 = vpack.c.b16 %v1832, %v1830
        %v1929 = vpack.c.b16 %v1835, %v1833
        %v1930 = vpack.c.b16 %v1836, %v1834
        %v1931 = vpack.c.b16 %v1839, %v1837
        %v1932 = vpack.c.b16 %v1840, %v1838
        %v1933 = vpack.c.b16 %v1843, %v1841
        %v1934 = vpack.c.b16 %v1844, %v1842
        %v1935 = vpack.c.b16 %v1847, %v1845
        %v1936 = vpack.c.b16 %v1848, %v1846
        %v1937 = vpack.c.b16 %v1851, %v1849
        %v1938 = vpack.c.b16 %v1852, %v1850
        %v1939 = vpack.c.b16 %v1855, %v1853
        %v1940 = vpack.c.b16 %v1856, %v1854
        %v1941 = vpack.c.b16 %v1859, %v1857
        %v1942 = vpack.c.b16 %v1860, %v1858
        %v1943 = vpack.c.b16 %v1863, %v1861
        %v1944 = vpack.c.b16 %v1864, %v1862
        %v1945 = vpack.c.b16 %v1867, %v1865
        %v1946 = vpack.c.b16 %v1868, %v1866
        %v1947 = vpack.c.b16 %v1871, %v1869
        %v1948 = vpack.c.b16 %v1872, %v1870
        %v1949 = vpack.c.b16 %v1875, %v1873
        %v1950 = vpack.c.b16 %v1876, %v1874
        %v1951 = vpack.c.b16 %v1879, %v1877
        %v1952 = vpack.c.b16 %v1880, %v1878
        %v1953 = vpack.c.b16 %v1883, %v1881
        %v1954 = vpack.c.b16 %v1884, %v1882
        %v1955 = vpack.c.b16 %v1887, %v1885
        %v1956 = vpack.c.b16 %v1888, %v1886
        %v1957 = vpack.c.b16 %v1891, %v1889
        %v1958 = vpack.c.b16 %v1892, %v1890
        %v1959 = vpack.c.b16 %v1895, %v1893
        %v1960 = vpack.c.b16 %v1896, %v1894
        %2025 = vmatprep.subr.bf16.mxu0 %v1912
        %2026 = vmatpush1.bf16.msra.mxu0 %v1911
        %2027 = vmatprep.subr.bf16.mxu0 %v1910
        %2028 = vmatpush1.bf16.msra.mxu0 %v1909
        %2029 = vmatprep.subr.bf16.mxu0 %v1908
        %2030 = vmatpush1.bf16.msra.mxu0 %v1907
        %2031 = vmatprep.subr.bf16.mxu0 %v1906
        %2032 = vmatpush1.bf16.msra.mxu0 %v1905
        %2033 = vmatprep.subr.bf16.mxu0 %v1904
        %2034 = vmatpush1.bf16.msra.mxu0 %v1903
        %2035 = vmatprep.subr.bf16.mxu0 %v1902
        %2036 = vmatpush1.bf16.msra.mxu0 %v1901
        %2037 = vmatprep.subr.bf16.mxu0 %v1900
        %2038 = vmatpush1.bf16.msra.mxu0 %v1899
        %2039 = vmatprep.subr.bf16.mxu0 %v1898
        %2040 = vmatpush1.bf16.msra.mxu0 %v1897
        %2041 = vmatprep.subr.bf16.mxu0 %v1928
        %2042 = vmatpush2.bf16.msra.mxu0 %v1927
        %2043 = vmatprep.subr.bf16.mxu0 %v1926
        %2044 = vmatpush2.bf16.msra.mxu0 %v1925
        %2045 = vmatprep.subr.bf16.mxu0 %v1924
        %2046 = vmatpush2.bf16.msra.mxu0 %v1923
        %2047 = vmatprep.subr.bf16.mxu0 %v1922
        %2048 = vmatpush2.bf16.msra.mxu0 %v1921
        %2049 = vmatprep.subr.bf16.mxu0 %v1920
        %2050 = vmatpush2.bf16.msra.mxu0 %v1919
        %2051 = vmatprep.subr.bf16.mxu0 %v1918
        %2052 = vmatpush2.bf16.msra.mxu0 %v1917
        %2053 = vmatprep.subr.bf16.mxu0 %v1916
        %2054 = vmatpush2.bf16.msra.mxu0 %v1915
        %2055 = vmatprep.subr.bf16.mxu0 %v1914
        %2056 = vmatpush2.bf16.msra.mxu0 %v1913
        %2057 = vmatprep.mubr.bf16.mxu0 %v1667
        %2058 = vmatmul.mubr.bf16.gmra.mxu0 %v1666
        %v2059 = vpop.f32.mrf.mxu0
        %v2060 = vadd.f32 %v1698, %v2059
        %v2061 = vpop.f32.mrf.mxu0
        %v2062 = vadd.f32 %v1702, %v2061
        %v2063 = vpop.f32.mrf.mxu0
        %v2064 = vadd.f32 %v1698, %v2063
        %v2065 = vpop.f32.mrf.mxu0
        %v2066 = vadd.f32 %v1702, %v2065
        %2067 = vmatprep.mubr.bf16.mxu0 %v1671
        %2068 = vmatmul.mubr.bf16.gmra.mxu0 %v1670
        %v2069 = vpop.f32.mrf.mxu0
        %v2070 = vadd.f32 %v1698, %v2069
        %v2071 = vpop.f32.mrf.mxu0
        %v2072 = vadd.f32 %v1702, %v2071
        %v2073 = vpop.f32.mrf.mxu0
        %v2074 = vadd.f32 %v1698, %v2073
        %v2075 = vpop.f32.mrf.mxu0
        %v2076 = vadd.f32 %v1702, %v2075
        %2077 = vmatprep.mubr.bf16.mxu0 %v1675
        %2078 = vmatmul.mubr.bf16.gmra.mxu0 %v1674
        %v2079 = vpop.f32.mrf.mxu0
        %v2080 = vadd.f32 %v1698, %v2079
        %v2081 = vpop.f32.mrf.mxu0
        %v2082 = vadd.f32 %v1702, %v2081
        %v2083 = vpop.f32.mrf.mxu0
        %v2084 = vadd.f32 %v1698, %v2083
        %v2085 = vpop.f32.mrf.mxu0
        %v2086 = vadd.f32 %v1702, %v2085
        %2087 = vmatprep.mubr.bf16.mxu0 %v1679
        %2088 = vmatmul.mubr.bf16.gmra.mxu0 %v1678
        %v2089 = vpop.f32.mrf.mxu0
        %v2090 = vadd.f32 %v1698, %v2089
        %v2091 = vpop.f32.mrf.mxu0
        %v2092 = vadd.f32 %v1702, %v2091
        %v2093 = vpop.f32.mrf.mxu0
        %v2094 = vadd.f32 %v1698, %v2093
        %v2095 = vpop.f32.mrf.mxu0
        %v2096 = vadd.f32 %v1702, %v2095
        %2097 = vmatprep.mubr.bf16.mxu0 %v1683
        %2098 = vmatmul.mubr.bf16.gmra.mxu0 %v1682
        %v2099 = vpop.f32.mrf.mxu0
        %v2100 = vadd.f32 %v1698, %v2099
        %v2101 = vpop.f32.mrf.mxu0
        %v2102 = vadd.f32 %v1702, %v2101
        %v2103 = vpop.f32.mrf.mxu0
        %v2104 = vadd.f32 %v1698, %v2103
        %v2105 = vpop.f32.mrf.mxu0
        %v2106 = vadd.f32 %v1702, %v2105
        %2107 = vmatprep.mubr.bf16.mxu0 %v1687
        %2108 = vmatmul.mubr.bf16.gmra.mxu0 %v1686
        %v2109 = vpop.f32.mrf.mxu0
        %v2110 = vadd.f32 %v1698, %v2109
        %v2111 = vpop.f32.mrf.mxu0
        %v2112 = vadd.f32 %v1702, %v2111
        %v2113 = vpop.f32.mrf.mxu0
        %v2114 = vadd.f32 %v1698, %v2113
        %v2115 = vpop.f32.mrf.mxu0
        %v2116 = vadd.f32 %v1702, %v2115
        %2117 = vmatprep.mubr.bf16.mxu0 %v1691
        %2118 = vmatmul.mubr.bf16.gmra.mxu0 %v1690
        %v2119 = vpop.f32.mrf.mxu0
        %v2120 = vadd.f32 %v1698, %v2119
        %v2121 = vpop.f32.mrf.mxu0
        %v2122 = vadd.f32 %v1702, %v2121
        %v2123 = vpop.f32.mrf.mxu0
        %v2124 = vpop.f32.mrf.mxu0
        %2125 = vdwg.mxu0
        %2126 = vmatprep.subr.bf16.mxu0 %v1944
        %2127 = vmatpush1.bf16.msra.mxu0 %v1943
        %2128 = vmatprep.subr.bf16.mxu0 %v1942
        %2129 = vmatpush1.bf16.msra.mxu0 %v1941
        %2130 = vmatprep.subr.bf16.mxu0 %v1940
        %2131 = vmatpush1.bf16.msra.mxu0 %v1939
        %2132 = vmatprep.subr.bf16.mxu0 %v1938
        %2133 = vmatpush1.bf16.msra.mxu0 %v1937
        %2134 = vmatprep.subr.bf16.mxu0 %v1936
        %2135 = vmatpush1.bf16.msra.mxu0 %v1935
        %2136 = vmatprep.subr.bf16.mxu0 %v1934
        %2137 = vmatpush1.bf16.msra.mxu0 %v1933
        %2138 = vmatprep.subr.bf16.mxu0 %v1932
        %2139 = vmatpush1.bf16.msra.mxu0 %v1931
        %2140 = vmatprep.subr.bf16.mxu0 %v1930
        %2141 = vmatpush1.bf16.msra.mxu0 %v1929
        %2142 = vmatprep.subr.bf16.mxu0 %v1960
        %2143 = vmatpush2.bf16.msra.mxu0 %v1959
        %2144 = vmatprep.subr.bf16.mxu0 %v1958
        %2145 = vmatpush2.bf16.msra.mxu0 %v1957
        %2146 = vmatprep.subr.bf16.mxu0 %v1956
        %2147 = vmatpush2.bf16.msra.mxu0 %v1955
        %2148 = vmatprep.subr.bf16.mxu0 %v1954
        %2149 = vmatpush2.bf16.msra.mxu0 %v1953
        %2150 = vmatprep.subr.bf16.mxu0 %v1952
        %2151 = vmatpush2.bf16.msra.mxu0 %v1951
        %2152 = vmatprep.subr.bf16.mxu0 %v1950
        %2153 = vmatpush2.bf16.msra.mxu0 %v1949
        %2154 = vmatprep.subr.bf16.mxu0 %v1948
        %2155 = vmatpush2.bf16.msra.mxu0 %v1947
        %2156 = vmatprep.subr.bf16.mxu0 %v1946
        %2157 = vmatpush2.bf16.msra.mxu0 %v1945
        %2158 = vmatprep.mubr.bf16.mxu0 %v1669
        %2159 = vmatmul.mubr.bf16.gmra.mxu0 %v1668
        %v2160 = vpop.f32.mrf.mxu0
        %v2161 = vadd.f32 %v2060, %v2160
        %v2162 = vpop.f32.mrf.mxu0
        %v2163 = vadd.f32 %v2062, %v2162
        %v2164 = vpop.f32.mrf.mxu0
        %v2165 = vadd.f32 %v2064, %v2164
        %v2166 = vpop.f32.mrf.mxu0
        %v2167 = vadd.f32 %v2066, %v2166
        %2168 = vmatprep.mubr.bf16.mxu0 %v1673
        %2169 = vmatmul.mubr.bf16.gmra.mxu0 %v1672
        %v2170 = vpop.f32.mrf.mxu0
        %v2171 = vadd.f32 %v2070, %v2170
        %v2172 = vpop.f32.mrf.mxu0
        %v2173 = vadd.f32 %v2072, %v2172
        %v2174 = vpop.f32.mrf.mxu0
        %v2175 = vadd.f32 %v2074, %v2174
        %v2176 = vpop.f32.mrf.mxu0
        %v2177 = vadd.f32 %v2076, %v2176
        %2178 = vmatprep.mubr.bf16.mxu0 %v1677
        %2179 = vmatmul.mubr.bf16.gmra.mxu0 %v1676
        %v2180 = vpop.f32.mrf.mxu0
        %v2181 = vadd.f32 %v2080, %v2180
        %v2182 = vpop.f32.mrf.mxu0
        %v2183 = vadd.f32 %v2082, %v2182
        %v2184 = vpop.f32.mrf.mxu0
        %v2185 = vadd.f32 %v2084, %v2184
        %v2186 = vpop.f32.mrf.mxu0
        %v2187 = vadd.f32 %v2086, %v2186
        %2188 = vmatprep.mubr.bf16.mxu0 %v1681
        %2189 = vmatmul.mubr.bf16.gmra.mxu0 %v1680
        %v2190 = vpop.f32.mrf.mxu0
        %v2191 = vadd.f32 %v2090, %v2190
        %v2192 = vpop.f32.mrf.mxu0
        %v2193 = vadd.f32 %v2092, %v2192
        %v2194 = vpop.f32.mrf.mxu0
        %v2195 = vadd.f32 %v2094, %v2194
        %v2196 = vpop.f32.mrf.mxu0
        %v2197 = vadd.f32 %v2096, %v2196
        %2198 = vmatprep.mubr.bf16.mxu0 %v1685
        %2199 = vmatmul.mubr.bf16.gmra.mxu0 %v1684
        %v2200 = vpop.f32.mrf.mxu0
        %v2201 = vadd.f32 %v2100, %v2200
        %v2202 = vpop.f32.mrf.mxu0
        %v2203 = vadd.f32 %v2102, %v2202
        %v2204 = vpop.f32.mrf.mxu0
        %v2205 = vadd.f32 %v2104, %v2204
        %v2206 = vpop.f32.mrf.mxu0
        %v2207 = vadd.f32 %v2106, %v2206
        %2208 = vmatprep.mubr.bf16.mxu0 %v1689
        %2209 = vmatmul.mubr.bf16.gmra.mxu0 %v1688
        %v2210 = vpop.f32.mrf.mxu0
        %v2211 = vadd.f32 %v2110, %v2210
        %v2212 = vpop.f32.mrf.mxu0
        %v2213 = vadd.f32 %v2112, %v2212
        %v2214 = vpop.f32.mrf.mxu0
        %v2215 = vadd.f32 %v2114, %v2214
        %v2216 = vpop.f32.mrf.mxu0
        %v2217 = vadd.f32 %v2116, %v2216
        %2218 = vmatprep.mubr.bf16.mxu0 %v1693
        %2219 = vmatmul.mubr.bf16.gmra.mxu0 %v1692
        %v2220 = vpop.f32.mrf.mxu0
        %v2221 = vadd.f32 %v2120, %v2220
        %v2222 = vpop.f32.mrf.mxu0
        %v2223 = vadd.f32 %v2122, %v2222
        %v2224 = vpop.f32.mrf.mxu0
        %v2225 = vpop.f32.mrf.mxu0
        %2226 = vdwg.mxu0
        %v2227 = vadd.f32 %v2161, %v2163
        %2228 = vadd.xlane.f32.xlu0 %v2227
        %v2229 = vpop.xlane.xlu0 %2228
        %v2230 = vadd.f32 %v2165, %v2167
        %2231 = vadd.xlane.f32.xlu0 %v2230
        %v2232 = vpop.xlane.xlu0 %2231
        %v2233 = vadd.f32 %v2171, %v2173
        %2234 = vadd.xlane.f32.xlu0 %v2233
        %v2235 = vpop.xlane.xlu0 %2234
        %v2236 = vadd.f32 %v2175, %v2177
        %2237 = vadd.xlane.f32.xlu0 %v2236
        %v2238 = vpop.xlane.xlu0 %2237
        %v2239 = vadd.f32 %v2181, %v2183
        %2240 = vadd.xlane.f32.xlu0 %v2239
        %v2241 = vpop.xlane.xlu0 %2240
        %v2242 = vadd.f32 %v2185, %v2187
        %2243 = vadd.xlane.f32.xlu0 %v2242
        %v2244 = vpop.xlane.xlu0 %2243
        %v2245 = vadd.f32 %v2191, %v2193
        %2246 = vadd.xlane.f32.xlu0 %v2245
        %v2247 = vpop.xlane.xlu0 %2246
        %v2248 = vadd.f32 %v2195, %v2197
        %2249 = vadd.xlane.f32.xlu0 %v2248
        %v2250 = vpop.xlane.xlu0 %2249
        %v2251 = vadd.f32 %v2201, %v2203
        %2252 = vadd.xlane.f32.xlu0 %v2251
        %v2253 = vpop.xlane.xlu0 %2252
        %v2254 = vadd.f32 %v2205, %v2207
        %2255 = vadd.xlane.f32.xlu0 %v2254
        %v2256 = vpop.xlane.xlu0 %2255
        %v2257 = vadd.f32 %v2211, %v2213
        %2258 = vadd.xlane.f32.xlu0 %v2257
        %v2259 = vpop.xlane.xlu0 %2258
        %v2260 = vadd.f32 %v2215, %v2217
        %2261 = vadd.xlane.f32.xlu0 %v2260
        %v2262 = vpop.xlane.xlu0 %2261
        %v2263 = vadd.f32 %v2221, %v2223
        %2264 = vadd.xlane.f32.xlu0 %v2263
        %v2265 = vpop.xlane.xlu0 %2264
        %v2266 = vrcp.pop 256.0
        %v2267 = vmul.f32 %v2229, %v2266
        %v2268 = vmul.f32 %v2232, %v2266
        %v2269 = vmul.f32 %v2235, %v2266
        %v2270 = vmul.f32 %v2238, %v2266
        %v2271 = vmul.f32 %v2241, %v2266
        %v2272 = vmul.f32 %v2244, %v2266
        %v2273 = vmul.f32 %v2247, %v2266
        %v2274 = vmul.f32 %v2250, %v2266
        %v2275 = vmul.f32 %v2253, %v2266
        %v2276 = vmul.f32 %v2256, %v2266
        %v2277 = vmul.f32 %v2259, %v2266
        %v2278 = vmul.f32 %v2262, %v2266
        %v2279 = vmul.f32 %v2265, %v2266
        %v2280 = vsub.f32 %v2161, %v2267
        %v2281 = vsub.f32 %v2163, %v2267
        %v2282 = vsub.f32 %v2165, %v2268
        %v2283 = vsub.f32 %v2167, %v2268
        %v2284 = vsub.f32 %v2171, %v2269
        %v2285 = vsub.f32 %v2173, %v2269
        %v2286 = vsub.f32 %v2175, %v2270
        %v2287 = vsub.f32 %v2177, %v2270
        %v2288 = vsub.f32 %v2181, %v2271
        %v2289 = vsub.f32 %v2183, %v2271
        %v2290 = vsub.f32 %v2185, %v2272
        %v2291 = vsub.f32 %v2187, %v2272
        %v2292 = vsub.f32 %v2191, %v2273
        %v2293 = vsub.f32 %v2193, %v2273
        %v2294 = vsub.f32 %v2195, %v2274
        %v2295 = vsub.f32 %v2197, %v2274
        %v2296 = vsub.f32 %v2201, %v2275
        %v2297 = vsub.f32 %v2203, %v2275
        %v2298 = vsub.f32 %v2205, %v2276
        %v2299 = vsub.f32 %v2207, %v2276
        %v2300 = vsub.f32 %v2211, %v2277
        %v2301 = vsub.f32 %v2213, %v2277
        %v2302 = vsub.f32 %v2215, %v2278
        %v2303 = vsub.f32 %v2217, %v2278
        %v2304 = vsub.f32 %v2221, %v2279
        %v2305 = vsub.f32 %v2223, %v2279
        %v2306 = vmul.f32 %v2280, %v2280
        %v2307 = vmul.f32 %v2281, %v2281
        %v2308 = vmul.f32 %v2282, %v2282
        %v2309 = vmul.f32 %v2283, %v2283
        %v2310 = vmul.f32 %v2284, %v2284
        %v2311 = vmul.f32 %v2285, %v2285
        %v2312 = vmul.f32 %v2286, %v2286
        %v2313 = vmul.f32 %v2287, %v2287
        %v2314 = vmul.f32 %v2288, %v2288
        %v2315 = vmul.f32 %v2289, %v2289
        %v2316 = vmul.f32 %v2290, %v2290
        %v2317 = vmul.f32 %v2291, %v2291
        %v2318 = vmul.f32 %v2292, %v2292
        %v2319 = vmul.f32 %v2293, %v2293
        %v2320 = vmul.f32 %v2294, %v2294
        %v2321 = vmul.f32 %v2295, %v2295
        %v2322 = vmul.f32 %v2296, %v2296
        %v2323 = vmul.f32 %v2297, %v2297
        %v2324 = vmul.f32 %v2298, %v2298
        %v2325 = vmul.f32 %v2299, %v2299
        %v2326 = vmul.f32 %v2300, %v2300
        %v2327 = vmul.f32 %v2301, %v2301
        %v2328 = vmul.f32 %v2302, %v2302
        %v2329 = vmul.f32 %v2303, %v2303
        %v2330 = vmul.f32 %v2304, %v2304
        %v2331 = vmul.f32 %v2305, %v2305
        %v2332 = vadd.f32 %v2306, %v2307
        %2333 = vadd.xlane.f32.xlu0 %v2332
        %v2334 = vpop.xlane.xlu0 %2333
        %v2335 = vadd.f32 %v2308, %v2309
        %2336 = vadd.xlane.f32.xlu0 %v2335
        %v2337 = vpop.xlane.xlu0 %2336
        %v2338 = vadd.f32 %v2310, %v2311
        %2339 = vadd.xlane.f32.xlu0 %v2338
        %v2340 = vpop.xlane.xlu0 %2339
        %v2341 = vadd.f32 %v2312, %v2313
        %2342 = vadd.xlane.f32.xlu0 %v2341
        %v2343 = vpop.xlane.xlu0 %2342
        %v2344 = vadd.f32 %v2314, %v2315
        %2345 = vadd.xlane.f32.xlu0 %v2344
        %v2346 = vpop.xlane.xlu0 %2345
        %v2347 = vadd.f32 %v2316, %v2317
        %2348 = vadd.xlane.f32.xlu0 %v2347
        %v2349 = vpop.xlane.xlu0 %2348
        %v2350 = vadd.f32 %v2318, %v2319
        %2351 = vadd.xlane.f32.xlu0 %v2350
        %v2352 = vpop.xlane.xlu0 %2351
        %v2353 = vadd.f32 %v2320, %v2321
        %2354 = vadd.xlane.f32.xlu0 %v2353
        %v2355 = vpop.xlane.xlu0 %2354
        %v2356 = vadd.f32 %v2322, %v2323
        %2357 = vadd.xlane.f32.xlu0 %v2356
        %v2358 = vpop.xlane.xlu0 %2357
        %v2359 = vadd.f32 %v2324, %v2325
        %2360 = vadd.xlane.f32.xlu0 %v2359
        %v2361 = vpop.xlane.xlu0 %2360
        %v2362 = vadd.f32 %v2326, %v2327
        %2363 = vadd.xlane.f32.xlu0 %v2362
        %v2364 = vpop.xlane.xlu0 %2363
        %v2365 = vadd.f32 %v2328, %v2329
        %2366 = vadd.xlane.f32.xlu0 %v2365
        %v2367 = vpop.xlane.xlu0 %2366
        %v2368 = vadd.f32 %v2330, %v2331
        %2369 = vadd.xlane.f32.xlu0 %v2368
        %v2370 = vpop.xlane.xlu0 %2369
        %v2371 = vmul.f32 %v2334, %v2266
        %v2372 = vmul.f32 %v2337, %v2266
        %v2373 = vmul.f32 %v2340, %v2266
        %v2374 = vmul.f32 %v2343, %v2266
        %v2375 = vmul.f32 %v2346, %v2266
        %v2376 = vmul.f32 %v2349, %v2266
        %v2377 = vmul.f32 %v2352, %v2266
        %v2378 = vmul.f32 %v2355, %v2266
        %v2379 = vmul.f32 %v2358, %v2266
        %v2380 = vmul.f32 %v2361, %v2266
        %v2381 = vmul.f32 %v2364, %v2266
        %v2382 = vmul.f32 %v2367, %v2266
        %v2383 = vmul.f32 %v2370, %v2266
        %v2384 = vadd.f32 %v2371, 1e-05
        %v2385 = vadd.f32 %v2372, 1e-05
        %v2386 = vadd.f32 %v2373, 1e-05
        %v2387 = vadd.f32 %v2374, 1e-05
        %v2388 = vadd.f32 %v2375, 1e-05
        %v2389 = vadd.f32 %v2376, 1e-05
        %v2390 = vadd.f32 %v2377, 1e-05
        %v2391 = vadd.f32 %v2378, 1e-05
        %v2392 = vadd.f32 %v2379, 1e-05
        %v2393 = vadd.f32 %v2380, 1e-05
        %v2394 = vadd.f32 %v2381, 1e-05
        %v2395 = vadd.f32 %v2382, 1e-05
        %v2396 = vadd.f32 %v2383, 1e-05
        %v2397 = vrsqrt.pop %v2384
        %v2398 = vrsqrt.pop %v2385
        %v2399 = vrsqrt.pop %v2386
        %v2400 = vrsqrt.pop %v2387
        %v2401 = vrsqrt.pop %v2388
        %v2402 = vrsqrt.pop %v2389
        %v2403 = vrsqrt.pop %v2390
        %v2404 = vrsqrt.pop %v2391
        %v2405 = vrsqrt.pop %v2392
        %v2406 = vrsqrt.pop %v2393
        %v2407 = vrsqrt.pop %v2394
        %v2408 = vrsqrt.pop %v2395
        %v2409 = vrsqrt.pop %v2396
        %v2410 = vmul.f32 %v2280, %v2397
        %v2411 = vmul.f32 %v2281, %v2397
        %v2412 = vmul.f32 %v2282, %v2398
        %v2413 = vmul.f32 %v2283, %v2398
        %v2414 = vmul.f32 %v2284, %v2399
        %v2415 = vmul.f32 %v2285, %v2399
        %v2416 = vmul.f32 %v2286, %v2400
        %v2417 = vmul.f32 %v2287, %v2400
        %v2418 = vmul.f32 %v2288, %v2401
        %v2419 = vmul.f32 %v2289, %v2401
        %v2420 = vmul.f32 %v2290, %v2402
        %v2421 = vmul.f32 %v2291, %v2402
        %v2422 = vmul.f32 %v2292, %v2403
        %v2423 = vmul.f32 %v2293, %v2403
        %v2424 = vmul.f32 %v2294, %v2404
        %v2425 = vmul.f32 %v2295, %v2404
        %v2426 = vmul.f32 %v2296, %v2405
        %v2427 = vmul.f32 %v2297, %v2405
        %v2428 = vmul.f32 %v2298, %v2406
        %v2429 = vmul.f32 %v2299, %v2406
        %v2430 = vmul.f32 %v2300, %v2407
        %v2431 = vmul.f32 %v2301, %v2407
        %v2432 = vmul.f32 %v2302, %v2408
        %v2433 = vmul.f32 %v2303, %v2408
        %v2434 = vmul.f32 %v2304, %v2409
        %v2435 = vmul.f32 %v2305, %v2409
        %v2437 = vlaneseq
        %v2438 = vshrl.u32 %v2437, 7
        %v2439 = vsub.s32 0, %v2438
        %v2440 = vrot.slane %v1664, %v2439
        %v2441 = vlaneseq
        %v2442 = vshrl.u32 %v2441, 7
        %v2443 = vsub.s32 1, %v2442
        %v2444 = vrot.slane %v1664, %v2443
        %v2447 = vmul.f32 %v2410, %v2440
        %v2448 = vmul.f32 %v2411, %v2444
        %v2449 = vmul.f32 %v2412, %v2440
        %v2450 = vmul.f32 %v2413, %v2444
        %v2451 = vmul.f32 %v2414, %v2440
        %v2452 = vmul.f32 %v2415, %v2444
        %v2453 = vmul.f32 %v2416, %v2440
        %v2454 = vmul.f32 %v2417, %v2444
        %v2455 = vmul.f32 %v2418, %v2440
        %v2456 = vmul.f32 %v2419, %v2444
        %v2457 = vmul.f32 %v2420, %v2440
        %v2458 = vmul.f32 %v2421, %v2444
        %v2459 = vmul.f32 %v2422, %v2440
        %v2460 = vmul.f32 %v2423, %v2444
        %v2461 = vmul.f32 %v2424, %v2440
        %v2462 = vmul.f32 %v2425, %v2444
        %v2463 = vmul.f32 %v2426, %v2440
        %v2464 = vmul.f32 %v2427, %v2444
        %v2465 = vmul.f32 %v2428, %v2440
        %v2466 = vmul.f32 %v2429, %v2444
        %v2467 = vmul.f32 %v2430, %v2440
        %v2468 = vmul.f32 %v2431, %v2444
        %v2469 = vmul.f32 %v2432, %v2440
        %v2470 = vmul.f32 %v2433, %v2444
        %v2471 = vmul.f32 %v2434, %v2440
        %v2472 = vmul.f32 %v2435, %v2444
        %v2474 = vlaneseq
        %v2475 = vshrl.u32 %v2474, 7
        %v2476 = vsub.s32 0, %v2475
        %v2477 = vrot.slane %v1665, %v2476
        %v2478 = vlaneseq
        %v2479 = vshrl.u32 %v2478, 7
        %v2480 = vsub.s32 1, %v2479
        %v2481 = vrot.slane %v1665, %v2480
        %v2484 = vadd.f32 %v2447, %v2477
        %v2485 = vadd.f32 %v2448, %v2481
        %v2486 = vadd.f32 %v2449, %v2477
        %v2487 = vadd.f32 %v2450, %v2481
        %v2488 = vadd.f32 %v2451, %v2477
        %v2489 = vadd.f32 %v2452, %v2481
        %v2490 = vadd.f32 %v2453, %v2477
        %v2491 = vadd.f32 %v2454, %v2481
        %v2492 = vadd.f32 %v2455, %v2477
        %v2493 = vadd.f32 %v2456, %v2481
        %v2494 = vadd.f32 %v2457, %v2477
        %v2495 = vadd.f32 %v2458, %v2481
        %v2496 = vadd.f32 %v2459, %v2477
        %v2497 = vadd.f32 %v2460, %v2481
        %v2498 = vadd.f32 %v2461, %v2477
        %v2499 = vadd.f32 %v2462, %v2481
        %v2500 = vadd.f32 %v2463, %v2477
        %v2501 = vadd.f32 %v2464, %v2481
        %v2502 = vadd.f32 %v2465, %v2477
        %v2503 = vadd.f32 %v2466, %v2481
        %v2504 = vadd.f32 %v2467, %v2477
        %v2505 = vadd.f32 %v2468, %v2481
        %v2506 = vadd.f32 %v2469, %v2477
        %v2507 = vadd.f32 %v2470, %v2481
        %v2508 = vadd.f32 %v2471, %v2477
        %v2509 = vadd.f32 %v2472, %v2481
        %v2510 = vmul.f32 %v2484, 0.01
        %v2511 = vmul.f32 %v2485, 0.01
        %v2512 = vmul.f32 %v2486, 0.01
        %v2513 = vmul.f32 %v2487, 0.01
        %v2514 = vmul.f32 %v2488, 0.01
        %v2515 = vmul.f32 %v2489, 0.01
        %v2516 = vmul.f32 %v2490, 0.01
        %v2517 = vmul.f32 %v2491, 0.01
        %v2518 = vmul.f32 %v2492, 0.01
        %v2519 = vmul.f32 %v2493, 0.01
        %v2520 = vmul.f32 %v2494, 0.01
        %v2521 = vmul.f32 %v2495, 0.01
        %v2522 = vmul.f32 %v2496, 0.01
        %v2523 = vmul.f32 %v2497, 0.01
        %v2524 = vmul.f32 %v2498, 0.01
        %v2525 = vmul.f32 %v2499, 0.01
        %v2526 = vmul.f32 %v2500, 0.01
        %v2527 = vmul.f32 %v2501, 0.01
        %v2528 = vmul.f32 %v2502, 0.01
        %v2529 = vmul.f32 %v2503, 0.01
        %v2530 = vmul.f32 %v2504, 0.01
        %v2531 = vmul.f32 %v2505, 0.01
        %v2532 = vmul.f32 %v2506, 0.01
        %v2533 = vmul.f32 %v2507, 0.01
        %v2534 = vmul.f32 %v2508, 0.01
        %v2535 = vmul.f32 %v2509, 0.01
        %v2536 = vmax.f32 %v2484, %v2510
        %v2537 = vmax.f32 %v2485, %v2511
        %v2538 = vmax.f32 %v2486, %v2512
        %v2539 = vmax.f32 %v2487, %v2513
        %v2540 = vmax.f32 %v2488, %v2514
        %v2541 = vmax.f32 %v2489, %v2515
        %v2542 = vmax.f32 %v2490, %v2516
        %v2543 = vmax.f32 %v2491, %v2517
        %v2544 = vmax.f32 %v2492, %v2518
        %v2545 = vmax.f32 %v2493, %v2519
        %v2546 = vmax.f32 %v2494, %v2520
        %v2547 = vmax.f32 %v2495, %v2521
        %v2548 = vmax.f32 %v2496, %v2522
        %v2549 = vmax.f32 %v2497, %v2523
        %v2550 = vmax.f32 %v2498, %v2524
        %v2551 = vmax.f32 %v2499, %v2525
        %v2552 = vmax.f32 %v2500, %v2526
        %v2553 = vmax.f32 %v2501, %v2527
        %v2554 = vmax.f32 %v2502, %v2528
        %v2555 = vmax.f32 %v2503, %v2529
        %v2556 = vmax.f32 %v2504, %v2530
        %v2557 = vmax.f32 %v2505, %v2531
        %v2558 = vmax.f32 %v2506, %v2532
        %v2559 = vmax.f32 %v2507, %v2533
        %v2560 = vmax.f32 %v2508, %v2534
        %v2561 = vmax.f32 %v2509, %v2535
        %v2562 = vld [vmem:[%s9] sm:$0xf]
        %v2563 = vld [vmem:[%s9 + $0x4] sm:$0xf]
        %v2564 = vld [vmem:[%s9 + $0x8] sm:$0xf]
        %v2565 = vld [vmem:[%s9 + $0xc] sm:$0xf]
        %v2566 = vld [vmem:[%s9 + $0x10] sm:$0xf]
        %v2567 = vld [vmem:[%s9 + $0x14] sm:$0xf]
        %v2568 = vld [vmem:[%s9 + $0x18] sm:$0xf]
        %v2569 = vld [vmem:[%s9 + $0x1c] sm:$0xf]
        %v2570 = vld [vmem:[%s9 + $0x20] sm:$0xf]
        %v2571 = vld [vmem:[%s9 + $0x24] sm:$0xf]
        %v2572 = vld [vmem:[%s9 + $0x28] sm:$0xf]
        %v2573 = vld [vmem:[%s9 + $0x2c] sm:$0xf]
        %v2574 = vld [vmem:[%s9 + $0x30] sm:$0xf]
        %v2575 = vld [vmem:[%s9 + $0x34] sm:$0xf]
        %v2576 = vld [vmem:[%s9 + $0x38] sm:$0xf]
        %v2577 = vld [vmem:[%s9 + $0x3c] sm:$0xf]
        %v2578 = vld [vmem:[%s9 + $0x40] sm:$0xf]
        %v2579 = vld [vmem:[%s9 + $0x44] sm:$0xf]
        %v2580 = vld [vmem:[%s9 + $0x48] sm:$0xf]
        %v2581 = vld [vmem:[%s9 + $0x4c] sm:$0xf]
        %v2582 = vld [vmem:[%s9 + $0x50] sm:$0xf]
        %v2583 = vld [vmem:[%s9 + $0x54] sm:$0xf]
        %v2584 = vld [vmem:[%s9 + $0x58] sm:$0xf]
        %v2585 = vld [vmem:[%s9 + $0x5c] sm:$0xf]
        %v2586 = vld [vmem:[%s9 + $0x60] sm:$0xf]
        %v2587 = vld [vmem:[%s9 + $0x64] sm:$0xf]
        %v2588 = vld [vmem:[%s9 + $0x68] sm:$0xf]
        %v2589 = vld [vmem:[%s9 + $0x6c] sm:$0xf]
        %v2590 = vld [vmem:[%s9 + $0x70] sm:$0xf]
        %v2591 = vld [vmem:[%s9 + $0x74] sm:$0xf]
        %v2592 = vld [vmem:[%s9 + $0x78] sm:$0xf]
        %v2593 = vld [vmem:[%s9 + $0x7c] sm:$0xf]
        %v2594 = vld [vmem:[%s10] sm:$0x1]
        %v2595 = vld [vmem:[%s11] sm:$0x1]
        %v2596 = vld [vmem:[%s12] sm:$0x1]
        %v2597 = vpack.c.bf16 %v2538, %v2536
        %v2598 = vpack.c.bf16 %v2539, %v2537
        %v2599 = vpack.c.bf16 %v2542, %v2540
        %v2600 = vpack.c.bf16 %v2543, %v2541
        %v2601 = vpack.c.bf16 %v2546, %v2544
        %v2602 = vpack.c.bf16 %v2547, %v2545
        %v2603 = vpack.c.bf16 %v2550, %v2548
        %v2604 = vpack.c.bf16 %v2551, %v2549
        %v2605 = vpack.c.bf16 %v2554, %v2552
        %v2606 = vpack.c.bf16 %v2555, %v2553
        %v2607 = vpack.c.bf16 %v2558, %v2556
        %v2608 = vpack.c.bf16 %v2559, %v2557
        %v2609 = vpack.c.bf16 %v2560, %v2560
        %v2610 = vpack.c.bf16 %v2561, %v2561
        %v2612 = vlaneseq
        %v2613 = vshrl.u32 %v2612, 7
        %v2614 = vsub.s32 0, %v2613
        %v2615 = vrot.slane %v2594, %v2614
        %v2649 = vunpack.c.l.b16 %v2562
        %v2650 = vunpack.c.l.b16 %v2563
        %v2651 = vunpack.c.l.b16 %v2564
        %v2652 = vunpack.c.l.b16 %v2565
        %v2653 = vunpack.c.l.b16 %v2566
        %v2654 = vunpack.c.l.b16 %v2567
        %v2655 = vunpack.c.l.b16 %v2568
        %v2656 = vunpack.c.l.b16 %v2569
        %v2657 = vunpack.c.l.b16 %v2570
        %v2658 = vunpack.c.l.b16 %v2571
        %v2659 = vunpack.c.l.b16 %v2572
        %v2660 = vunpack.c.l.b16 %v2573
        %v2661 = vunpack.c.l.b16 %v2574
        %v2662 = vunpack.c.l.b16 %v2575
        %v2663 = vunpack.c.l.b16 %v2576
        %v2664 = vunpack.c.l.b16 %v2577
        %v2665 = vunpack.c.l.b16 %v2578
        %v2666 = vunpack.c.l.b16 %v2579
        %v2667 = vunpack.c.l.b16 %v2580
        %v2668 = vunpack.c.l.b16 %v2581
        %v2669 = vunpack.c.l.b16 %v2582
        %v2670 = vunpack.c.l.b16 %v2583
        %v2671 = vunpack.c.l.b16 %v2584
        %v2672 = vunpack.c.l.b16 %v2585
        %v2673 = vunpack.c.l.b16 %v2586
        %v2674 = vunpack.c.l.b16 %v2587
        %v2675 = vunpack.c.l.b16 %v2588
        %v2676 = vunpack.c.l.b16 %v2589
        %v2677 = vunpack.c.l.b16 %v2590
        %v2678 = vunpack.c.l.b16 %v2591
        %v2679 = vunpack.c.l.b16 %v2592
        %v2680 = vunpack.c.l.b16 %v2593
        %v2681 = vpack.c.b16 %v2650, %v2649
        %v2682 = vpack.c.b16 %v2652, %v2651
        %v2683 = vpack.c.b16 %v2654, %v2653
        %v2684 = vpack.c.b16 %v2656, %v2655
        %v2685 = vpack.c.b16 %v2658, %v2657
        %v2686 = vpack.c.b16 %v2660, %v2659
        %v2687 = vpack.c.b16 %v2662, %v2661
        %v2688 = vpack.c.b16 %v2664, %v2663
        %v2689 = vpack.c.b16 %v2666, %v2665
        %v2690 = vpack.c.b16 %v2668, %v2667
        %v2691 = vpack.c.b16 %v2670, %v2669
        %v2692 = vpack.c.b16 %v2672, %v2671
        %v2693 = vpack.c.b16 %v2674, %v2673
        %v2694 = vpack.c.b16 %v2676, %v2675
        %v2695 = vpack.c.b16 %v2678, %v2677
        %v2696 = vpack.c.b16 %v2680, %v2679
        %2713 = vmatprep.subr.bf16.mxu0 0
        %2714 = vmatpush1.bf16.msra.mxu0 %v2688
        %2715 = vmatprep.subr.bf16.mxu0 0
        %2716 = vmatpush1.bf16.msra.mxu0 %v2687
        %2717 = vmatprep.subr.bf16.mxu0 0
        %2718 = vmatpush1.bf16.msra.mxu0 %v2686
        %2719 = vmatprep.subr.bf16.mxu0 0
        %2720 = vmatpush1.bf16.msra.mxu0 %v2685
        %2721 = vmatprep.subr.bf16.mxu0 0
        %2722 = vmatpush1.bf16.msra.mxu0 %v2684
        %2723 = vmatprep.subr.bf16.mxu0 0
        %2724 = vmatpush1.bf16.msra.mxu0 %v2683
        %2725 = vmatprep.subr.bf16.mxu0 0
        %2726 = vmatpush1.bf16.msra.mxu0 %v2682
        %2727 = vmatprep.subr.bf16.mxu0 0
        %2728 = vmatpush1.bf16.msra.mxu0 %v2681
        %2729 = vmatprep.subr.bf16.mxu0 0
        %2730 = vmatpush2.bf16.msra.mxu0 %v2696
        %2731 = vmatprep.subr.bf16.mxu0 0
        %2732 = vmatpush2.bf16.msra.mxu0 %v2695
        %2733 = vmatprep.subr.bf16.mxu0 0
        %2734 = vmatpush2.bf16.msra.mxu0 %v2694
        %2735 = vmatprep.subr.bf16.mxu0 0
        %2736 = vmatpush2.bf16.msra.mxu0 %v2693
        %2737 = vmatprep.subr.bf16.mxu0 0
        %2738 = vmatpush2.bf16.msra.mxu0 %v2692
        %2739 = vmatprep.subr.bf16.mxu0 0
        %2740 = vmatpush2.bf16.msra.mxu0 %v2691
        %2741 = vmatprep.subr.bf16.mxu0 0
        %2742 = vmatpush2.bf16.msra.mxu0 %v2690
        %2743 = vmatprep.subr.bf16.mxu0 0
        %2744 = vmatpush2.bf16.msra.mxu0 %v2689
        %2745 = vmatprep.mubr.bf16.mxu0 %v2598
        %2746 = vmatmul.mubr.bf16.gmra.mxu0 %v2597
        %v2747 = vpop.f32.mrf.mxu0
        %v2748 = vadd.f32 %v2615, %v2747
        %v2749 = vpop.f32.mrf.mxu0
        %v2750 = vpop.f32.mrf.mxu0
        %v2751 = vadd.f32 %v2615, %v2750
        %v2752 = vpop.f32.mrf.mxu0
        %2753 = vmatprep.mubr.bf16.mxu0 %v2600
        %2754 = vmatmul.mubr.bf16.gmra.mxu0 %v2599
        %v2755 = vpop.f32.mrf.mxu0
        %v2756 = vadd.f32 %v2615, %v2755
        %v2757 = vpop.f32.mrf.mxu0
        %v2758 = vpop.f32.mrf.mxu0
        %v2759 = vadd.f32 %v2615, %v2758
        %v2760 = vpop.f32.mrf.mxu0
        %2761 = vmatprep.mubr.bf16.mxu0 %v2602
        %2762 = vmatmul.mubr.bf16.gmra.mxu0 %v2601
        %v2763 = vpop.f32.mrf.mxu0
        %v2764 = vadd.f32 %v2615, %v2763
        %v2765 = vpop.f32.mrf.mxu0
        %v2766 = vpop.f32.mrf.mxu0
        %v2767 = vadd.f32 %v2615, %v2766
        %v2768 = vpop.f32.mrf.mxu0
        %2769 = vmatprep.mubr.bf16.mxu0 %v2604
        %2770 = vmatmul.mubr.bf16.gmra.mxu0 %v2603
        %v2771 = vpop.f32.mrf.mxu0
        %v2772 = vadd.f32 %v2615, %v2771
        %v2773 = vpop.f32.mrf.mxu0
        %v2774 = vpop.f32.mrf.mxu0
        %v2775 = vadd.f32 %v2615, %v2774
        %v2776 = vpop.f32.mrf.mxu0
        %2777 = vmatprep.mubr.bf16.mxu0 %v2606
        %2778 = vmatmul.mubr.bf16.gmra.mxu0 %v2605
        %v2779 = vpop.f32.mrf.mxu0
        %v2780 = vadd.f32 %v2615, %v2779
        %v2781 = vpop.f32.mrf.mxu0
        %v2782 = vpop.f32.mrf.mxu0
        %v2783 = vadd.f32 %v2615, %v2782
        %v2784 = vpop.f32.mrf.mxu0
        %2785 = vmatprep.mubr.bf16.mxu0 %v2608
        %2786 = vmatmul.mubr.bf16.gmra.mxu0 %v2607
        %v2787 = vpop.f32.mrf.mxu0
        %v2788 = vadd.f32 %v2615, %v2787
        %v2789 = vpop.f32.mrf.mxu0
        %v2790 = vpop.f32.mrf.mxu0
        %v2791 = vadd.f32 %v2615, %v2790
        %v2792 = vpop.f32.mrf.mxu0
        %2793 = vmatprep.mubr.bf16.mxu0 %v2610
        %2794 = vmatmul.mubr.bf16.gmra.mxu0 %v2609
        %v2795 = vpop.f32.mrf.mxu0
        %v2796 = vadd.f32 %v2615, %v2795
        %v2797 = vpop.f32.mrf.mxu0
        %v2798 = vpop.f32.mrf.mxu0
        %v2799 = vpop.f32.mrf.mxu0
        %2800 = vdwg.mxu0
        %vm2801 = vcmask 523264
        %v2802 = vsel %vm2801, %v2748, 0.0
        %2803 = vadd.xlane.f32.xlu0 %v2802
        %v2804 = vpop.xlane.xlu0 %2803
        %v2805 = vsel %vm2801, %v2751, 0.0
        %2806 = vadd.xlane.f32.xlu0 %v2805
        %v2807 = vpop.xlane.xlu0 %2806
        %v2808 = vsel %vm2801, %v2756, 0.0
        %2809 = vadd.xlane.f32.xlu0 %v2808
        %v2810 = vpop.xlane.xlu0 %2809
        %v2811 = vsel %vm2801, %v2759, 0.0
        %2812 = vadd.xlane.f32.xlu0 %v2811
        %v2813 = vpop.xlane.xlu0 %2812
        %v2814 = vsel %vm2801, %v2764, 0.0
        %2815 = vadd.xlane.f32.xlu0 %v2814
        %v2816 = vpop.xlane.xlu0 %2815
        %v2817 = vsel %vm2801, %v2767, 0.0
        %2818 = vadd.xlane.f32.xlu0 %v2817
        %v2819 = vpop.xlane.xlu0 %2818
        %v2820 = vsel %vm2801, %v2772, 0.0
        %2821 = vadd.xlane.f32.xlu0 %v2820
        %v2822 = vpop.xlane.xlu0 %2821
        %v2823 = vsel %vm2801, %v2775, 0.0
        %2824 = vadd.xlane.f32.xlu0 %v2823
        %v2825 = vpop.xlane.xlu0 %2824
        %v2826 = vsel %vm2801, %v2780, 0.0
        %2827 = vadd.xlane.f32.xlu0 %v2826
        %v2828 = vpop.xlane.xlu0 %2827
        %v2829 = vsel %vm2801, %v2783, 0.0
        %2830 = vadd.xlane.f32.xlu0 %v2829
        %v2831 = vpop.xlane.xlu0 %2830
        %v2832 = vsel %vm2801, %v2788, 0.0
        %2833 = vadd.xlane.f32.xlu0 %v2832
        %v2834 = vpop.xlane.xlu0 %2833
        %v2835 = vsel %vm2801, %v2791, 0.0
        %2836 = vadd.xlane.f32.xlu0 %v2835
        %v2837 = vpop.xlane.xlu0 %2836
        %v2838 = vsel %vm2801, %v2796, 0.0
        %2839 = vadd.xlane.f32.xlu0 %v2838
        %v2840 = vpop.xlane.xlu0 %2839
        %v2841 = vrcp.pop 64.0
        %v2842 = vmul.f32 %v2804, %v2841
        %v2843 = vmul.f32 %v2807, %v2841
        %v2844 = vmul.f32 %v2810, %v2841
        %v2845 = vmul.f32 %v2813, %v2841
        %v2846 = vmul.f32 %v2816, %v2841
        %v2847 = vmul.f32 %v2819, %v2841
        %v2848 = vmul.f32 %v2822, %v2841
        %v2849 = vmul.f32 %v2825, %v2841
        %v2850 = vmul.f32 %v2828, %v2841
        %v2851 = vmul.f32 %v2831, %v2841
        %v2852 = vmul.f32 %v2834, %v2841
        %v2853 = vmul.f32 %v2837, %v2841
        %v2854 = vmul.f32 %v2840, %v2841
        %v2855 = vsub.f32 %v2748, %v2842
        %v2856 = vsub.f32 %v2751, %v2843
        %v2857 = vsub.f32 %v2756, %v2844
        %v2858 = vsub.f32 %v2759, %v2845
        %v2859 = vsub.f32 %v2764, %v2846
        %v2860 = vsub.f32 %v2767, %v2847
        %v2861 = vsub.f32 %v2772, %v2848
        %v2862 = vsub.f32 %v2775, %v2849
        %v2863 = vsub.f32 %v2780, %v2850
        %v2864 = vsub.f32 %v2783, %v2851
        %v2865 = vsub.f32 %v2788, %v2852
        %v2866 = vsub.f32 %v2791, %v2853
        %v2867 = vsub.f32 %v2796, %v2854
        %v2868 = vmul.f32 %v2855, %v2855
        %v2869 = vmul.f32 %v2856, %v2856
        %v2870 = vmul.f32 %v2857, %v2857
        %v2871 = vmul.f32 %v2858, %v2858
        %v2872 = vmul.f32 %v2859, %v2859
        %v2873 = vmul.f32 %v2860, %v2860
        %v2874 = vmul.f32 %v2861, %v2861
        %v2875 = vmul.f32 %v2862, %v2862
        %v2876 = vmul.f32 %v2863, %v2863
        %v2877 = vmul.f32 %v2864, %v2864
        %v2878 = vmul.f32 %v2865, %v2865
        %v2879 = vmul.f32 %v2866, %v2866
        %v2880 = vmul.f32 %v2867, %v2867
        %v2881 = vsel %vm2801, %v2868, 0.0
        %2882 = vadd.xlane.f32.xlu0 %v2881
        %v2883 = vpop.xlane.xlu0 %2882
        %v2884 = vsel %vm2801, %v2869, 0.0
        %2885 = vadd.xlane.f32.xlu0 %v2884
        %v2886 = vpop.xlane.xlu0 %2885
        %v2887 = vsel %vm2801, %v2870, 0.0
        %2888 = vadd.xlane.f32.xlu0 %v2887
        %v2889 = vpop.xlane.xlu0 %2888
        %v2890 = vsel %vm2801, %v2871, 0.0
        %2891 = vadd.xlane.f32.xlu0 %v2890
        %v2892 = vpop.xlane.xlu0 %2891
        %v2893 = vsel %vm2801, %v2872, 0.0
        %2894 = vadd.xlane.f32.xlu0 %v2893
        %v2895 = vpop.xlane.xlu0 %2894
        %v2896 = vsel %vm2801, %v2873, 0.0
        %2897 = vadd.xlane.f32.xlu0 %v2896
        %v2898 = vpop.xlane.xlu0 %2897
        %v2899 = vsel %vm2801, %v2874, 0.0
        %2900 = vadd.xlane.f32.xlu0 %v2899
        %v2901 = vpop.xlane.xlu0 %2900
        %v2902 = vsel %vm2801, %v2875, 0.0
        %2903 = vadd.xlane.f32.xlu0 %v2902
        %v2904 = vpop.xlane.xlu0 %2903
        %v2905 = vsel %vm2801, %v2876, 0.0
        %2906 = vadd.xlane.f32.xlu0 %v2905
        %v2907 = vpop.xlane.xlu0 %2906
        %v2908 = vsel %vm2801, %v2877, 0.0
        %2909 = vadd.xlane.f32.xlu0 %v2908
        %v2910 = vpop.xlane.xlu0 %2909
        %v2911 = vsel %vm2801, %v2878, 0.0
        %2912 = vadd.xlane.f32.xlu0 %v2911
        %v2913 = vpop.xlane.xlu0 %2912
        %v2914 = vsel %vm2801, %v2879, 0.0
        %2915 = vadd.xlane.f32.xlu0 %v2914
        %v2916 = vpop.xlane.xlu0 %2915
        %v2917 = vsel %vm2801, %v2880, 0.0
        %2918 = vadd.xlane.f32.xlu0 %v2917
        %v2919 = vpop.xlane.xlu0 %2918
        %v2920 = vmul.f32 %v2883, %v2841
        %v2921 = vmul.f32 %v2886, %v2841
        %v2922 = vmul.f32 %v2889, %v2841
        %v2923 = vmul.f32 %v2892, %v2841
        %v2924 = vmul.f32 %v2895, %v2841
        %v2925 = vmul.f32 %v2898, %v2841
        %v2926 = vmul.f32 %v2901, %v2841
        %v2927 = vmul.f32 %v2904, %v2841
        %v2928 = vmul.f32 %v2907, %v2841
        %v2929 = vmul.f32 %v2910, %v2841
        %v2930 = vmul.f32 %v2913, %v2841
        %v2931 = vmul.f32 %v2916, %v2841
        %v2932 = vmul.f32 %v2919, %v2841
        %v2933 = vadd.f32 %v2920, 1e-05
        %v2934 = vadd.f32 %v2921, 1e-05
        %v2935 = vadd.f32 %v2922, 1e-05
        %v2936 = vadd.f32 %v2923, 1e-05
        %v2937 = vadd.f32 %v2924, 1e-05
        %v2938 = vadd.f32 %v2925, 1e-05
        %v2939 = vadd.f32 %v2926, 1e-05
        %v2940 = vadd.f32 %v2927, 1e-05
        %v2941 = vadd.f32 %v2928, 1e-05
        %v2942 = vadd.f32 %v2929, 1e-05
        %v2943 = vadd.f32 %v2930, 1e-05
        %v2944 = vadd.f32 %v2931, 1e-05
        %v2945 = vadd.f32 %v2932, 1e-05
        %v2946 = vrsqrt.pop %v2933
        %v2947 = vrsqrt.pop %v2934
        %v2948 = vrsqrt.pop %v2935
        %v2949 = vrsqrt.pop %v2936
        %v2950 = vrsqrt.pop %v2937
        %v2951 = vrsqrt.pop %v2938
        %v2952 = vrsqrt.pop %v2939
        %v2953 = vrsqrt.pop %v2940
        %v2954 = vrsqrt.pop %v2941
        %v2955 = vrsqrt.pop %v2942
        %v2956 = vrsqrt.pop %v2943
        %v2957 = vrsqrt.pop %v2944
        %v2958 = vrsqrt.pop %v2945
        %v2959 = vmul.f32 %v2855, %v2946
        %v2960 = vmul.f32 %v2856, %v2947
        %v2961 = vmul.f32 %v2857, %v2948
        %v2962 = vmul.f32 %v2858, %v2949
        %v2963 = vmul.f32 %v2859, %v2950
        %v2964 = vmul.f32 %v2860, %v2951
        %v2965 = vmul.f32 %v2861, %v2952
        %v2966 = vmul.f32 %v2862, %v2953
        %v2967 = vmul.f32 %v2863, %v2954
        %v2968 = vmul.f32 %v2864, %v2955
        %v2969 = vmul.f32 %v2865, %v2956
        %v2970 = vmul.f32 %v2866, %v2957
        %v2971 = vmul.f32 %v2867, %v2958
        %v2973 = vlaneseq
        %v2974 = vshrl.u32 %v2973, 7
        %v2975 = vsub.s32 0, %v2974
        %v2976 = vrot.slane %v2595, %v2975
        %v2978 = vmul.f32 %v2959, %v2976
        %v2979 = vmul.f32 %v2960, %v2976
        %v2980 = vmul.f32 %v2961, %v2976
        %v2981 = vmul.f32 %v2962, %v2976
        %v2982 = vmul.f32 %v2963, %v2976
        %v2983 = vmul.f32 %v2964, %v2976
        %v2984 = vmul.f32 %v2965, %v2976
        %v2985 = vmul.f32 %v2966, %v2976
        %v2986 = vmul.f32 %v2967, %v2976
        %v2987 = vmul.f32 %v2968, %v2976
        %v2988 = vmul.f32 %v2969, %v2976
        %v2989 = vmul.f32 %v2970, %v2976
        %v2990 = vmul.f32 %v2971, %v2976
        %v2992 = vlaneseq
        %v2993 = vshrl.u32 %v2992, 7
        %v2994 = vsub.s32 0, %v2993
        %v2995 = vrot.slane %v2596, %v2994
        %v2997 = vadd.f32 %v2978, %v2995
        %v2998 = vadd.f32 %v2979, %v2995
        %v2999 = vadd.f32 %v2980, %v2995
        %v3000 = vadd.f32 %v2981, %v2995
        %v3001 = vadd.f32 %v2982, %v2995
        %v3002 = vadd.f32 %v2983, %v2995
        %v3003 = vadd.f32 %v2984, %v2995
        %v3004 = vadd.f32 %v2985, %v2995
        %v3005 = vadd.f32 %v2986, %v2995
        %v3006 = vadd.f32 %v2987, %v2995
        %v3007 = vadd.f32 %v2988, %v2995
        %v3008 = vadd.f32 %v2989, %v2995
        %v3009 = vadd.f32 %v2990, %v2995
        %v3010 = vmul.f32 %v2997, 0.01
        %v3011 = vmul.f32 %v2998, 0.01
        %v3012 = vmul.f32 %v2999, 0.01
        %v3013 = vmul.f32 %v3000, 0.01
        %v3014 = vmul.f32 %v3001, 0.01
        %v3015 = vmul.f32 %v3002, 0.01
        %v3016 = vmul.f32 %v3003, 0.01
        %v3017 = vmul.f32 %v3004, 0.01
        %v3018 = vmul.f32 %v3005, 0.01
        %v3019 = vmul.f32 %v3006, 0.01
        %v3020 = vmul.f32 %v3007, 0.01
        %v3021 = vmul.f32 %v3008, 0.01
        %v3022 = vmul.f32 %v3009, 0.01
        %v3023 = vmax.f32 %v2997, %v3010
        %v3024 = vmax.f32 %v2998, %v3011
        %v3025 = vmax.f32 %v2999, %v3012
        %v3026 = vmax.f32 %v3000, %v3013
        %v3027 = vmax.f32 %v3001, %v3014
        %v3028 = vmax.f32 %v3002, %v3015
        %v3029 = vmax.f32 %v3003, %v3016
        %v3030 = vmax.f32 %v3004, %v3017
        %v3031 = vmax.f32 %v3005, %v3018
        %v3032 = vmax.f32 %v3006, %v3019
        %v3033 = vmax.f32 %v3007, %v3020
        %v3034 = vmax.f32 %v3008, %v3021
        %v3035 = vmax.f32 %v3009, %v3022
        %v3036 = vld [vmem:[%s13] sm:$0xf]
        %v3037 = vld [vmem:[%s13 + $0x4] sm:$0xf]
        %v3038 = vld [vmem:[%s13 + $0x8] sm:$0xf]
        %v3039 = vld [vmem:[%s13 + $0xc] sm:$0xf]
        %v3040 = vld [vmem:[%s13 + $0x10] sm:$0xf]
        %v3041 = vld [vmem:[%s13 + $0x14] sm:$0xf]
        %v3042 = vld [vmem:[%s13 + $0x18] sm:$0xf]
        %v3043 = vld [vmem:[%s13 + $0x1c] sm:$0xf]
        %v3044 = vpack.c.bf16 %v3024, %v3023
        %v3045 = vpack.c.bf16 %v3026, %v3025
        %v3046 = vpack.c.bf16 %v3028, %v3027
        %v3047 = vpack.c.bf16 %v3030, %v3029
        %v3048 = vpack.c.bf16 %v3032, %v3031
        %v3049 = vpack.c.bf16 %v3034, %v3033
        %v3050 = vpack.c.bf16 %v3035, %v3035
        %v3051 = vld [vmem:[%s14] sm:$0x1]
        %v3053 = vlaneseq
        %v3054 = vshrl.u32 %v3053, 7
        %v3055 = vsub.s32 0, %v3054
        %v3056 = vrot.slane %v3051, %v3055
        %v3066 = vunpack.c.l.b16 %v3036
        %v3067 = vunpack.c.l.b16 %v3037
        %v3068 = vunpack.c.l.b16 %v3038
        %v3069 = vunpack.c.l.b16 %v3039
        %v3070 = vunpack.c.l.b16 %v3040
        %v3071 = vunpack.c.l.b16 %v3041
        %v3072 = vunpack.c.l.b16 %v3042
        %v3073 = vunpack.c.l.b16 %v3043
        %v3074 = vpack.c.b16 %v3067, %v3066
        %v3075 = vpack.c.b16 %v3069, %v3068
        %v3076 = vpack.c.b16 %v3071, %v3070
        %v3077 = vpack.c.b16 %v3073, %v3072
        %v3083 = vsel %vm2801, %v3044, 0
        %v3086 = vsel %vm2801, %v3045, 0
        %v3089 = vsel %vm2801, %v3046, 0
        %v3092 = vsel %vm2801, %v3047, 0
        %v3095 = vsel %vm2801, %v3048, 0
        %v3098 = vsel %vm2801, %v3049, 0
        %v3101 = vsel %vm2801, %v3050, 0
        %3103 = vmatprep.subr.bf16.mxu0 0
        %3104 = vmatpush1.bf16.msra.mxu0 0
        %3105 = vmatprep.subr.bf16.mxu0 0
        %3106 = vmatpush1.bf16.msra.mxu0 0
        %3107 = vmatprep.subr.bf16.mxu0 0
        %3108 = vmatpush1.bf16.msra.mxu0 0
        %3109 = vmatprep.subr.bf16.mxu0 0
        %3110 = vmatpush1.bf16.msra.mxu0 0
        %3111 = vmatprep.subr.bf16.mxu0 0
        %3112 = vmatpush1.bf16.msra.mxu0 %v3077
        %3113 = vmatprep.subr.bf16.mxu0 0
        %3114 = vmatpush1.bf16.msra.mxu0 %v3076
        %3115 = vmatprep.subr.bf16.mxu0 0
        %3116 = vmatpush1.bf16.msra.mxu0 %v3075
        %3117 = vmatprep.subr.bf16.mxu0 0
        %3118 = vmatpush1.bf16.msra.mxu0 %v3074
        %3119 = vmatprep.subr.bf16.mxu0 0
        %3120 = vmatpush2.bf16.msra.mxu0 0
        %3121 = vmatprep.subr.bf16.mxu0 0
        %3122 = vmatpush2.bf16.msra.mxu0 0
        %3123 = vmatprep.subr.bf16.mxu0 0
        %3124 = vmatpush2.bf16.msra.mxu0 0
        %3125 = vmatprep.subr.bf16.mxu0 0
        %3126 = vmatpush2.bf16.msra.mxu0 0
        %3127 = vmatprep.subr.bf16.mxu0 0
        %3128 = vmatpush2.bf16.msra.mxu0 0
        %3129 = vmatprep.subr.bf16.mxu0 0
        %3130 = vmatpush2.bf16.msra.mxu0 0
        %3131 = vmatprep.subr.bf16.mxu0 0
        %3132 = vmatpush2.bf16.msra.mxu0 0
        %3133 = vmatprep.subr.bf16.mxu0 0
        %3134 = vmatpush2.bf16.msra.mxu0 0
        %3135 = vmatprep.mubr.bf16.mxu0 0
        %3136 = vmatmul.mubr.bf16.gmra.mxu0 %v3083
        %v3137 = vpop.f32.mrf.mxu0
        %v3138 = vadd.f32 %v3056, %v3137
        %v3139 = vpop.f32.mrf.mxu0
        %v3140 = vpop.f32.mrf.mxu0
        %v3141 = vadd.f32 %v3056, %v3140
        %v3142 = vpop.f32.mrf.mxu0
        %3143 = vmatprep.mubr.bf16.mxu0 0
        %3144 = vmatmul.mubr.bf16.gmra.mxu0 %v3086
        %v3145 = vpop.f32.mrf.mxu0
        %v3146 = vadd.f32 %v3056, %v3145
        %v3147 = vpop.f32.mrf.mxu0
        %v3148 = vpop.f32.mrf.mxu0
        %v3149 = vadd.f32 %v3056, %v3148
        %v3150 = vpop.f32.mrf.mxu0
        %3151 = vmatprep.mubr.bf16.mxu0 0
        %3152 = vmatmul.mubr.bf16.gmra.mxu0 %v3089
        %v3153 = vpop.f32.mrf.mxu0
        %v3154 = vadd.f32 %v3056, %v3153
        %v3155 = vpop.f32.mrf.mxu0
        %v3156 = vpop.f32.mrf.mxu0
        %v3157 = vadd.f32 %v3056, %v3156
        %v3158 = vpop.f32.mrf.mxu0
        %3159 = vmatprep.mubr.bf16.mxu0 0
        %3160 = vmatmul.mubr.bf16.gmra.mxu0 %v3092
        %v3161 = vpop.f32.mrf.mxu0
        %v3162 = vadd.f32 %v3056, %v3161
        %v3163 = vpop.f32.mrf.mxu0
        %v3164 = vpop.f32.mrf.mxu0
        %v3165 = vadd.f32 %v3056, %v3164
        %v3166 = vpop.f32.mrf.mxu0
        %3167 = vmatprep.mubr.bf16.mxu0 0
        %3168 = vmatmul.mubr.bf16.gmra.mxu0 %v3095
        %v3169 = vpop.f32.mrf.mxu0
        %v3170 = vadd.f32 %v3056, %v3169
        %v3171 = vpop.f32.mrf.mxu0
        %v3172 = vpop.f32.mrf.mxu0
        %v3173 = vadd.f32 %v3056, %v3172
        %v3174 = vpop.f32.mrf.mxu0
        %3175 = vmatprep.mubr.bf16.mxu0 0
        %3176 = vmatmul.mubr.bf16.gmra.mxu0 %v3098
        %v3177 = vpop.f32.mrf.mxu0
        %v3178 = vadd.f32 %v3056, %v3177
        %v3179 = vpop.f32.mrf.mxu0
        %v3180 = vpop.f32.mrf.mxu0
        %v3181 = vadd.f32 %v3056, %v3180
        %v3182 = vpop.f32.mrf.mxu0
        %3183 = vmatprep.mubr.bf16.mxu0 0
        %3184 = vmatmul.mubr.bf16.gmra.mxu0 %v3101
        %v3185 = vpop.f32.mrf.mxu0
        %v3186 = vadd.f32 %v3056, %v3185
        %v3187 = vpop.f32.mrf.mxu0
        %v3188 = vpop.f32.mrf.mxu0
        %v3189 = vpop.f32.mrf.mxu0
        %3190 = vdwg.mxu0
        %v3191 = vpack.c.bf16 %v3141, %v3138
        %v3192 = vpack.c.bf16 %v3149, %v3146
        %v3193 = vpack.c.bf16 %v3157, %v3154
        %v3194 = vpack.c.bf16 %v3165, %v3162
        %v3195 = vpack.c.bf16 %v3173, %v3170
        %v3196 = vpack.c.bf16 %v3181, %v3178
        %v3197 = vpack.c.bf16 %v3186, %v3186
        %v3205 = vunpack.c.l.b16 %v3191
        %v3206 = vunpack.c.h.b16 %v3191
        %v3207 = vunpack.c.l.b16 %v3192
        %v3208 = vunpack.c.h.b16 %v3192
        %v3209 = vunpack.c.l.b16 %v3193
        %v3210 = vunpack.c.h.b16 %v3193
        %v3211 = vunpack.c.l.b16 %v3194
        %v3212 = vunpack.c.h.b16 %v3194
        %v3213 = vunpack.c.l.b16 %v3195
        %v3214 = vunpack.c.h.b16 %v3195
        %v3215 = vunpack.c.l.b16 %v3196
        %v3216 = vunpack.c.h.b16 %v3196
        %v3217 = vunpack.c.l.b16 %v3197
        %v3218 = vpack.c.b16 %v3205, %v3205
        %v3219 = vpack.c.b16 %v3206, %v3206
        %v3220 = vpack.c.b16 %v3207, %v3207
        %v3221 = vpack.c.b16 %v3208, %v3208
        %v3222 = vpack.c.b16 %v3209, %v3209
        %v3223 = vpack.c.b16 %v3210, %v3210
        %v3224 = vpack.c.b16 %v3211, %v3211
        %v3225 = vpack.c.b16 %v3212, %v3212
        %v3226 = vpack.c.b16 %v3213, %v3213
        %v3227 = vpack.c.b16 %v3214, %v3214
        %v3228 = vpack.c.b16 %v3215, %v3215
        %v3229 = vpack.c.b16 %v3216, %v3216
        %v3230 = vpack.c.b16 %v3217, %v3217
        %3244 = vst [vmem:[%s530] sm:$0xf] %v3218
        %3245 = vst [vmem:[%s530 + $0x4] sm:$0xf] %v3219
        %3246 = vst [vmem:[%s530 + $0x8] sm:$0xf] %v3220
        %3247 = vst [vmem:[%s530 + $0xc] sm:$0xf] %v3221
        %3248 = vst [vmem:[%s530 + $0x10] sm:$0xf] %v3222
        %3249 = vst [vmem:[%s530 + $0x14] sm:$0xf] %v3223
        %3250 = vst [vmem:[%s530 + $0x18] sm:$0xf] %v3224
        %3251 = vst [vmem:[%s530 + $0x1c] sm:$0xf] %v3225
        %3252 = vst [vmem:[%s530 + $0x20] sm:$0xf] %v3226
        %3253 = vst [vmem:[%s530 + $0x24] sm:$0xf] %v3227
        %3254 = vst [vmem:[%s530 + $0x28] sm:$0xf] %v3228
        %3255 = vst [vmem:[%s530 + $0x2c] sm:$0xf] %v3229
        %3256 = vst [vmem:[%s530 + $0x30] sm:$0xf] %v3230
        %s3257 = sand.u32 %s359, 1
        %s3258 = scalar_lea.sflag [#allocation4], %s3257
        %s3259 = sand.u32 %s359, 1
        %s3260 = smul.addr %s3259, 52
        %s3261 = scalar_lea.vmem [#allocation8], %s3260
        // Predicated region
        $region93: #{tpu_custom_call.1} parent=79 // pred_check
          %p3262 = pneg %p369
        $region94: #{tpu_custom_call.1} parent=79 // pred_check_branch
          %3264 = sbr.rel (%p3262) target = $region96
        $region95: #{tpu_custom_call.1} parent=79 // pred_region
          %s3265 = smul.u32 13, %s31
          %s3267 = ssub.s32 832, 832
          %3268 = vsyncadd %s3258, %s3267
          %s3269 = smul.addr %s3265, 64
          %s3270 = scalar_lea.hbm %s15, %s3269
          %s3271 = sshll.u32 %s3261, 4
          %s3272 = int_to_ptr.vmem [resolvable:$true] %s3271
          %3277 = dma.vmem_to_hbm [thread:$0]  %s3272, 832, %s3270, %s3258, 64, 64, 4
        $region96: #{tpu_custom_call.1} parent=79 // pred_fallthru
          _
      $region80: #{tpu_custom_call.1} parent=5 // pred_fallthru
        _
      %p3278 = scmp.le.s32.totalorder 2, %s26
      // Predicated region
      $region97: #{tpu_custom_call.1} parent=5 // pred_check
        %p3279 = pneg %p3278
      $region98: #{tpu_custom_call.1} parent=5 // pred_check_branch
        %3281 = sbr.rel (%p3279) target = $region100
      $region99: #{tpu_custom_call.1} parent=5 // pred_region
        %s3282 = ssub.s32 %s26, 2
        // Predicated region
        $region101: #{tpu_custom_call.1} parent=99 // pred_check
          %p3283 = pneg %p375
        $region102: #{tpu_custom_call.1} parent=99 // pred_check_branch
          %3285 = sbr.rel (%p3283) target = $region104
        $region103: #{tpu_custom_call.1} parent=99 // pred_region
          %s3286 = sand.u32 %s360, 1
          %s3287 = scalar_lea.sflag [#allocation4], %s3286
          %s3288 = sand.u32 %s360, 1
          %s3289 = smul.addr %s3288, 52
          %s3290 = scalar_lea.vmem [#allocation8], %s3289
          %3291 = dma.done %s3287, 832
        $region104: #{tpu_custom_call.1} parent=99 // pred_fallthru
          _
      $region100: #{tpu_custom_call.1} parent=5 // pred_fallthru
        _
    $region6: #{tpu_custom_call.1} parent=1 // loop_footer
      %s30 = sadd.s32 1, %s26
    $region7: #{tpu_custom_call.1} parent=1 // loop_footer_branch
      %25 = sbr.rel target = $region3
    $region8: #{tpu_custom_call.1} parent=1 // loop_exit
      _
    %3292 = vsyncpa [#allocation3], 1
    %s3293 = scalar_lea.sflag [#allocation3], 1
    %3294 = vsyncpa %s3293, 1
    %3295 = vsyncpa [#allocation6], 1
    %3296 = vsyncpa [#allocation4], 1
    %s3297 = scalar_lea.sflag [#allocation4], 1
    %3298 = vsyncpa %s3297, 1

</llo_original>
